<compile_context>
chip_gen: v7x
topology: tpu7x:2x2x1
jax: 0.10.0
libtpu: 0.0.40
codegen_flags: <defaults>
</compile_context>

<pallas_src>
import functools

import jax
import jax.numpy as jnp
from jax import lax
from jax.experimental import pallas as pl
from jax.experimental.pallas import tpu as pltpu


# ---------------------------------------------------------------------------
# Kernel body (one grid step = one batch element x NG nodes x all heads)
# ---------------------------------------------------------------------------

def _attention_body(q_ref, k_ref, v_ref, wqkv_ref, bqkv_ref, wo_ref, bo_ref,
                    out_ref, attn_ref, *, H, E, mxu_dtype):
    """q_ref/k_ref/v_ref: (NG, L|S, D) activations for this batch element.
    wqkv_ref: (3, H, NG, D, E); bqkv_ref: (3, H, NG, 1, E);
    wo_ref: (H, E, D); bo_ref: (1, D);
    out_ref: (NG, L, D); attn_ref: (NG, H, L, S).
    """
    f32 = jnp.float32
    NG, L, D = q_ref.shape
    S = k_ref.shape[1]
    scale = 1.0 / (float(E) ** 0.5)        # FullAttention default: 1/sqrt(d_keys)
    approx = mxu_dtype != jnp.float32      # EUP approx recip only on the bf16 path

    # Load activations once; on the self-attention fast path k_ref/v_ref alias q_ref.
    xq = q_ref[...].astype(mxu_dtype)
    xk = xq if k_ref is q_ref else k_ref[...].astype(mxu_dtype)
    xv = xk if v_ref is k_ref else v_ref[...].astype(mxu_dtype)

    dn_proj = (((2,), (1,)), ((0,), (0,)))   # (NG,T,D) x (NG,D,E) -> (NG,T,E)
    dn_qk = (((2,), (2,)), ((0,), (0,)))     # (NG,L,E) x (NG,S,E) -> (NG,L,S)
    dn_av = (((2,), (1,)), ((0,), (0,)))     # (NG,L,S) x (NG,S,E) -> (NG,L,E)

    out_acc = None
    for h in range(H):                       # static unroll; H is small
        # Leading-axis indexing of the fused weight refs is free (no lane slicing).
        q_h = lax.dot_general(xq, wqkv_ref[0, h].astype(mxu_dtype), dn_proj,
                              preferred_element_type=f32) + bqkv_ref[0, h].astype(f32)
        k_h = lax.dot_general(xk, wqkv_ref[1, h].astype(mxu_dtype), dn_proj,
                              preferred_element_type=f32) + bqkv_ref[1, h].astype(f32)
        v_h = lax.dot_general(xv, wqkv_ref[2, h].astype(mxu_dtype), dn_proj,
                              preferred_element_type=f32) + bqkv_ref[2, h].astype(f32)

        # Scores + softmax (full key axis is resident, no online rescaling needed).
        s = lax.dot_general(q_h.astype(mxu_dtype), k_h.astype(mxu_dtype), dn_qk,
                            preferred_element_type=f32) * scale          # (NG, L, S)
        m = jnp.max(s, axis=-1, keepdims=True)
        p = jnp.exp(s - m)
        a = p * pl.reciprocal(jnp.sum(p, axis=-1, keepdims=True), approx=approx)

        # Per-head store: bounds the live range of `a` to one head and lets the
        # store overlap the next head's matmuls (no list/concat accumulation).
        attn_ref[:, h, :, :] = a.astype(attn_ref.dtype)

        ctx = lax.dot_general(a.astype(mxu_dtype), v_h.astype(mxu_dtype), dn_av,
                              preferred_element_type=f32)                # (NG, L, E)
        # Shared out-projection folded into the head loop:
        #   concat_h(ctx_h) @ Wo  ==  sum_h ctx_h @ Wo[h]   (no lane-dim concat).
        o_h = jnp.dot(ctx.reshape(NG * L, E).astype(mxu_dtype),
                      wo_ref[h].astype(mxu_dtype),
                      preferred_element_type=f32)                        # (NG*L, D)
        out_acc = o_h if out_acc is None else out_acc + o_h

    out = out_acc + bo_ref[...].astype(f32)                              # (NG*L, D)
    out_ref[...] = out.reshape(NG, L, D).astype(out_ref.dtype)


def _fused_kernel(x_ref, wqkv_ref, bqkv_ref, wo_ref, bo_ref, out_ref, attn_ref,
                  *, H, E, mxu_dtype):
    """Self-attention fast path: queries == keys == values -> one activation stream."""
    _attention_body(x_ref, x_ref, x_ref, wqkv_ref, bqkv_ref, wo_ref, bo_ref,
                    out_ref, attn_ref, H=H, E=E, mxu_dtype=mxu_dtype)


def _general_kernel(q_ref, k_ref, v_ref, wqkv_ref, bqkv_ref, wo_ref, bo_ref,
                    out_ref, attn_ref, *, H, E, mxu_dtype):
    """General path: distinct queries / keys / values tensors (S may differ from L)."""
    _attention_body(q_ref, k_ref, v_ref, wqkv_ref, bqkv_ref, wo_ref, bo_ref,
                    out_ref, attn_ref, H=H, E=E, mxu_dtype=mxu_dtype)


# ---------------------------------------------------------------------------
# Chunking / hardware helpers
# ---------------------------------------------------------------------------

def _round_up(x, m):
    return -(-x // m) * m


def _block_bytes(shape, dtype):
    """Rough VMEM footprint of a block: 2nd-to-last dim padded to 8, last to 128."""
    s = list(shape)
    if len(s) >= 2:
        s[-2] = _round_up(s[-2], 8)
    s[-1] = _round_up(s[-1], 128)
    n = 1
    for d in s:
        n *= d
    return n * jnp.dtype(dtype).itemsize


def _vmem_capacity_bytes():
    try:
        return int(pltpu.get_tpu_info().vmem_capacity_bytes)
    except Exception:
        return 64 * 2 ** 20          # conservative: v7x per-TensorCore VMEM


def _default_mxu_dtype():
    # v5e has no bf16 VPU/EUP: the .astype casts cost more than bf16 operands buy
    # on these latency-bound matmuls.  v6e/v7x: bf16 operands, f32 accumulation.
    try:
        kind = jax.devices()[0].device_kind.lower()
    except Exception:
        return jnp.bfloat16
    if "v5e" in kind or "v5 lite" in kind or "v5lite" in kind:
        return jnp.float32
    return jnp.bfloat16


def _choose_node_chunk(N, B, step_bytes_fn, budget_bytes):
    """Largest divisor of N that fits the VMEM budget; prefer a grid >= 4 steps."""
    divs = sorted({d for i in range(1, int(N ** 0.5) + 1) if N % i == 0
                   for d in (i, N // i)}, reverse=True)
    fitting = [d for d in divs if step_bytes_fn(d) <= budget_bytes]
    if not fitting:
        return 1
    deep = [d for d in fitting if (N // d) * B >= 4]
    return deep[0] if deep else fitting[0]


# ---------------------------------------------------------------------------
# Public wrapper
# ---------------------------------------------------------------------------

def attention_layer(queries, keys, values, params, *, n_heads, attn_mask=None,
                    mxu_dtype=None, attn_dtype=jnp.float32):
    """queries: (B, N, L, D); keys/values: (B, N, S, D).

    Returns (out (B, N, L, D), attn (B, N, H, L, S)).
    """
    if attn_mask is not None:
        # TODO(synk): masked FullAttention is not implemented; the injected
        # inner_correlation is modelled as unmasked multi-head attention.
        raise NotImplementedError("attn_mask is not supported by this kernel")

    B, N, L, D = queries.shape
    S = keys.shape[2]
    H = n_heads
    E = params["wqkv"].shape[-1]
    HE = H * E
    assert params["wqkv"].shape == (3, H, N, D, E)
    assert params["bqkv"].shape == (3, H, N, 1, E)
    assert params["wo"].shape == (H, E, D)
    assert params["bo"].shape == (1, D)

    if mxu_dtype is None:
        mxu_dtype = _default_mxu_dtype()

    # Self-attention fast path (single activation DMA stream) is selected by
    # object identity; equal-but-distinct q/k/v arrays take the general path.
    fused = (queries is keys) and (keys is values)
    n_act_streams = 1 if fused else 3

    in_dt = queries.dtype
    p_dt = params["wqkv"].dtype

    def step_bytes(ng):
        blocks = (
            n_act_streams * _block_bytes((ng, max(L, S), D), in_dt)      # activations
            + _block_bytes((3, H, ng, D, E), p_dt)                       # wqkv
            + _block_bytes((3, H, ng, 1, E), p_dt)                       # bqkv
            + _block_bytes((H, E, D), p_dt) + _block_bytes((1, D), p_dt)  # wo, bo
            + _block_bytes((ng, L, D), in_dt)                            # out block
            + _block_bytes((ng, H, L, S), attn_dtype)                    # attn block
        )
        inter = 8 * _block_bytes((ng, max(L, S), max(D, S, E)), jnp.float32)
        return 2 * blocks + inter    # x2: double-buffered BlockSpec pipeline

    cap = _vmem_capacity_bytes()
    budget = min(24 * 2 ** 20, cap // 3)   # safe on v5e/v6e (128 MiB) and v7x (64 MiB)
    NG = _choose_node_chunk(N, B, step_bytes, budget)
    num_chunks = N // NG
    vmem_limit = int(min(cap, max(32 * 2 ** 20, 2 * step_bytes(NG))))

    # All arrays are chunked only on the (leading) node axis; trailing dims stay
    # full, so the (8,128) tiling rule holds for any NG and the wrapper does
    # zero HBM transposes / relayouts.
    def act_spec(T):
        return pl.BlockSpec((None, NG, T, D), lambda c, b: (b, c, 0, 0))

    w_spec = pl.BlockSpec((3, H, NG, D, E), lambda c, b: (0, 0, c, 0, 0))
    bqkv_spec = pl.BlockSpec((3, H, NG, 1, E), lambda c, b: (0, 0, c, 0, 0))
    wo_spec = pl.BlockSpec((H, E, D), lambda c, b: (0, 0, 0))
    bo_spec = pl.BlockSpec((1, D), lambda c, b: (0, 0))
    out_spec = pl.BlockSpec((None, NG, L, D), lambda c, b: (b, c, 0, 0))
    attn_spec = pl.BlockSpec((None, NG, H, L, S), lambda c, b: (b, c, 0, 0, 0))

    if fused:
        kernel = functools.partial(_fused_kernel, H=H, E=E, mxu_dtype=mxu_dtype)
        in_specs = [act_spec(L), w_spec, bqkv_spec, wo_spec, bo_spec]
        args = (queries, params["wqkv"], params["bqkv"], params["wo"], params["bo"])
        act_bytes = B * N * L * D * jnp.dtype(in_dt).itemsize
    else:
        kernel = functools.partial(_general_kernel, H=H, E=E, mxu_dtype=mxu_dtype)
        in_specs = [act_spec(L), act_spec(S), act_spec(S),
                    w_spec, bqkv_spec, wo_spec, bo_spec]
        args = (queries, keys, values,
                params["wqkv"], params["bqkv"], params["wo"], params["bo"])
        act_bytes = B * N * (L + 2 * S) * D * jnp.dtype(in_dt).itemsize

    flops = (2 * B * N * D * HE * (L + 2 * S)       # q/k/v projections
             + 4 * B * N * H * L * S * E            # scores + context matmuls
             + 2 * B * N * L * HE * D)              # shared out-projection
    bytes_accessed = (
        act_bytes
        + sum(int(p.size) * jnp.dtype(p.dtype).itemsize for p in params.values())
        + B * N * L * D * jnp.dtype(in_dt).itemsize
        + B * N * H * L * S * jnp.dtype(attn_dtype).itemsize)
    cost = pl.CostEstimate(flops=int(flops),
                           transcendentals=int(B * N * H * L * S),
                           bytes_accessed=int(bytes_accessed))

    out, attn = pl.pallas_call(
        kernel,
        out_shape=(
            jax.ShapeDtypeStruct((B, N, L, D), queries.dtype),
            jax.ShapeDtypeStruct((B, N, H, L, S), attn_dtype),
        ),
        grid_spec=pltpu.PrefetchScalarGridSpec(
            num_scalar_prefetch=0,
            # node-chunk outer, batch inner: per-node weights are not re-DMA'd
            # across the B inner steps of a chunk; >= num_chunks*B total steps
            # keep the pipeline (and both v7x TensorCores) busy.
            grid=(num_chunks, B),
            in_specs=in_specs,
            out_specs=[out_spec, attn_spec],
        ),
        compiler_params=pltpu.CompilerParams(
            dimension_semantics=("parallel", "parallel"),
            vmem_limit_bytes=vmem_limit),
        cost_estimate=cost,
    )(*args)
    return out, attn


# ---------------------------------------------------------------------------
# Pure-JAX reference + parameter construction (mirrors the PyTorch module)
# ---------------------------------------------------------------------------

def reference(queries, keys, values, params, *, n_heads):
    """Pure-JAX reference mirroring the PyTorch AttentionLayer forward (eval mode)."""
    E = params["wqkv"].shape[-1]

    def proj(x, i):
        w = params["wqkv"][i]                     # (H, N, D, E)
        b = params["bqkv"][i][:, :, 0, :]         # (H, N, E)
        y = jnp.einsum("bnld,hnde->bnlhe", x, w)
        return y + jnp.transpose(b, (1, 0, 2))[None, :, None, :, :]

    q = proj(queries, 0)
    k = proj(keys, 1)
    v = proj(values, 2)

    scores = jnp.einsum("bnlhe,bnshe->bnhls", q, k) / jnp.sqrt(jnp.float32(E))
    attn = jax.nn.softmax(scores, axis=-1)
    ctx = jnp.einsum("bnhls,bnshe->bnlhe", attn, v)
    out = jnp.einsum("bnlhe,hed->bnld", ctx, params["wo"]) + params["bo"][0]
    return out, attn


def make_params(key, num_nodes, d_model, n_heads):
    H = n_heads
    E = d_model // H            # module defaults: d_keys = d_values = d_model // H
    ks = jax.random.split(key, 4)
    sd = 1.0 / jnp.sqrt(jnp.float32(d_model))
    se = 1.0 / jnp.sqrt(jnp.float32(H * E))
    return {
        # per-node MyLinear weights, stacked head-major on LEADING axes so the
        # kernel never slices the lane dimension: wqkv[i, h, n] = (D, E)
        "wqkv": jax.random.normal(ks[0], (3, H, num_nodes, d_model, E), jnp.float32) * sd,
        "bqkv": jax.random.normal(ks[1], (3, H, num_nodes, 1, E), jnp.float32) * 0.1,
        # shared out_projection, head-major (H, E, D), plus bias
        "wo": jax.random.normal(ks[2], (H, E, d_model), jnp.float32) * se,
        "bo": jax.random.normal(ks[3], (1, d_model), jnp.float32) * 0.1,
    }


if __name__ == "__main__":
    B, N, L, d_model, H = 2, 4, 8, 32, 4

    key = jax.random.PRNGKey(0)
    kq, kk, kv, kp = jax.random.split(key, 4)
    x = jax.random.normal(kq, (B, N, L, d_model), jnp.float32)
    params = make_params(kp, N, d_model, H)

    ref_out, ref_attn = reference(x, x, x, params, n_heads=H)

    # --- self-attention (queries = keys = values), f32 MXU path: tight check ---
    out32, attn32 = attention_layer(x, x, x, params, n_heads=H,
                                    mxu_dtype=jnp.float32)
    out32 = jax.block_until_ready(out32)
    attn32 = jax.block_until_ready(attn32)
    assert out32.shape == (B, N, L, d_model) and attn32.shape == (B, N, H, L, L)
    assert jnp.allclose(out32, ref_out, rtol=1e-3, atol=1e-3)
    assert jnp.allclose(attn32, ref_attn, rtol=1e-3, atol=1e-3)

    # --- self-attention, bf16 MXU operands (f32 accumulation): v6e/v7x fast path ---
    out16, attn16 = attention_layer(x, x, x, params, n_heads=H,
                                    mxu_dtype=jnp.bfloat16)
    out16 = jax.block_until_ready(out16)
    attn16 = jax.block_until_ready(attn16)
    assert jnp.allclose(out16, ref_out, rtol=5e-2, atol=5e-2)
    assert jnp.allclose(attn16, ref_attn, rtol=5e-2, atol=5e-2)

    # --- general path: distinct keys / values with S != L (cross-attention) ---
    S = 16
    keys_in = jax.random.normal(kk, (B, N, S, d_model), jnp.float32)
    vals_in = jax.random.normal(kv, (B, N, S, d_model), jnp.float32)
    outg, attng = attention_layer(x, keys_in, vals_in, params, n_heads=H,
                                  mxu_dtype=jnp.float32)
    outg = jax.block_until_ready(outg)
    attng = jax.block_until_ready(attng)
    refg_out, refg_attn = reference(x, keys_in, vals_in, params, n_heads=H)
    assert outg.shape == (B, N, L, d_model) and attng.shape == (B, N, H, L, S)
    assert jnp.allclose(outg, refg_out, rtol=1e-3, atol=1e-3)
    assert jnp.allclose(attng, refg_attn, rtol=1e-3, atol=1e-3)

    # --- default (generation-dependent) operand dtype: sanity only ---
    outd, attnd = attention_layer(x, x, x, params, n_heads=H)
    outd = jax.block_until_ready(outd)
    assert bool(jnp.all(jnp.isfinite(outd))) and bool(jnp.all(jnp.isfinite(attnd)))

    print("KERNEL_OK")
</pallas_src>

<mosaic_0001>
module attributes {stable_mosaic.version = 11 : i64} {
  func.func @_fused_kernel(%arg0: i32, %arg1: i32, %arg2: memref<1x2x8x32xf32, #tpu.memory_space<vmem>>, %arg3: memref<3x4x2x32x8xf32, #tpu.memory_space<vmem>>, %arg4: memref<3x4x2x1x8xf32, #tpu.memory_space<vmem>>, %arg5: memref<4x8x32xf32, #tpu.memory_space<vmem>>, %arg6: memref<1x32xf32, #tpu.memory_space<vmem>>, %arg7: memref<1x2x8x32xf32, #tpu.memory_space<vmem>>, %arg8: memref<1x2x4x8x8xf32, #tpu.memory_space<vmem>>) attributes {dimension_semantics = [#tpu.dimension_semantics<parallel>, #tpu.dimension_semantics<parallel>], iteration_bounds = array<i64: 2, 2>, scalar_prefetch = 0 : i64, scratch_operands = 0 : i64, tpu.core_type = #tpu.core_type<tc>, window_params = [{transform_indices = @transform_0, window_bounds = array<i64: 1, 2, 8, 32>}, {transform_indices = @transform_1, window_bounds = array<i64: 3, 4, 2, 32, 8>}, {transform_indices = @transform_2, window_bounds = array<i64: 3, 4, 2, 1, 8>}, {pipeline_mode = #tpu.pipeline_mode<synchronous>, transform_indices = @transform_3, window_bounds = array<i64: 4, 8, 32>}, {pipeline_mode = #tpu.pipeline_mode<synchronous>, transform_indices = @transform_4, window_bounds = array<i64: 1, 32>}, {transform_indices = @transform_5, window_bounds = array<i64: 1, 2, 8, 32>}, {transform_indices = @transform_6, window_bounds = array<i64: 1, 2, 4, 8, 8>}]} {
    %c0 = arith.constant 0 : index
    %c0_0 = arith.constant 0 : index
    %c0_1 = arith.constant 0 : index
    %c0_2 = arith.constant 0 : index
    %0 = vector.load %arg2[%c0, %c0_0, %c0_1, %c0_2] : memref<1x2x8x32xf32, #tpu.memory_space<vmem>>, vector<1x2x8x32xf32>
    %1 = vector.shape_cast %0 : vector<1x2x8x32xf32> to vector<2x8x32xf32>
    %c0_3 = arith.constant 0 : index
    %c0_4 = arith.constant 0 : index
    %c0_5 = arith.constant 0 : index
    %c0_6 = arith.constant 0 : index
    %c0_7 = arith.constant 0 : index
    %2 = vector.load %arg3[%c0_3, %c0_4, %c0_5, %c0_6, %c0_7] : memref<3x4x2x32x8xf32, #tpu.memory_space<vmem>>, vector<1x1x2x32x8xf32>
    %3 = vector.shape_cast %2 : vector<1x1x2x32x8xf32> to vector<2x32x8xf32>
    %cst = arith.constant dense<0.000000e+00> : vector<2x8x8xf32>
    %4 = tpu.matmul %1, %3, %cst {dimension_numbers = #tpu.dot_dimension_numbers<[2], [1], [1], [2], [0, 0, 0, 1, 1, 2], [0], [0]>} : vector<2x8x32xf32>, vector<2x32x8xf32>, vector<2x8x8xf32> -> vector<2x8x8xf32>
    %c0_8 = arith.constant 0 : index
    %c0_9 = arith.constant 0 : index
    %c0_10 = arith.constant 0 : index
    %c0_11 = arith.constant 0 : index
    %c0_12 = arith.constant 0 : index
    %5 = vector.load %arg4[%c0_8, %c0_9, %c0_10, %c0_11, %c0_12] : memref<3x4x2x1x8xf32, #tpu.memory_space<vmem>>, vector<1x1x2x1x8xf32>
    %6 = vector.shape_cast %5 : vector<1x1x2x1x8xf32> to vector<2x1x8xf32>
    %7 = vector.broadcast %6 : vector<2x1x8xf32> to vector<2x8x8xf32>
    %8 = arith.addf %4, %7 : vector<2x8x8xf32>
    %c1 = arith.constant 1 : index
    %c0_13 = arith.constant 0 : index
    %c0_14 = arith.constant 0 : index
    %c0_15 = arith.constant 0 : index
    %c0_16 = arith.constant 0 : index
    %9 = vector.load %arg3[%c1, %c0_13, %c0_14, %c0_15, %c0_16] : memref<3x4x2x32x8xf32, #tpu.memory_space<vmem>>, vector<1x1x2x32x8xf32>
    %10 = vector.shape_cast %9 : vector<1x1x2x32x8xf32> to vector<2x32x8xf32>
    %cst_17 = arith.constant dense<0.000000e+00> : vector<2x8x8xf32>
    %11 = tpu.matmul %1, %10, %cst_17 {dimension_numbers = #tpu.dot_dimension_numbers<[2], [1], [1], [2], [0, 0, 0, 1, 1, 2], [0], [0]>} : vector<2x8x32xf32>, vector<2x32x8xf32>, vector<2x8x8xf32> -> vector<2x8x8xf32>
    %c1_18 = arith.constant 1 : index
    %c0_19 = arith.constant 0 : index
    %c0_20 = arith.constant 0 : index
    %c0_21 = arith.constant 0 : index
    %c0_22 = arith.constant 0 : index
    %12 = vector.load %arg4[%c1_18, %c0_19, %c0_20, %c0_21, %c0_22] : memref<3x4x2x1x8xf32, #tpu.memory_space<vmem>>, vector<1x1x2x1x8xf32>
    %13 = vector.shape_cast %12 : vector<1x1x2x1x8xf32> to vector<2x1x8xf32>
    %14 = vector.broadcast %13 : vector<2x1x8xf32> to vector<2x8x8xf32>
    %15 = arith.addf %11, %14 : vector<2x8x8xf32>
    %c2 = arith.constant 2 : index
    %c0_23 = arith.constant 0 : index
    %c0_24 = arith.constant 0 : index
    %c0_25 = arith.constant 0 : index
    %c0_26 = arith.constant 0 : index
    %16 = vector.load %arg3[%c2, %c0_23, %c0_24, %c0_25, %c0_26] : memref<3x4x2x32x8xf32, #tpu.memory_space<vmem>>, vector<1x1x2x32x8xf32>
    %17 = vector.shape_cast %16 : vector<1x1x2x32x8xf32> to vector<2x32x8xf32>
    %cst_27 = arith.constant dense<0.000000e+00> : vector<2x8x8xf32>
    %18 = tpu.matmul %1, %17, %cst_27 {dimension_numbers = #tpu.dot_dimension_numbers<[2], [1], [1], [2], [0, 0, 0, 1, 1, 2], [0], [0]>} : vector<2x8x32xf32>, vector<2x32x8xf32>, vector<2x8x8xf32> -> vector<2x8x8xf32>
    %c2_28 = arith.constant 2 : index
    %c0_29 = arith.constant 0 : index
    %c0_30 = arith.constant 0 : index
    %c0_31 = arith.constant 0 : index
    %c0_32 = arith.constant 0 : index
    %19 = vector.load %arg4[%c2_28, %c0_29, %c0_30, %c0_31, %c0_32] : memref<3x4x2x1x8xf32, #tpu.memory_space<vmem>>, vector<1x1x2x1x8xf32>
    %20 = vector.shape_cast %19 : vector<1x1x2x1x8xf32> to vector<2x1x8xf32>
    %21 = vector.broadcast %20 : vector<2x1x8xf32> to vector<2x8x8xf32>
    %22 = arith.addf %18, %21 : vector<2x8x8xf32>
    %cst_33 = arith.constant dense<0.000000e+00> : vector<2x8x8xf32>
    %23 = tpu.matmul %8, %15, %cst_33 {dimension_numbers = #tpu.dot_dimension_numbers<[2], [2], [1], [1], [0, 0, 0, 1, 1, 1], [0], [0]>} : vector<2x8x8xf32>, vector<2x8x8xf32>, vector<2x8x8xf32> -> vector<2x8x8xf32>
    %cst_34 = arith.constant 0.353553385 : f32
    %24 = vector.broadcast %cst_34 : f32 to vector<2x8x8xf32>
    %25 = arith.mulf %23, %24 : vector<2x8x8xf32>
    %cst_35 = arith.constant dense<0xFF800000> : vector<2x8xf32>
    %26 = vector.multi_reduction <maximumf>, %25, %cst_35 [2] : vector<2x8x8xf32> to vector<2x8xf32>
    %27 = vector.shape_cast %26 : vector<2x8xf32> to vector<2x8x1xf32>
    %28 = vector.broadcast %27 : vector<2x8x1xf32> to vector<2x8x8xf32>
    %29 = arith.subf %25, %28 : vector<2x8x8xf32>
    %30 = math.exp %29 : vector<2x8x8xf32>
    %cst_36 = arith.constant dense<0.000000e+00> : vector<2x8xf32>
    %31 = vector.multi_reduction <add>, %30, %cst_36 [2] : vector<2x8x8xf32> to vector<2x8xf32>
    %32 = vector.shape_cast %31 : vector<2x8xf32> to vector<2x8x1xf32>
    %33 = tpu.reciprocal %32 : vector<2x8x1xf32> -> vector<2x8x1xf32>
    %34 = vector.broadcast %33 : vector<2x8x1xf32> to vector<2x8x8xf32>
    %35 = arith.mulf %30, %34 : vector<2x8x8xf32>
    %c0_37 = arith.constant 0 : index
    %c0_38 = arith.constant 0 : index
    %c0_39 = arith.constant 0 : index
    %c0_40 = arith.constant 0 : index
    %c0_41 = arith.constant 0 : index
    %36 = vector.load %arg8[%c0_37, %c0_38, %c0_39, %c0_40, %c0_41] : memref<1x2x4x8x8xf32, #tpu.memory_space<vmem>>, vector<1x2x1x8x8xf32>
    %37 = vector.shape_cast %36 : vector<1x2x1x8x8xf32> to vector<2x8x8xf32>
    %38 = vector.shape_cast %35 : vector<2x8x8xf32> to vector<1x2x1x8x8xf32>
    tpu.vector_store %arg8[%c0_37, %c0_38, %c0_39, %c0_40, %c0_41], %38 {strides = array<i32>} : memref<1x2x4x8x8xf32, #tpu.memory_space<vmem>>, vector<1x2x1x8x8xf32>,
    %cst_42 = arith.constant dense<0.000000e+00> : vector<2x8x8xf32>
    %39 = tpu.matmul %35, %22, %cst_42 {dimension_numbers = #tpu.dot_dimension_numbers<[2], [1], [1], [2], [0, 0, 0, 1, 1, 2], [0], [0]>} : vector<2x8x8xf32>, vector<2x8x8xf32>, vector<2x8x8xf32> -> vector<2x8x8xf32>
    %40 = vector.shape_cast %39 : vector<2x8x8xf32> to vector<16x8xf32>
    %c0_43 = arith.constant 0 : index
    %c0_44 = arith.constant 0 : index
    %c0_45 = arith.constant 0 : index
    %41 = vector.load %arg5[%c0_43, %c0_44, %c0_45] : memref<4x8x32xf32, #tpu.memory_space<vmem>>, vector<1x8x32xf32>
    %42 = vector.shape_cast %41 : vector<1x8x32xf32> to vector<8x32xf32>
    %cst_46 = arith.constant dense<0.000000e+00> : vector<16x32xf32>
    %43 = tpu.matmul %40, %42, %cst_46 {dimension_numbers = #tpu.dot_dimension_numbers<[1], [0], [0], [1], [0, 0, 1, 1], [], []>} : vector<16x8xf32>, vector<8x32xf32>, vector<16x32xf32> -> vector<16x32xf32>
    %c0_47 = arith.constant 0 : index
    %c1_48 = arith.constant 1 : index
    %c0_49 = arith.constant 0 : index
    %c0_50 = arith.constant 0 : index
    %c0_51 = arith.constant 0 : index
    %44 = vector.load %arg3[%c0_47, %c1_48, %c0_49, %c0_50, %c0_51] : memref<3x4x2x32x8xf32, #tpu.memory_space<vmem>>, vector<1x1x2x32x8xf32>
    %45 = vector.shape_cast %44 : vector<1x1x2x32x8xf32> to vector<2x32x8xf32>
    %cst_52 = arith.constant dense<0.000000e+00> : vector<2x8x8xf32>
    %46 = tpu.matmul %1, %45, %cst_52 {dimension_numbers = #tpu.dot_dimension_numbers<[2], [1], [1], [2], [0, 0, 0, 1, 1, 2], [0], [0]>} : vector<2x8x32xf32>, vector<2x32x8xf32>, vector<2x8x8xf32> -> vector<2x8x8xf32>
    %c0_53 = arith.constant 0 : index
    %c1_54 = arith.constant 1 : index
    %c0_55 = arith.constant 0 : index
    %c0_56 = arith.constant 0 : index
    %c0_57 = arith.constant 0 : index
    %47 = vector.load %arg4[%c0_53, %c1_54, %c0_55, %c0_56, %c0_57] : memref<3x4x2x1x8xf32, #tpu.memory_space<vmem>>, vector<1x1x2x1x8xf32>
    %48 = vector.shape_cast %47 : vector<1x1x2x1x8xf32> to vector<2x1x8xf32>
    %49 = vector.broadcast %48 : vector<2x1x8xf32> to vector<2x8x8xf32>
    %50 = arith.addf %46, %49 : vector<2x8x8xf32>
    %c1_58 = arith.constant 1 : index
    %c1_59 = arith.constant 1 : index
    %c0_60 = arith.constant 0 : index
    %c0_61 = arith.constant 0 : index
    %c0_62 = arith.constant 0 : index
    %51 = vector.load %arg3[%c1_58, %c1_59, %c0_60, %c0_61, %c0_62] : memref<3x4x2x32x8xf32, #tpu.memory_space<vmem>>, vector<1x1x2x32x8xf32>
    %52 = vector.shape_cast %51 : vector<1x1x2x32x8xf32> to vector<2x32x8xf32>
    %cst_63 = arith.constant dense<0.000000e+00> : vector<2x8x8xf32>
    %53 = tpu.matmul %1, %52, %cst_63 {dimension_numbers = #tpu.dot_dimension_numbers<[2], [1], [1], [2], [0, 0, 0, 1, 1, 2], [0], [0]>} : vector<2x8x32xf32>, vector<2x32x8xf32>, vector<2x8x8xf32> -> vector<2x8x8xf32>
    %c1_64 = arith.constant 1 : index
    %c1_65 = arith.constant 1 : index
    %c0_66 = arith.constant 0 : index
    %c0_67 = arith.constant 0 : index
    %c0_68 = arith.constant 0 : index
    %54 = vector.load %arg4[%c1_64, %c1_65, %c0_66, %c0_67, %c0_68] : memref<3x4x2x1x8xf32, #tpu.memory_space<vmem>>, vector<1x1x2x1x8xf32>
    %55 = vector.shape_cast %54 : vector<1x1x2x1x8xf32> to vector<2x1x8xf32>
    %56 = vector.broadcast %55 : vector<2x1x8xf32> to vector<2x8x8xf32>
    %57 = arith.addf %53, %56 : vector<2x8x8xf32>
    %c2_69 = arith.constant 2 : index
    %c1_70 = arith.constant 1 : index
    %c0_71 = arith.constant 0 : index
    %c0_72 = arith.constant 0 : index
    %c0_73 = arith.constant 0 : index
    %58 = vector.load %arg3[%c2_69, %c1_70, %c0_71, %c0_72, %c0_73] : memref<3x4x2x32x8xf32, #tpu.memory_space<vmem>>, vector<1x1x2x32x8xf32>
    %59 = vector.shape_cast %58 : vector<1x1x2x32x8xf32> to vector<2x32x8xf32>
    %cst_74 = arith.constant dense<0.000000e+00> : vector<2x8x8xf32>
    %60 = tpu.matmul %1, %59, %cst_74 {dimension_numbers = #tpu.dot_dimension_numbers<[2], [1], [1], [2], [0, 0, 0, 1, 1, 2], [0], [0]>} : vector<2x8x32xf32>, vector<2x32x8xf32>, vector<2x8x8xf32> -> vector<2x8x8xf32>
    %c2_75 = arith.constant 2 : index
    %c1_76 = arith.constant 1 : index
    %c0_77 = arith.constant 0 : index
    %c0_78 = arith.constant 0 : index
    %c0_79 = arith.constant 0 : index
    %61 = vector.load %arg4[%c2_75, %c1_76, %c0_77, %c0_78, %c0_79] : memref<3x4x2x1x8xf32, #tpu.memory_space<vmem>>, vector<1x1x2x1x8xf32>
    %62 = vector.shape_cast %61 : vector<1x1x2x1x8xf32> to vector<2x1x8xf32>
    %63 = vector.broadcast %62 : vector<2x1x8xf32> to vector<2x8x8xf32>
    %64 = arith.addf %60, %63 : vector<2x8x8xf32>
    %cst_80 = arith.constant dense<0.000000e+00> : vector<2x8x8xf32>
    %65 = tpu.matmul %50, %57, %cst_80 {dimension_numbers = #tpu.dot_dimension_numbers<[2], [2], [1], [1], [0, 0, 0, 1, 1, 1], [0], [0]>} : vector<2x8x8xf32>, vector<2x8x8xf32>, vector<2x8x8xf32> -> vector<2x8x8xf32>
    %cst_81 = arith.constant 0.353553385 : f32
    %66 = vector.broadcast %cst_81 : f32 to vector<2x8x8xf32>
    %67 = arith.mulf %65, %66 : vector<2x8x8xf32>
    %cst_82 = arith.constant dense<0xFF800000> : vector<2x8xf32>
    %68 = vector.multi_reduction <maximumf>, %67, %cst_82 [2] : vector<2x8x8xf32> to vector<2x8xf32>
    %69 = vector.shape_cast %68 : vector<2x8xf32> to vector<2x8x1xf32>
    %70 = vector.broadcast %69 : vector<2x8x1xf32> to vector<2x8x8xf32>
    %71 = arith.subf %67, %70 : vector<2x8x8xf32>
    %72 = math.exp %71 : vector<2x8x8xf32>
    %cst_83 = arith.constant dense<0.000000e+00> : vector<2x8xf32>
    %73 = vector.multi_reduction <add>, %72, %cst_83 [2] : vector<2x8x8xf32> to vector<2x8xf32>
    %74 = vector.shape_cast %73 : vector<2x8xf32> to vector<2x8x1xf32>
    %75 = tpu.reciprocal %74 : vector<2x8x1xf32> -> vector<2x8x1xf32>
    %76 = vector.broadcast %75 : vector<2x8x1xf32> to vector<2x8x8xf32>
    %77 = arith.mulf %72, %76 : vector<2x8x8xf32>
    %c0_84 = arith.constant 0 : index
    %c0_85 = arith.constant 0 : index
    %c1_86 = arith.constant 1 : index
    %c0_87 = arith.constant 0 : index
    %c0_88 = arith.constant 0 : index
    %78 = vector.load %arg8[%c0_84, %c0_85, %c1_86, %c0_87, %c0_88] : memref<1x2x4x8x8xf32, #tpu.memory_space<vmem>>, vector<1x2x1x8x8xf32>
    %79 = vector.shape_cast %78 : vector<1x2x1x8x8xf32> to vector<2x8x8xf32>
    %80 = vector.shape_cast %77 : vector<2x8x8xf32> to vector<1x2x1x8x8xf32>
    tpu.vector_store %arg8[%c0_84, %c0_85, %c1_86, %c0_87, %c0_88], %80 {strides = array<i32>} : memref<1x2x4x8x8xf32, #tpu.memory_space<vmem>>, vector<1x2x1x8x8xf32>,
    %cst_89 = arith.constant dense<0.000000e+00> : vector<2x8x8xf32>
    %81 = tpu.matmul %77, %64, %cst_89 {dimension_numbers = #tpu.dot_dimension_numbers<[2], [1], [1], [2], [0, 0, 0, 1, 1, 2], [0], [0]>} : vector<2x8x8xf32>, vector<2x8x8xf32>, vector<2x8x8xf32> -> vector<2x8x8xf32>
    %82 = vector.shape_cast %81 : vector<2x8x8xf32> to vector<16x8xf32>
    %c1_90 = arith.constant 1 : index
    %c0_91 = arith.constant 0 : index
    %c0_92 = arith.constant 0 : index
    %83 = vector.load %arg5[%c1_90, %c0_91, %c0_92] : memref<4x8x32xf32, #tpu.memory_space<vmem>>, vector<1x8x32xf32>
    %84 = vector.shape_cast %83 : vector<1x8x32xf32> to vector<8x32xf32>
    %cst_93 = arith.constant dense<0.000000e+00> : vector<16x32xf32>
    %85 = tpu.matmul %82, %84, %cst_93 {dimension_numbers = #tpu.dot_dimension_numbers<[1], [0], [0], [1], [0, 0, 1, 1], [], []>} : vector<16x8xf32>, vector<8x32xf32>, vector<16x32xf32> -> vector<16x32xf32>
    %86 = arith.addf %43, %85 : vector<16x32xf32>
    %c0_94 = arith.constant 0 : index
    %c2_95 = arith.constant 2 : index
    %c0_96 = arith.constant 0 : index
    %c0_97 = arith.constant 0 : index
    %c0_98 = arith.constant 0 : index
    %87 = vector.load %arg3[%c0_94, %c2_95, %c0_96, %c0_97, %c0_98] : memref<3x4x2x32x8xf32, #tpu.memory_space<vmem>>, vector<1x1x2x32x8xf32>
    %88 = vector.shape_cast %87 : vector<1x1x2x32x8xf32> to vector<2x32x8xf32>
    %cst_99 = arith.constant dense<0.000000e+00> : vector<2x8x8xf32>
    %89 = tpu.matmul %1, %88, %cst_99 {dimension_numbers = #tpu.dot_dimension_numbers<[2], [1], [1], [2], [0, 0, 0, 1, 1, 2], [0], [0]>} : vector<2x8x32xf32>, vector<2x32x8xf32>, vector<2x8x8xf32> -> vector<2x8x8xf32>
    %c0_100 = arith.constant 0 : index
    %c2_101 = arith.constant 2 : index
    %c0_102 = arith.constant 0 : index
    %c0_103 = arith.constant 0 : index
    %c0_104 = arith.constant 0 : index
    %90 = vector.load %arg4[%c0_100, %c2_101, %c0_102, %c0_103, %c0_104] : memref<3x4x2x1x8xf32, #tpu.memory_space<vmem>>, vector<1x1x2x1x8xf32>
    %91 = vector.shape_cast %90 : vector<1x1x2x1x8xf32> to vector<2x1x8xf32>
    %92 = vector.broadcast %91 : vector<2x1x8xf32> to vector<2x8x8xf32>
    %93 = arith.addf %89, %92 : vector<2x8x8xf32>
    %c1_105 = arith.constant 1 : index
    %c2_106 = arith.constant 2 : index
    %c0_107 = arith.constant 0 : index
    %c0_108 = arith.constant 0 : index
    %c0_109 = arith.constant 0 : index
    %94 = vector.load %arg3[%c1_105, %c2_106, %c0_107, %c0_108, %c0_109] : memref<3x4x2x32x8xf32, #tpu.memory_space<vmem>>, vector<1x1x2x32x8xf32>
    %95 = vector.shape_cast %94 : vector<1x1x2x32x8xf32> to vector<2x32x8xf32>
    %cst_110 = arith.constant dense<0.000000e+00> : vector<2x8x8xf32>
    %96 = tpu.matmul %1, %95, %cst_110 {dimension_numbers = #tpu.dot_dimension_numbers<[2], [1], [1], [2], [0, 0, 0, 1, 1, 2], [0], [0]>} : vector<2x8x32xf32>, vector<2x32x8xf32>, vector<2x8x8xf32> -> vector<2x8x8xf32>
    %c1_111 = arith.constant 1 : index
    %c2_112 = arith.constant 2 : index
    %c0_113 = arith.constant 0 : index
    %c0_114 = arith.constant 0 : index
    %c0_115 = arith.constant 0 : index
    %97 = vector.load %arg4[%c1_111, %c2_112, %c0_113, %c0_114, %c0_115] : memref<3x4x2x1x8xf32, #tpu.memory_space<vmem>>, vector<1x1x2x1x8xf32>
    %98 = vector.shape_cast %97 : vector<1x1x2x1x8xf32> to vector<2x1x8xf32>
    %99 = vector.broadcast %98 : vector<2x1x8xf32> to vector<2x8x8xf32>
    %100 = arith.addf %96, %99 : vector<2x8x8xf32>
    %c2_116 = arith.constant 2 : index
    %c2_117 = arith.constant 2 : index
    %c0_118 = arith.constant 0 : index
    %c0_119 = arith.constant 0 : index
    %c0_120 = arith.constant 0 : index
    %101 = vector.load %arg3[%c2_116, %c2_117, %c0_118, %c0_119, %c0_120] : memref<3x4x2x32x8xf32, #tpu.memory_space<vmem>>, vector<1x1x2x32x8xf32>
    %102 = vector.shape_cast %101 : vector<1x1x2x32x8xf32> to vector<2x32x8xf32>
    %cst_121 = arith.constant dense<0.000000e+00> : vector<2x8x8xf32>
    %103 = tpu.matmul %1, %102, %cst_121 {dimension_numbers = #tpu.dot_dimension_numbers<[2], [1], [1], [2], [0, 0, 0, 1, 1, 2], [0], [0]>} : vector<2x8x32xf32>, vector<2x32x8xf32>, vector<2x8x8xf32> -> vector<2x8x8xf32>
    %c2_122 = arith.constant 2 : index
    %c2_123 = arith.constant 2 : index
    %c0_124 = arith.constant 0 : index
    %c0_125 = arith.constant 0 : index
    %c0_126 = arith.constant 0 : index
    %104 = vector.load %arg4[%c2_122, %c2_123, %c0_124, %c0_125, %c0_126] : memref<3x4x2x1x8xf32, #tpu.memory_space<vmem>>, vector<1x1x2x1x8xf32>
    %105 = vector.shape_cast %104 : vector<1x1x2x1x8xf32> to vector<2x1x8xf32>
    %106 = vector.broadcast %105 : vector<2x1x8xf32> to vector<2x8x8xf32>
    %107 = arith.addf %103, %106 : vector<2x8x8xf32>
    %cst_127 = arith.constant dense<0.000000e+00> : vector<2x8x8xf32>
    %108 = tpu.matmul %93, %100, %cst_127 {dimension_numbers = #tpu.dot_dimension_numbers<[2], [2], [1], [1], [0, 0, 0, 1, 1, 1], [0], [0]>} : vector<2x8x8xf32>, vector<2x8x8xf32>, vector<2x8x8xf32> -> vector<2x8x8xf32>
    %cst_128 = arith.constant 0.353553385 : f32
    %109 = vector.broadcast %cst_128 : f32 to vector<2x8x8xf32>
    %110 = arith.mulf %108, %109 : vector<2x8x8xf32>
    %cst_129 = arith.constant dense<0xFF800000> : vector<2x8xf32>
    %111 = vector.multi_reduction <maximumf>, %110, %cst_129 [2] : vector<2x8x8xf32> to vector<2x8xf32>
    %112 = vector.shape_cast %111 : vector<2x8xf32> to vector<2x8x1xf32>
    %113 = vector.broadcast %112 : vector<2x8x1xf32> to vector<2x8x8xf32>
    %114 = arith.subf %110, %113 : vector<2x8x8xf32>
    %115 = math.exp %114 : vector<2x8x8xf32>
    %cst_130 = arith.constant dense<0.000000e+00> : vector<2x8xf32>
    %116 = vector.multi_reduction <add>, %115, %cst_130 [2] : vector<2x8x8xf32> to vector<2x8xf32>
    %117 = vector.shape_cast %116 : vector<2x8xf32> to vector<2x8x1xf32>
    %118 = tpu.reciprocal %117 : vector<2x8x1xf32> -> vector<2x8x1xf32>
    %119 = vector.broadcast %118 : vector<2x8x1xf32> to vector<2x8x8xf32>
    %120 = arith.mulf %115, %119 : vector<2x8x8xf32>
    %c0_131 = arith.constant 0 : index
    %c0_132 = arith.constant 0 : index
    %c2_133 = arith.constant 2 : index
    %c0_134 = arith.constant 0 : index
    %c0_135 = arith.constant 0 : index
    %121 = vector.load %arg8[%c0_131, %c0_132, %c2_133, %c0_134, %c0_135] : memref<1x2x4x8x8xf32, #tpu.memory_space<vmem>>, vector<1x2x1x8x8xf32>
    %122 = vector.shape_cast %121 : vector<1x2x1x8x8xf32> to vector<2x8x8xf32>
    %123 = vector.shape_cast %120 : vector<2x8x8xf32> to vector<1x2x1x8x8xf32>
    tpu.vector_store %arg8[%c0_131, %c0_132, %c2_133, %c0_134, %c0_135], %123 {strides = array<i32>} : memref<1x2x4x8x8xf32, #tpu.memory_space<vmem>>, vector<1x2x1x8x8xf32>,
    %cst_136 = arith.constant dense<0.000000e+00> : vector<2x8x8xf32>
    %124 = tpu.matmul %120, %107, %cst_136 {dimension_numbers = #tpu.dot_dimension_numbers<[2], [1], [1], [2], [0, 0, 0, 1, 1, 2], [0], [0]>} : vector<2x8x8xf32>, vector<2x8x8xf32>, vector<2x8x8xf32> -> vector<2x8x8xf32>
    %125 = vector.shape_cast %124 : vector<2x8x8xf32> to vector<16x8xf32>
    %c2_137 = arith.constant 2 : index
    %c0_138 = arith.constant 0 : index
    %c0_139 = arith.constant 0 : index
    %126 = vector.load %arg5[%c2_137, %c0_138, %c0_139] : memref<4x8x32xf32, #tpu.memory_space<vmem>>, vector<1x8x32xf32>
    %127 = vector.shape_cast %126 : vector<1x8x32xf32> to vector<8x32xf32>
    %cst_140 = arith.constant dense<0.000000e+00> : vector<16x32xf32>
    %128 = tpu.matmul %125, %127, %cst_140 {dimension_numbers = #tpu.dot_dimension_numbers<[1], [0], [0], [1], [0, 0, 1, 1], [], []>} : vector<16x8xf32>, vector<8x32xf32>, vector<16x32xf32> -> vector<16x32xf32>
    %129 = arith.addf %86, %128 : vector<16x32xf32>
    %c0_141 = arith.constant 0 : index
    %c3 = arith.constant 3 : index
    %c0_142 = arith.constant 0 : index
    %c0_143 = arith.constant 0 : index
    %c0_144 = arith.constant 0 : index
    %130 = vector.load %arg3[%c0_141, %c3, %c0_142, %c0_143, %c0_144] : memref<3x4x2x32x8xf32, #tpu.memory_space<vmem>>, vector<1x1x2x32x8xf32>
    %131 = vector.shape_cast %130 : vector<1x1x2x32x8xf32> to vector<2x32x8xf32>
    %cst_145 = arith.constant dense<0.000000e+00> : vector<2x8x8xf32>
    %132 = tpu.matmul %1, %131, %cst_145 {dimension_numbers = #tpu.dot_dimension_numbers<[2], [1], [1], [2], [0, 0, 0, 1, 1, 2], [0], [0]>} : vector<2x8x32xf32>, vector<2x32x8xf32>, vector<2x8x8xf32> -> vector<2x8x8xf32>
    %c0_146 = arith.constant 0 : index
    %c3_147 = arith.constant 3 : index
    %c0_148 = arith.constant 0 : index
    %c0_149 = arith.constant 0 : index
    %c0_150 = arith.constant 0 : index
    %133 = vector.load %arg4[%c0_146, %c3_147, %c0_148, %c0_149, %c0_150] : memref<3x4x2x1x8xf32, #tpu.memory_space<vmem>>, vector<1x1x2x1x8xf32>
    %134 = vector.shape_cast %133 : vector<1x1x2x1x8xf32> to vector<2x1x8xf32>
    %135 = vector.broadcast %134 : vector<2x1x8xf32> to vector<2x8x8xf32>
    %136 = arith.addf %132, %135 : vector<2x8x8xf32>
    %c1_151 = arith.constant 1 : index
    %c3_152 = arith.constant 3 : index
    %c0_153 = arith.constant 0 : index
    %c0_154 = arith.constant 0 : index
    %c0_155 = arith.constant 0 : index
    %137 = vector.load %arg3[%c1_151, %c3_152, %c0_153, %c0_154, %c0_155] : memref<3x4x2x32x8xf32, #tpu.memory_space<vmem>>, vector<1x1x2x32x8xf32>
    %138 = vector.shape_cast %137 : vector<1x1x2x32x8xf32> to vector<2x32x8xf32>
    %cst_156 = arith.constant dense<0.000000e+00> : vector<2x8x8xf32>
    %139 = tpu.matmul %1, %138, %cst_156 {dimension_numbers = #tpu.dot_dimension_numbers<[2], [1], [1], [2], [0, 0, 0, 1, 1, 2], [0], [0]>} : vector<2x8x32xf32>, vector<2x32x8xf32>, vector<2x8x8xf32> -> vector<2x8x8xf32>
    %c1_157 = arith.constant 1 : index
    %c3_158 = arith.constant 3 : index
    %c0_159 = arith.constant 0 : index
    %c0_160 = arith.constant 0 : index
    %c0_161 = arith.constant 0 : index
    %140 = vector.load %arg4[%c1_157, %c3_158, %c0_159, %c0_160, %c0_161] : memref<3x4x2x1x8xf32, #tpu.memory_space<vmem>>, vector<1x1x2x1x8xf32>
    %141 = vector.shape_cast %140 : vector<1x1x2x1x8xf32> to vector<2x1x8xf32>
    %142 = vector.broadcast %141 : vector<2x1x8xf32> to vector<2x8x8xf32>
    %143 = arith.addf %139, %142 : vector<2x8x8xf32>
    %c2_162 = arith.constant 2 : index
    %c3_163 = arith.constant 3 : index
    %c0_164 = arith.constant 0 : index
    %c0_165 = arith.constant 0 : index
    %c0_166 = arith.constant 0 : index
    %144 = vector.load %arg3[%c2_162, %c3_163, %c0_164, %c0_165, %c0_166] : memref<3x4x2x32x8xf32, #tpu.memory_space<vmem>>, vector<1x1x2x32x8xf32>
    %145 = vector.shape_cast %144 : vector<1x1x2x32x8xf32> to vector<2x32x8xf32>
    %cst_167 = arith.constant dense<0.000000e+00> : vector<2x8x8xf32>
    %146 = tpu.matmul %1, %145, %cst_167 {dimension_numbers = #tpu.dot_dimension_numbers<[2], [1], [1], [2], [0, 0, 0, 1, 1, 2], [0], [0]>} : vector<2x8x32xf32>, vector<2x32x8xf32>, vector<2x8x8xf32> -> vector<2x8x8xf32>
    %c2_168 = arith.constant 2 : index
    %c3_169 = arith.constant 3 : index
    %c0_170 = arith.constant 0 : index
    %c0_171 = arith.constant 0 : index
    %c0_172 = arith.constant 0 : index
    %147 = vector.load %arg4[%c2_168, %c3_169, %c0_170, %c0_171, %c0_172] : memref<3x4x2x1x8xf32, #tpu.memory_space<vmem>>, vector<1x1x2x1x8xf32>
    %148 = vector.shape_cast %147 : vector<1x1x2x1x8xf32> to vector<2x1x8xf32>
    %149 = vector.broadcast %148 : vector<2x1x8xf32> to vector<2x8x8xf32>
    %150 = arith.addf %146, %149 : vector<2x8x8xf32>
    %cst_173 = arith.constant dense<0.000000e+00> : vector<2x8x8xf32>
    %151 = tpu.matmul %136, %143, %cst_173 {dimension_numbers = #tpu.dot_dimension_numbers<[2], [2], [1], [1], [0, 0, 0, 1, 1, 1], [0], [0]>} : vector<2x8x8xf32>, vector<2x8x8xf32>, vector<2x8x8xf32> -> vector<2x8x8xf32>
    %cst_174 = arith.constant 0.353553385 : f32
    %152 = vector.broadcast %cst_174 : f32 to vector<2x8x8xf32>
    %153 = arith.mulf %151, %152 : vector<2x8x8xf32>
    %cst_175 = arith.constant dense<0xFF800000> : vector<2x8xf32>
    %154 = vector.multi_reduction <maximumf>, %153, %cst_175 [2] : vector<2x8x8xf32> to vector<2x8xf32>
    %155 = vector.shape_cast %154 : vector<2x8xf32> to vector<2x8x1xf32>
    %156 = vector.broadcast %155 : vector<2x8x1xf32> to vector<2x8x8xf32>
    %157 = arith.subf %153, %156 : vector<2x8x8xf32>
    %158 = math.exp %157 : vector<2x8x8xf32>
    %cst_176 = arith.constant dense<0.000000e+00> : vector<2x8xf32>
    %159 = vector.multi_reduction <add>, %158, %cst_176 [2] : vector<2x8x8xf32> to vector<2x8xf32>
    %160 = vector.shape_cast %159 : vector<2x8xf32> to vector<2x8x1xf32>
    %161 = tpu.reciprocal %160 : vector<2x8x1xf32> -> vector<2x8x1xf32>
    %162 = vector.broadcast %161 : vector<2x8x1xf32> to vector<2x8x8xf32>
    %163 = arith.mulf %158, %162 : vector<2x8x8xf32>
    %c0_177 = arith.constant 0 : index
    %c0_178 = arith.constant 0 : index
    %c3_179 = arith.constant 3 : index
    %c0_180 = arith.constant 0 : index
    %c0_181 = arith.constant 0 : index
    %164 = vector.load %arg8[%c0_177, %c0_178, %c3_179, %c0_180, %c0_181] : memref<1x2x4x8x8xf32, #tpu.memory_space<vmem>>, vector<1x2x1x8x8xf32>
    %165 = vector.shape_cast %164 : vector<1x2x1x8x8xf32> to vector<2x8x8xf32>
    %166 = vector.shape_cast %163 : vector<2x8x8xf32> to vector<1x2x1x8x8xf32>
    tpu.vector_store %arg8[%c0_177, %c0_178, %c3_179, %c0_180, %c0_181], %166 {strides = array<i32>} : memref<1x2x4x8x8xf32, #tpu.memory_space<vmem>>, vector<1x2x1x8x8xf32>,
    %cst_182 = arith.constant dense<0.000000e+00> : vector<2x8x8xf32>
    %167 = tpu.matmul %163, %150, %cst_182 {dimension_numbers = #tpu.dot_dimension_numbers<[2], [1], [1], [2], [0, 0, 0, 1, 1, 2], [0], [0]>} : vector<2x8x8xf32>, vector<2x8x8xf32>, vector<2x8x8xf32> -> vector<2x8x8xf32>
    %168 = vector.shape_cast %167 : vector<2x8x8xf32> to vector<16x8xf32>
    %c3_183 = arith.constant 3 : index
    %c0_184 = arith.constant 0 : index
    %c0_185 = arith.constant 0 : index
    %169 = vector.load %arg5[%c3_183, %c0_184, %c0_185] : memref<4x8x32xf32, #tpu.memory_space<vmem>>, vector<1x8x32xf32>
    %170 = vector.shape_cast %169 : vector<1x8x32xf32> to vector<8x32xf32>
    %cst_186 = arith.constant dense<0.000000e+00> : vector<16x32xf32>
    %171 = tpu.matmul %168, %170, %cst_186 {dimension_numbers = #tpu.dot_dimension_numbers<[1], [0], [0], [1], [0, 0, 1, 1], [], []>} : vector<16x8xf32>, vector<8x32xf32>, vector<16x32xf32> -> vector<16x32xf32>
    %172 = arith.addf %129, %171 : vector<16x32xf32>
    %c0_187 = arith.constant 0 : index
    %c0_188 = arith.constant 0 : index
    %173 = vector.load %arg6[%c0_187, %c0_188] : memref<1x32xf32, #tpu.memory_space<vmem>>, vector<1x32xf32>
    %174 = vector.broadcast %173 : vector<1x32xf32> to vector<16x32xf32>
    %175 = arith.addf %172, %174 : vector<16x32xf32>
    %176 = vector.shape_cast %175 : vector<16x32xf32> to vector<2x8x32xf32>
    %c0_189 = arith.constant 0 : index
    %c0_190 = arith.constant 0 : index
    %c0_191 = arith.constant 0 : index
    %c0_192 = arith.constant 0 : index
    %177 = vector.load %arg7[%c0_189, %c0_190, %c0_191, %c0_192] : memref<1x2x8x32xf32, #tpu.memory_space<vmem>>, vector<1x2x8x32xf32>
    %178 = vector.shape_cast %177 : vector<1x2x8x32xf32> to vector<2x8x32xf32>
    %179 = vector.shape_cast %176 : vector<2x8x32xf32> to vector<1x2x8x32xf32>
    tpu.vector_store %arg7[%c0_189, %c0_190, %c0_191, %c0_192], %179 {strides = array<i32>} : memref<1x2x8x32xf32, #tpu.memory_space<vmem>>, vector<1x2x8x32xf32>,
    return
  }
  func.func @transform_0(%arg0: i32, %arg1: i32) -> (i32, i32, i32, i32) {
    %c0_i32 = arith.constant 0 : i32
    %c0_i32_0 = arith.constant 0 : i32
    %c0_i32_1 = arith.constant 0 : i32
    return %arg1, %arg0, %c0_i32, %c0_i32_0 : i32, i32, i32, i32
  }
  func.func @transform_1(%arg0: i32, %arg1: i32) -> (i32, i32, i32, i32, i32) {
    %c0_i32 = arith.constant 0 : i32
    %c0_i32_0 = arith.constant 0 : i32
    %c0_i32_1 = arith.constant 0 : i32
    %c0_i32_2 = arith.constant 0 : i32
    %c0_i32_3 = arith.constant 0 : i32
    return %c0_i32, %c0_i32_0, %arg0, %c0_i32_1, %c0_i32_2 : i32, i32, i32, i32, i32
  }
  func.func @transform_2(%arg0: i32, %arg1: i32) -> (i32, i32, i32, i32, i32) {
    %c0_i32 = arith.constant 0 : i32
    %c0_i32_0 = arith.constant 0 : i32
    %c0_i32_1 = arith.constant 0 : i32
    %c0_i32_2 = arith.constant 0 : i32
    %c0_i32_3 = arith.constant 0 : i32
    return %c0_i32, %c0_i32_0, %arg0, %c0_i32_1, %c0_i32_2 : i32, i32, i32, i32, i32
  }
  func.func @transform_3(%arg0: i32, %arg1: i32) -> (i32, i32, i32) {
    %c0_i32 = arith.constant 0 : i32
    %c0_i32_0 = arith.constant 0 : i32
    %c0_i32_1 = arith.constant 0 : i32
    %c0_i32_2 = arith.constant 0 : i32
    return %c0_i32, %c0_i32_0, %c0_i32_1 : i32, i32, i32
  }
  func.func @transform_4(%arg0: i32, %arg1: i32) -> (i32, i32) {
    %c0_i32 = arith.constant 0 : i32
    %c0_i32_0 = arith.constant 0 : i32
    %c0_i32_1 = arith.constant 0 : i32
    return %c0_i32, %c0_i32_0 : i32, i32
  }
  func.func @transform_5(%arg0: i32, %arg1: i32) -> (i32, i32, i32, i32) {
    %c0_i32 = arith.constant 0 : i32
    %c0_i32_0 = arith.constant 0 : i32
    %c0_i32_1 = arith.constant 0 : i32
    return %arg1, %arg0, %c0_i32, %c0_i32_0 : i32, i32, i32, i32
  }
  func.func @transform_6(%arg0: i32, %arg1: i32) -> (i32, i32, i32, i32, i32) {
    %c0_i32 = arith.constant 0 : i32
    %c0_i32_0 = arith.constant 0 : i32
    %c0_i32_1 = arith.constant 0 : i32
    %c0_i32_2 = arith.constant 0 : i32
    return %arg1, %arg0, %c0_i32, %c0_i32_0, %c0_i32_1 : i32, i32, i32, i32, i32
  }
}

</mosaic_0001>

<llo_original>
// kernel: tpu_custom_call.1
$region0: #{tpu_custom_call.1}
  #allocation0 [shape = 'u32[]', space=smem, size = 0x4, offset = 0x4, fixed_abs, tag = 'smem constant byte address 0x4 - core index']
  #allocation1 [shape = 'u32[144,128]{1,0:T(1,128)}', space=vmem, size = 0x12000, scoped, tag = 'internal scratch']
  %s0 = inlined_call_operand.vmem [shape: f32[2,4,8,32], index: 0, kind: input, shape index: {}]
  %s1 = inlined_call_operand.vmem [shape: f32[3,4,4,32,8], index: 1, kind: input, shape index: {}]
  %s2 = inlined_call_operand.vmem [shape: f32[3,4,4,1,8], index: 2, kind: input, shape index: {}]
  %s3 = inlined_call_operand.vmem [shape: f32[4,8,32], index: 3, kind: input, shape index: {}]
  %s4 = inlined_call_operand.vmem [shape: f32[1,32], index: 4, kind: input, shape index: {}]
  %s5 = inlined_call_operand.hbm [shape: f32[2,4,8,32], index: 5, kind: output, shape index: {0}]
  %s6 = inlined_call_operand.hbm [shape: f32[2,4,4,8,8], index: 6, kind: output, shape index: {1}]
  %7 = xla_tuple %s5, %s6
  %s8 = sld [smem:[#allocation0]]
  $region140: #{tpu_custom_call.1} parent=0
    _
  %s10 = ssub.s32 1, %s8
  %s11 = scalar_select 0, %s10, %s8
  $region1: #{tpu_custom_call.1} parent=0
    #allocation2 [shape = 'u8[786432]{0}', space=vmem, size = 0xc0000, scoped, tag = 'input window, operand 1']
    #allocation3 [shape = 'u8[24576]{0}', space=vmem, size = 0x6000, scoped, tag = 'input window, operand 2']
    #allocation4 [shape = 'u8[16384]{0}', space=vmem, size = 0x4000, scoped, tag = 'output window, operand 0']
    #allocation5 [shape = 's32[2]{0}', space=sflag, size = 0x8, scoped, tag = 'scoped memory for tpu_custom_call.1']
    #allocation6 [shape = 'u8[65536]{0}', space=vmem, size = 0x10000, scoped, tag = 'output window, operand 1']
    #allocation7 [shape = 's32[2]{0}', space=sflag, size = 0x8, scoped, tag = 'scoped memory for tpu_custom_call.1']
    %12 = vsyncpa [#allocation5], 0
    %s13 = scalar_lea.sflag [#allocation5], 1
    %14 = vsyncpa %s13, 0
    %15 = vsyncpa [#allocation7], 0
    %s16 = scalar_lea.sflag [#allocation7], 1
    %17 = vsyncpa %s16, 0
    loop: start=0, step=1, limit=6
    $region2: #{tpu_custom_call.1} parent=1 // loop_pre_header
      _
    $region3: #{tpu_custom_call.1} parent=1 // loop_header
      %s19 = sphi 0, %s23
      %p20 = scmp.ge.s32.totalorder %s19, 6
      %s26 = sphi 0, %s38
      %s27 = sphi 0, %s34
      %s28 = sphi 0, %s26
      %s29 = sphi 0, %s27
      %s30 = sphi 0, %s28
      %s31 = sphi 0, %s29
      %s43 = sphi 0, %s45
      %s46 = sphi 0, %s43
      %s47 = sphi 0, %s46
      %s63 = sphi 0, %s47
      %s69 = sphi 0, %s71
      %s72 = sphi 0, %s69
      %s73 = sphi 0, %s72
      %s89 = sphi 0, %s73
      %s95 = sphi 0, %s97
      %s98 = sphi 0, %s95
      %s99 = sphi 0, %s98
      %s115 = sphi 0, %s99
      %s119 = sphi 0, %s119
      %s121 = sphi 0, %s119
      %s122 = sphi 0, %s121
      %s136 = sphi 0, %s122
      %s140 = sphi 0, %s140
      %s142 = sphi 0, %s140
      %s143 = sphi 0, %s142
      %s157 = sphi 0, %s143
      %s165 = sphi 0, %s167
      %s168 = sphi 0, %s165
      %s169 = sphi 0, %s168
      %s185 = sphi 0, %s169
      %s193 = sphi 0, %s195
      %s196 = sphi 0, %s193
      %s197 = sphi 0, %s196
      %s213 = sphi 0, %s197
    $region4: #{tpu_custom_call.1} parent=1 // loop_header_branch
      %22 = sbr.rel (%p20) target = $region8
    $region5: #{tpu_custom_call.1} parent=1 // loop_body
      %s24 = ssub.s32 %s19, 1
      %s25 = ssub.s32 %s19, 2
      %s32 = sadd.s32 1, %s27
      %p33 = scmp.ge.s32.totalorder %s32, 2
      %s34 = scalar_select %p33, 0, %s32
      %s35 = sadd.s32 1, %s26
      %s36 = scalar_select %p33, %s35, %s26
      %p37 = scmp.ge.s32.totalorder %s36, 2
      %s38 = scalar_select %p37, 0, %s36
      %s39 = ssub.s32 %s27, %s34
      %s40 = ssub.s32 %s26, %s38
      %s41 = sor.u32 %s39, %s40
      %p42 = scmp.eq.s32.totalorder %s41, 0
      %s44 = sadd.s32 %s43, 1
      %s45 = scalar_select %p42, %s43, %s44
      %p48 = pneg %p42
      %p49 = scmp.eq.s32.totalorder %s19, 3
      %p50 = por %p48, %p49
      %p51 = scmp.ne.s32.totalorder %s43, %s46
      %p52 = scmp.eq.s32.totalorder %s19, 0
      %p53 = por %p51, %p52
      %p54 = scmp.ne.s32.totalorder %s43, %s46
      %p55 = scmp.eq.s32.totalorder %s24, 3
      %p56 = por %p54, %p55
      %p57 = scmp.ne.s32.totalorder %s46, %s47
      %p58 = scmp.eq.s32.totalorder %s24, 0
      %p59 = por %p57, %p58
      %p60 = scmp.ne.s32.totalorder %s46, %s47
      %p61 = scmp.eq.s32.totalorder %s25, 3
      %p62 = por %p60, %p61
      %p64 = scmp.ne.s32.totalorder %s47, %s63
      %p65 = scmp.eq.s32.totalorder %s25, 0
      %p66 = por %p64, %p65
      %s67 = ssub.s32 %s26, %s38
      %p68 = scmp.eq.s32.totalorder %s67, 0
      %s70 = sadd.s32 %s69, 1
      %s71 = scalar_select %p68, %s69, %s70
      %p74 = pneg %p68
      %p75 = scmp.eq.s32.totalorder %s19, 3
      %p76 = por %p74, %p75
      %p77 = scmp.ne.s32.totalorder %s69, %s72
      %p78 = scmp.eq.s32.totalorder %s19, 0
      %p79 = por %p77, %p78
      %p80 = scmp.ne.s32.totalorder %s69, %s72
      %p81 = scmp.eq.s32.totalorder %s24, 3
      %p82 = por %p80, %p81
      %p83 = scmp.ne.s32.totalorder %s72, %s73
      %p84 = scmp.eq.s32.totalorder %s24, 0
      %p85 = por %p83, %p84
      %p86 = scmp.ne.s32.totalorder %s72, %s73
      %p87 = scmp.eq.s32.totalorder %s25, 3
      %p88 = por %p86, %p87
      %p90 = scmp.ne.s32.totalorder %s73, %s89
      %p91 = scmp.eq.s32.totalorder %s25, 0
      %p92 = por %p90, %p91
      %s93 = ssub.s32 %s26, %s38
      %p94 = scmp.eq.s32.totalorder %s93, 0
      %s96 = sadd.s32 %s95, 1
      %s97 = scalar_select %p94, %s95, %s96
      %p100 = pneg %p94
      %p101 = scmp.eq.s32.totalorder %s19, 3
      %p102 = por %p100, %p101
      %p103 = scmp.ne.s32.totalorder %s95, %s98
      %p104 = scmp.eq.s32.totalorder %s19, 0
      %p105 = por %p103, %p104
      %p106 = scmp.ne.s32.totalorder %s95, %s98
      %p107 = scmp.eq.s32.totalorder %s24, 3
      %p108 = por %p106, %p107
      %p109 = scmp.ne.s32.totalorder %s98, %s99
      %p110 = scmp.eq.s32.totalorder %s24, 0
      %p111 = por %p109, %p110
      %p112 = scmp.ne.s32.totalorder %s98, %s99
      %p113 = scmp.eq.s32.totalorder %s25, 3
      %p114 = por %p112, %p113
      %p116 = scmp.ne.s32.totalorder %s99, %s115
      %p117 = scmp.eq.s32.totalorder %s25, 0
      %p118 = por %p116, %p117
      %s120 = sadd.s32 %s119, 1
      %p123 = scmp.eq.s32.totalorder %s19, 3
      %p124 = scmp.ne.s32.totalorder %s119, %s121
      %p125 = scmp.eq.s32.totalorder %s19, 0
      %p126 = por %p124, %p125
      %p127 = scmp.ne.s32.totalorder %s119, %s121
      %p128 = scmp.eq.s32.totalorder %s24, 3
      %p129 = por %p127, %p128
      %p130 = scmp.ne.s32.totalorder %s121, %s122
      %p131 = scmp.eq.s32.totalorder %s24, 0
      %p132 = por %p130, %p131
      %p133 = scmp.ne.s32.totalorder %s121, %s122
      %p134 = scmp.eq.s32.totalorder %s25, 3
      %p135 = por %p133, %p134
      %p137 = scmp.ne.s32.totalorder %s122, %s136
      %p138 = scmp.eq.s32.totalorder %s25, 0
      %p139 = por %p137, %p138
      %s141 = sadd.s32 %s140, 1
      %p144 = scmp.eq.s32.totalorder %s19, 3
      %p145 = scmp.ne.s32.totalorder %s140, %s142
      %p146 = scmp.eq.s32.totalorder %s19, 0
      %p147 = por %p145, %p146
      %p148 = scmp.ne.s32.totalorder %s140, %s142
      %p149 = scmp.eq.s32.totalorder %s24, 3
      %p150 = por %p148, %p149
      %p151 = scmp.ne.s32.totalorder %s142, %s143
      %p152 = scmp.eq.s32.totalorder %s24, 0
      %p153 = por %p151, %p152
      %p154 = scmp.ne.s32.totalorder %s142, %s143
      %p155 = scmp.eq.s32.totalorder %s25, 3
      %p156 = por %p154, %p155
      %p158 = scmp.ne.s32.totalorder %s143, %s157
      %p159 = scmp.eq.s32.totalorder %s25, 0
      %p160 = por %p158, %p159
      %s161 = ssub.s32 %s27, %s34
      %s162 = ssub.s32 %s26, %s38
      %s163 = sor.u32 %s161, %s162
      %p164 = scmp.eq.s32.totalorder %s163, 0
      %s166 = sadd.s32 %s165, 1
      %s167 = scalar_select %p164, %s165, %s166
      %p170 = pneg %p164
      %p171 = scmp.eq.s32.totalorder %s19, 3
      %p172 = por %p170, %p171
      %p173 = scmp.ne.s32.totalorder %s165, %s168
      %p174 = scmp.eq.s32.totalorder %s19, 0
      %p175 = por %p173, %p174
      %p176 = scmp.ne.s32.totalorder %s165, %s168
      %p177 = scmp.eq.s32.totalorder %s24, 3
      %p178 = por %p176, %p177
      %p179 = scmp.ne.s32.totalorder %s168, %s169
      %p180 = scmp.eq.s32.totalorder %s24, 0
      %p181 = por %p179, %p180
      %p182 = scmp.ne.s32.totalorder %s168, %s169
      %p183 = scmp.eq.s32.totalorder %s25, 3
      %p184 = por %p182, %p183
      %p186 = scmp.ne.s32.totalorder %s169, %s185
      %p187 = scmp.eq.s32.totalorder %s25, 0
      %p188 = por %p186, %p187
      %s189 = ssub.s32 %s27, %s34
      %s190 = ssub.s32 %s26, %s38
      %s191 = sor.u32 %s189, %s190
      %p192 = scmp.eq.s32.totalorder %s191, 0
      %s194 = sadd.s32 %s193, 1
      %s195 = scalar_select %p192, %s193, %s194
      %p198 = pneg %p192
      %p199 = scmp.eq.s32.totalorder %s19, 3
      %p200 = por %p198, %p199
      %p201 = scmp.ne.s32.totalorder %s193, %s196
      %p202 = scmp.eq.s32.totalorder %s19, 0
      %p203 = por %p201, %p202
      %p204 = scmp.ne.s32.totalorder %s193, %s196
      %p205 = scmp.eq.s32.totalorder %s24, 3
      %p206 = por %p204, %p205
      %p207 = scmp.ne.s32.totalorder %s196, %s197
      %p208 = scmp.eq.s32.totalorder %s24, 0
      %p209 = por %p207, %p208
      %p210 = scmp.ne.s32.totalorder %s196, %s197
      %p211 = scmp.eq.s32.totalorder %s25, 3
      %p212 = por %p210, %p211
      %p214 = scmp.ne.s32.totalorder %s197, %s213
      %p215 = scmp.eq.s32.totalorder %s25, 0
      %p216 = por %p214, %p215
      %p217 = scmp.le.s32.totalorder 1, %s19
      %p218 = scmp.lt.s32.totalorder %s19, 5
      %p219 = pnand %p217, %p218
      %p220 = pneg %p219
      // Predicated region
      $region9: #{tpu_custom_call.1} parent=5 // pred_check
        _
      $region10: #{tpu_custom_call.1} parent=5 // pred_check_branch
        %222 = sbr.rel (%p219) target = $region12
      $region11: #{tpu_custom_call.1} parent=5 // pred_region
        %s223 = ssub.s32 %s19, 1
        // Predicated region
        $region13: #{tpu_custom_call.1} parent=11 // pred_check
          %p224 = pneg %p132
        $region14: #{tpu_custom_call.1} parent=11 // pred_check_branch
          %226 = sbr.rel (%p224) target = $region16
        $region15: #{tpu_custom_call.1} parent=11 // pred_region
          _
        $region16: #{tpu_custom_call.1} parent=11 // pred_fallthru
          _
        // Predicated region
        $region17: #{tpu_custom_call.1} parent=11 // pred_check
          %p227 = pneg %p153
        $region18: #{tpu_custom_call.1} parent=11 // pred_check_branch
          %229 = sbr.rel (%p227) target = $region20
        $region19: #{tpu_custom_call.1} parent=11 // pred_region
          _
        $region20: #{tpu_custom_call.1} parent=11 // pred_fallthru
          _
      $region12: #{tpu_custom_call.1} parent=5 // pred_fallthru
        _
      %p230 = scmp.lt.s32.totalorder %s19, 4
      // Predicated region
      $region21: #{tpu_custom_call.1} parent=5 // pred_check
        %p231 = pneg %p230
      $region22: #{tpu_custom_call.1} parent=5 // pred_check_branch
        %233 = sbr.rel (%p231) target = $region24
      $region23: #{tpu_custom_call.1} parent=5 // pred_region
        // Predicated region
        $region25: #{tpu_custom_call.1} parent=23 // pred_check
          %p234 = pneg %p53
        $region26: #{tpu_custom_call.1} parent=23 // pred_check_branch
          %236 = sbr.rel (%p234) target = $region28
        $region27: #{tpu_custom_call.1} parent=23 // pred_region
          %s237 = smul.u32 2, %s26
          %p238 = scmp.lt.s32.totalorder %s27, 1
          %s239 = scalar_select %p238, %s27, 1
          %p240 = scmp.lt.s32.totalorder %s237, 3
          %s241 = scalar_select %p240, %s237, 3
          %s242 = smul.addr %s239, 4
          %s243 = sadd.s32 %s241, %s242
          %s244 = smul.addr %s243, 8
          %s245 = scalar_lea.vmem %s0, %s244
          %s246 = smul.u32 2, %s26
        $region28: #{tpu_custom_call.1} parent=23 // pred_fallthru
          _
        // Predicated region
        $region29: #{tpu_custom_call.1} parent=23 // pred_check
          %p247 = pneg %p79
        $region30: #{tpu_custom_call.1} parent=23 // pred_check_branch
          %249 = sbr.rel (%p247) target = $region32
        $region31: #{tpu_custom_call.1} parent=23 // pred_region
          %s250 = sand.u32 %s69, 1
          %s251 = sand.u32 %s69, 1
          %s252 = smul.addr %s251, 768
          %s253 = scalar_lea.vmem [#allocation2], %s252
          %s254 = smul.u32 2, %s26
          %s255 = smul.addr %s254, 4
          %s256 = smul.addr %s255, 8
          %s257 = scalar_lea.vmem %s1, %s256
          // Predicated region
          $region33: #{tpu_custom_call.1} parent=31 // pred_check
            _
          $region34: #{tpu_custom_call.1} parent=31 // pred_check_branch
            %259 = sbr.rel (0) target = $region36
          $region35: #{tpu_custom_call.1} parent=31 // pred_region
            // Predicated region
            $region37: #{tpu_custom_call.1} parent=35 // pred_check
              _
            $region38: #{tpu_custom_call.1} parent=35 // pred_check_branch
              %261 = sbr.rel (0) target = $region40
            $region39: #{tpu_custom_call.1} parent=35 // pred_region
              // Predicated region
              $region52: #{tpu_custom_call.1} parent=39 // pred_check
                _
              $region53: #{tpu_custom_call.1} parent=39 // pred_check_branch
                %466 = sbr.rel (0) target = $region55
              $region54: #{tpu_custom_call.1} parent=39 // pred_region
                loop: start=0, step=1, limit=1
                $region56: #{tpu_custom_call.1} parent=54 // loop_pre_header
                  _
                $region57: #{tpu_custom_call.1} parent=54 // loop_header
                  %s468 = sphi 0, %s472
                  %p469 = scmp.ge.s32.totalorder %s468, 1
                  %s473 = sphi %s257, %s257
                  %s474 = sphi %s253, %s253
                $region58: #{tpu_custom_call.1} parent=54 // loop_header_branch
                  %471 = sbr.rel (%p469) target = $region62
                $region59: #{tpu_custom_call.1} parent=54 // loop_body
                  %v475 = vld [vmem:[%s473] sm:$0xff]
                  %476 = vst [vmem:[%s474] sm:$0xff] %v475
                  %v477 = vld [vmem:[%s473 + $0x8] sm:$0xff]
                  %478 = vst [vmem:[%s474 + $0x8] sm:$0xff] %v477
                  %v479 = vld [vmem:[%s473 + $0x10] sm:$0xff]
                  %480 = vst [vmem:[%s474 + $0x10] sm:$0xff] %v479
                  %v481 = vld [vmem:[%s473 + $0x18] sm:$0xff]
                  %482 = vst [vmem:[%s474 + $0x18] sm:$0xff] %v481
                  %v483 = vld [vmem:[%s473 + $0x20] sm:$0xff]
                  %484 = vst [vmem:[%s474 + $0x20] sm:$0xff] %v483
                  %v485 = vld [vmem:[%s473 + $0x28] sm:$0xff]
                  %486 = vst [vmem:[%s474 + $0x28] sm:$0xff] %v485
                  %v487 = vld [vmem:[%s473 + $0x30] sm:$0xff]
                  %488 = vst [vmem:[%s474 + $0x30] sm:$0xff] %v487
                  %v489 = vld [vmem:[%s473 + $0x38] sm:$0xff]
                  %490 = vst [vmem:[%s474 + $0x38] sm:$0xff] %v489
                  %v491 = vld [vmem:[%s473 + $0x80] sm:$0xff]
                  %492 = vst [vmem:[%s474 + $0x40] sm:$0xff] %v491
                  %v493 = vld [vmem:[%s473 + $0x88] sm:$0xff]
                  %494 = vst [vmem:[%s474 + $0x48] sm:$0xff] %v493
                  %v495 = vld [vmem:[%s473 + $0x90] sm:$0xff]
                  %496 = vst [vmem:[%s474 + $0x50] sm:$0xff] %v495
                  %v497 = vld [vmem:[%s473 + $0x98] sm:$0xff]
                  %498 = vst [vmem:[%s474 + $0x58] sm:$0xff] %v497
                  %v499 = vld [vmem:[%s473 + $0xa0] sm:$0xff]
                  %500 = vst [vmem:[%s474 + $0x60] sm:$0xff] %v499
                  %v501 = vld [vmem:[%s473 + $0xa8] sm:$0xff]
                  %502 = vst [vmem:[%s474 + $0x68] sm:$0xff] %v501
                  %v503 = vld [vmem:[%s473 + $0xb0] sm:$0xff]
                  %504 = vst [vmem:[%s474 + $0x70] sm:$0xff] %v503
                  %v505 = vld [vmem:[%s473 + $0xb8] sm:$0xff]
                  %506 = vst [vmem:[%s474 + $0x78] sm:$0xff] %v505
                  %v507 = vld [vmem:[%s473 + $0x100] sm:$0xff]
                  %508 = vst [vmem:[%s474 + $0x80] sm:$0xff] %v507
                  %v509 = vld [vmem:[%s473 + $0x108] sm:$0xff]
                  %510 = vst [vmem:[%s474 + $0x88] sm:$0xff] %v509
                  %v511 = vld [vmem:[%s473 + $0x110] sm:$0xff]
                  %512 = vst [vmem:[%s474 + $0x90] sm:$0xff] %v511
                  %v513 = vld [vmem:[%s473 + $0x118] sm:$0xff]
                  %514 = vst [vmem:[%s474 + $0x98] sm:$0xff] %v513
                  %v515 = vld [vmem:[%s473 + $0x120] sm:$0xff]
                  %516 = vst [vmem:[%s474 + $0xa0] sm:$0xff] %v515
                  %v517 = vld [vmem:[%s473 + $0x128] sm:$0xff]
                  %518 = vst [vmem:[%s474 + $0xa8] sm:$0xff] %v517
                  %v519 = vld [vmem:[%s473 + $0x130] sm:$0xff]
                  %520 = vst [vmem:[%s474 + $0xb0] sm:$0xff] %v519
                  %v521 = vld [vmem:[%s473 + $0x138] sm:$0xff]
                  %522 = vst [vmem:[%s474 + $0xb8] sm:$0xff] %v521
                  %v523 = vld [vmem:[%s473 + $0x180] sm:$0xff]
                  %524 = vst [vmem:[%s474 + $0xc0] sm:$0xff] %v523
                  %v525 = vld [vmem:[%s473 + $0x188] sm:$0xff]
                  %526 = vst [vmem:[%s474 + $0xc8] sm:$0xff] %v525
                  %v527 = vld [vmem:[%s473 + $0x190] sm:$0xff]
                  %528 = vst [vmem:[%s474 + $0xd0] sm:$0xff] %v527
                  %v529 = vld [vmem:[%s473 + $0x198] sm:$0xff]
                  %530 = vst [vmem:[%s474 + $0xd8] sm:$0xff] %v529
                  %v531 = vld [vmem:[%s473 + $0x1a0] sm:$0xff]
                  %532 = vst [vmem:[%s474 + $0xe0] sm:$0xff] %v531
                  %v533 = vld [vmem:[%s473 + $0x1a8] sm:$0xff]
                  %534 = vst [vmem:[%s474 + $0xe8] sm:$0xff] %v533
                  %v535 = vld [vmem:[%s473 + $0x1b0] sm:$0xff]
                  %536 = vst [vmem:[%s474 + $0xf0] sm:$0xff] %v535
                  %v537 = vld [vmem:[%s473 + $0x1b8] sm:$0xff]
                  %538 = vst [vmem:[%s474 + $0xf8] sm:$0xff] %v537
                  %v539 = vld [vmem:[%s473 + $0x200] sm:$0xff]
                  %540 = vst [vmem:[%s474 + $0x100] sm:$0xff] %v539
                  %v541 = vld [vmem:[%s473 + $0x208] sm:$0xff]
                  %542 = vst [vmem:[%s474 + $0x108] sm:$0xff] %v541
                  %v543 = vld [vmem:[%s473 + $0x210] sm:$0xff]
                  %544 = vst [vmem:[%s474 + $0x110] sm:$0xff] %v543
                  %v545 = vld [vmem:[%s473 + $0x218] sm:$0xff]
                  %546 = vst [vmem:[%s474 + $0x118] sm:$0xff] %v545
                  %v547 = vld [vmem:[%s473 + $0x220] sm:$0xff]
                  %548 = vst [vmem:[%s474 + $0x120] sm:$0xff] %v547
                  %v549 = vld [vmem:[%s473 + $0x228] sm:$0xff]
                  %550 = vst [vmem:[%s474 + $0x128] sm:$0xff] %v549
                  %v551 = vld [vmem:[%s473 + $0x230] sm:$0xff]
                  %552 = vst [vmem:[%s474 + $0x130] sm:$0xff] %v551
                  %v553 = vld [vmem:[%s473 + $0x238] sm:$0xff]
                  %554 = vst [vmem:[%s474 + $0x138] sm:$0xff] %v553
                  %v555 = vld [vmem:[%s473 + $0x280] sm:$0xff]
                  %556 = vst [vmem:[%s474 + $0x140] sm:$0xff] %v555
                  %v557 = vld [vmem:[%s473 + $0x288] sm:$0xff]
                  %558 = vst [vmem:[%s474 + $0x148] sm:$0xff] %v557
                  %v559 = vld [vmem:[%s473 + $0x290] sm:$0xff]
                  %560 = vst [vmem:[%s474 + $0x150] sm:$0xff] %v559
                  %v561 = vld [vmem:[%s473 + $0x298] sm:$0xff]
                  %562 = vst [vmem:[%s474 + $0x158] sm:$0xff] %v561
                  %v563 = vld [vmem:[%s473 + $0x2a0] sm:$0xff]
                  %564 = vst [vmem:[%s474 + $0x160] sm:$0xff] %v563
                  %v565 = vld [vmem:[%s473 + $0x2a8] sm:$0xff]
                  %566 = vst [vmem:[%s474 + $0x168] sm:$0xff] %v565
                  %v567 = vld [vmem:[%s473 + $0x2b0] sm:$0xff]
                  %568 = vst [vmem:[%s474 + $0x170] sm:$0xff] %v567
                  %v569 = vld [vmem:[%s473 + $0x2b8] sm:$0xff]
                  %570 = vst [vmem:[%s474 + $0x178] sm:$0xff] %v569
                  %v571 = vld [vmem:[%s473 + $0x300] sm:$0xff]
                  %572 = vst [vmem:[%s474 + $0x180] sm:$0xff] %v571
                  %v573 = vld [vmem:[%s473 + $0x308] sm:$0xff]
                  %574 = vst [vmem:[%s474 + $0x188] sm:$0xff] %v573
                  %v575 = vld [vmem:[%s473 + $0x310] sm:$0xff]
                  %576 = vst [vmem:[%s474 + $0x190] sm:$0xff] %v575
                  %v577 = vld [vmem:[%s473 + $0x318] sm:$0xff]
                  %578 = vst [vmem:[%s474 + $0x198] sm:$0xff] %v577
                  %v579 = vld [vmem:[%s473 + $0x320] sm:$0xff]
                  %580 = vst [vmem:[%s474 + $0x1a0] sm:$0xff] %v579
                  %v581 = vld [vmem:[%s473 + $0x328] sm:$0xff]
                  %582 = vst [vmem:[%s474 + $0x1a8] sm:$0xff] %v581
                  %v583 = vld [vmem:[%s473 + $0x330] sm:$0xff]
                  %584 = vst [vmem:[%s474 + $0x1b0] sm:$0xff] %v583
                  %v585 = vld [vmem:[%s473 + $0x338] sm:$0xff]
                  %586 = vst [vmem:[%s474 + $0x1b8] sm:$0xff] %v585
                  %v587 = vld [vmem:[%s473 + $0x380] sm:$0xff]
                  %588 = vst [vmem:[%s474 + $0x1c0] sm:$0xff] %v587
                  %v589 = vld [vmem:[%s473 + $0x388] sm:$0xff]
                  %590 = vst [vmem:[%s474 + $0x1c8] sm:$0xff] %v589
                  %v591 = vld [vmem:[%s473 + $0x390] sm:$0xff]
                  %592 = vst [vmem:[%s474 + $0x1d0] sm:$0xff] %v591
                  %v593 = vld [vmem:[%s473 + $0x398] sm:$0xff]
                  %594 = vst [vmem:[%s474 + $0x1d8] sm:$0xff] %v593
                  %v595 = vld [vmem:[%s473 + $0x3a0] sm:$0xff]
                  %596 = vst [vmem:[%s474 + $0x1e0] sm:$0xff] %v595
                  %v597 = vld [vmem:[%s473 + $0x3a8] sm:$0xff]
                  %598 = vst [vmem:[%s474 + $0x1e8] sm:$0xff] %v597
                  %v599 = vld [vmem:[%s473 + $0x3b0] sm:$0xff]
                  %600 = vst [vmem:[%s474 + $0x1f0] sm:$0xff] %v599
                  %v601 = vld [vmem:[%s473 + $0x3b8] sm:$0xff]
                  %602 = vst [vmem:[%s474 + $0x1f8] sm:$0xff] %v601
                  %v603 = vld [vmem:[%s473 + $0x400] sm:$0xff]
                  %604 = vst [vmem:[%s474 + $0x200] sm:$0xff] %v603
                  %v605 = vld [vmem:[%s473 + $0x408] sm:$0xff]
                  %606 = vst [vmem:[%s474 + $0x208] sm:$0xff] %v605
                  %v607 = vld [vmem:[%s473 + $0x410] sm:$0xff]
                  %608 = vst [vmem:[%s474 + $0x210] sm:$0xff] %v607
                  %v609 = vld [vmem:[%s473 + $0x418] sm:$0xff]
                  %610 = vst [vmem:[%s474 + $0x218] sm:$0xff] %v609
                  %v611 = vld [vmem:[%s473 + $0x420] sm:$0xff]
                  %612 = vst [vmem:[%s474 + $0x220] sm:$0xff] %v611
                  %v613 = vld [vmem:[%s473 + $0x428] sm:$0xff]
                  %614 = vst [vmem:[%s474 + $0x228] sm:$0xff] %v613
                  %v615 = vld [vmem:[%s473 + $0x430] sm:$0xff]
                  %616 = vst [vmem:[%s474 + $0x230] sm:$0xff] %v615
                  %v617 = vld [vmem:[%s473 + $0x438] sm:$0xff]
                  %618 = vst [vmem:[%s474 + $0x238] sm:$0xff] %v617
                  %v619 = vld [vmem:[%s473 + $0x480] sm:$0xff]
                  %620 = vst [vmem:[%s474 + $0x240] sm:$0xff] %v619
                  %v621 = vld [vmem:[%s473 + $0x488] sm:$0xff]
                  %622 = vst [vmem:[%s474 + $0x248] sm:$0xff] %v621
                  %v623 = vld [vmem:[%s473 + $0x490] sm:$0xff]
                  %624 = vst [vmem:[%s474 + $0x250] sm:$0xff] %v623
                  %v625 = vld [vmem:[%s473 + $0x498] sm:$0xff]
                  %626 = vst [vmem:[%s474 + $0x258] sm:$0xff] %v625
                  %v627 = vld [vmem:[%s473 + $0x4a0] sm:$0xff]
                  %628 = vst [vmem:[%s474 + $0x260] sm:$0xff] %v627
                  %v629 = vld [vmem:[%s473 + $0x4a8] sm:$0xff]
                  %630 = vst [vmem:[%s474 + $0x268] sm:$0xff] %v629
                  %v631 = vld [vmem:[%s473 + $0x4b0] sm:$0xff]
                  %632 = vst [vmem:[%s474 + $0x270] sm:$0xff] %v631
                  %v633 = vld [vmem:[%s473 + $0x4b8] sm:$0xff]
                  %634 = vst [vmem:[%s474 + $0x278] sm:$0xff] %v633
                  %v635 = vld [vmem:[%s473 + $0x500] sm:$0xff]
                  %636 = vst [vmem:[%s474 + $0x280] sm:$0xff] %v635
                  %v637 = vld [vmem:[%s473 + $0x508] sm:$0xff]
                  %638 = vst [vmem:[%s474 + $0x288] sm:$0xff] %v637
                  %v639 = vld [vmem:[%s473 + $0x510] sm:$0xff]
                  %640 = vst [vmem:[%s474 + $0x290] sm:$0xff] %v639
                  %v641 = vld [vmem:[%s473 + $0x518] sm:$0xff]
                  %642 = vst [vmem:[%s474 + $0x298] sm:$0xff] %v641
                  %v643 = vld [vmem:[%s473 + $0x520] sm:$0xff]
                  %644 = vst [vmem:[%s474 + $0x2a0] sm:$0xff] %v643
                  %v645 = vld [vmem:[%s473 + $0x528] sm:$0xff]
                  %646 = vst [vmem:[%s474 + $0x2a8] sm:$0xff] %v645
                  %v647 = vld [vmem:[%s473 + $0x530] sm:$0xff]
                  %648 = vst [vmem:[%s474 + $0x2b0] sm:$0xff] %v647
                  %v649 = vld [vmem:[%s473 + $0x538] sm:$0xff]
                  %650 = vst [vmem:[%s474 + $0x2b8] sm:$0xff] %v649
                  %v651 = vld [vmem:[%s473 + $0x580] sm:$0xff]
                  %652 = vst [vmem:[%s474 + $0x2c0] sm:$0xff] %v651
                  %v653 = vld [vmem:[%s473 + $0x588] sm:$0xff]
                  %654 = vst [vmem:[%s474 + $0x2c8] sm:$0xff] %v653
                  %v655 = vld [vmem:[%s473 + $0x590] sm:$0xff]
                  %656 = vst [vmem:[%s474 + $0x2d0] sm:$0xff] %v655
                  %v657 = vld [vmem:[%s473 + $0x598] sm:$0xff]
                  %658 = vst [vmem:[%s474 + $0x2d8] sm:$0xff] %v657
                  %v659 = vld [vmem:[%s473 + $0x5a0] sm:$0xff]
                  %660 = vst [vmem:[%s474 + $0x2e0] sm:$0xff] %v659
                  %v661 = vld [vmem:[%s473 + $0x5a8] sm:$0xff]
                  %662 = vst [vmem:[%s474 + $0x2e8] sm:$0xff] %v661
                  %v663 = vld [vmem:[%s473 + $0x5b0] sm:$0xff]
                  %664 = vst [vmem:[%s474 + $0x2f0] sm:$0xff] %v663
                  %v665 = vld [vmem:[%s473 + $0x5b8] sm:$0xff]
                  %666 = vst [vmem:[%s474 + $0x2f8] sm:$0xff] %v665
                $region60: #{tpu_custom_call.1} parent=54 // loop_footer
                  %s472 = sadd.s32 1, %s468
                $region61: #{tpu_custom_call.1} parent=54 // loop_footer_branch
                  %467 = sbr.rel target = $region57
                $region62: #{tpu_custom_call.1} parent=54 // loop_exit
                  _
              $region55: #{tpu_custom_call.1} parent=39 // pred_fallthru
                _
              // Predicated region
              $region63: #{tpu_custom_call.1} parent=39 // pred_check
                _
              $region64: #{tpu_custom_call.1} parent=39 // pred_check_branch
                %668 = sbr.rel target = $region66
              $region65: #{tpu_custom_call.1} parent=39 // pred_region
                _
              $region66: #{tpu_custom_call.1} parent=39 // pred_fallthru
                _
            $region40: #{tpu_custom_call.1} parent=35 // pred_fallthru
              _
            // Predicated region
            $region41: #{tpu_custom_call.1} parent=35 // pred_check
              _
            $region42: #{tpu_custom_call.1} parent=35 // pred_check_branch
              %263 = sbr.rel target = $region44
            $region43: #{tpu_custom_call.1} parent=35 // pred_region
              loop: start=0, step=1, limit=1
              $region45: #{tpu_custom_call.1} parent=43 // loop_pre_header
                _
              $region46: #{tpu_custom_call.1} parent=43 // loop_header
                %s266 = sphi 0, %s270
                %p267 = scmp.ge.s32.totalorder %s266, 1
                %s271 = sphi %s257, %s257
                %s272 = sphi %s253, %s253
              $region47: #{tpu_custom_call.1} parent=43 // loop_header_branch
                %269 = sbr.rel (%p267) target = $region51
              $region48: #{tpu_custom_call.1} parent=43 // loop_body
                %v273 = vld [vmem:[%s271] sm:$0xff]
                %274 = vst [vmem:[%s272] sm:$0xff] %v273
                %v275 = vld [vmem:[%s271 + $0x8] sm:$0xff]
                %276 = vst [vmem:[%s272 + $0x8] sm:$0xff] %v275
                %v277 = vld [vmem:[%s271 + $0x10] sm:$0xff]
                %278 = vst [vmem:[%s272 + $0x10] sm:$0xff] %v277
                %v279 = vld [vmem:[%s271 + $0x18] sm:$0xff]
                %280 = vst [vmem:[%s272 + $0x18] sm:$0xff] %v279
                %v281 = vld [vmem:[%s271 + $0x20] sm:$0xff]
                %282 = vst [vmem:[%s272 + $0x20] sm:$0xff] %v281
                %v283 = vld [vmem:[%s271 + $0x28] sm:$0xff]
                %284 = vst [vmem:[%s272 + $0x28] sm:$0xff] %v283
                %v285 = vld [vmem:[%s271 + $0x30] sm:$0xff]
                %286 = vst [vmem:[%s272 + $0x30] sm:$0xff] %v285
                %v287 = vld [vmem:[%s271 + $0x38] sm:$0xff]
                %288 = vst [vmem:[%s272 + $0x38] sm:$0xff] %v287
                %v289 = vld [vmem:[%s271 + $0x80] sm:$0xff]
                %290 = vst [vmem:[%s272 + $0x40] sm:$0xff] %v289
                %v291 = vld [vmem:[%s271 + $0x88] sm:$0xff]
                %292 = vst [vmem:[%s272 + $0x48] sm:$0xff] %v291
                %v293 = vld [vmem:[%s271 + $0x90] sm:$0xff]
                %294 = vst [vmem:[%s272 + $0x50] sm:$0xff] %v293
                %v295 = vld [vmem:[%s271 + $0x98] sm:$0xff]
                %296 = vst [vmem:[%s272 + $0x58] sm:$0xff] %v295
                %v297 = vld [vmem:[%s271 + $0xa0] sm:$0xff]
                %298 = vst [vmem:[%s272 + $0x60] sm:$0xff] %v297
                %v299 = vld [vmem:[%s271 + $0xa8] sm:$0xff]
                %300 = vst [vmem:[%s272 + $0x68] sm:$0xff] %v299
                %v301 = vld [vmem:[%s271 + $0xb0] sm:$0xff]
                %302 = vst [vmem:[%s272 + $0x70] sm:$0xff] %v301
                %v303 = vld [vmem:[%s271 + $0xb8] sm:$0xff]
                %304 = vst [vmem:[%s272 + $0x78] sm:$0xff] %v303
                %v305 = vld [vmem:[%s271 + $0x100] sm:$0xff]
                %306 = vst [vmem:[%s272 + $0x80] sm:$0xff] %v305
                %v307 = vld [vmem:[%s271 + $0x108] sm:$0xff]
                %308 = vst [vmem:[%s272 + $0x88] sm:$0xff] %v307
                %v309 = vld [vmem:[%s271 + $0x110] sm:$0xff]
                %310 = vst [vmem:[%s272 + $0x90] sm:$0xff] %v309
                %v311 = vld [vmem:[%s271 + $0x118] sm:$0xff]
                %312 = vst [vmem:[%s272 + $0x98] sm:$0xff] %v311
                %v313 = vld [vmem:[%s271 + $0x120] sm:$0xff]
                %314 = vst [vmem:[%s272 + $0xa0] sm:$0xff] %v313
                %v315 = vld [vmem:[%s271 + $0x128] sm:$0xff]
                %316 = vst [vmem:[%s272 + $0xa8] sm:$0xff] %v315
                %v317 = vld [vmem:[%s271 + $0x130] sm:$0xff]
                %318 = vst [vmem:[%s272 + $0xb0] sm:$0xff] %v317
                %v319 = vld [vmem:[%s271 + $0x138] sm:$0xff]
                %320 = vst [vmem:[%s272 + $0xb8] sm:$0xff] %v319
                %v321 = vld [vmem:[%s271 + $0x180] sm:$0xff]
                %322 = vst [vmem:[%s272 + $0xc0] sm:$0xff] %v321
                %v323 = vld [vmem:[%s271 + $0x188] sm:$0xff]
                %324 = vst [vmem:[%s272 + $0xc8] sm:$0xff] %v323
                %v325 = vld [vmem:[%s271 + $0x190] sm:$0xff]
                %326 = vst [vmem:[%s272 + $0xd0] sm:$0xff] %v325
                %v327 = vld [vmem:[%s271 + $0x198] sm:$0xff]
                %328 = vst [vmem:[%s272 + $0xd8] sm:$0xff] %v327
                %v329 = vld [vmem:[%s271 + $0x1a0] sm:$0xff]
                %330 = vst [vmem:[%s272 + $0xe0] sm:$0xff] %v329
                %v331 = vld [vmem:[%s271 + $0x1a8] sm:$0xff]
                %332 = vst [vmem:[%s272 + $0xe8] sm:$0xff] %v331
                %v333 = vld [vmem:[%s271 + $0x1b0] sm:$0xff]
                %334 = vst [vmem:[%s272 + $0xf0] sm:$0xff] %v333
                %v335 = vld [vmem:[%s271 + $0x1b8] sm:$0xff]
                %336 = vst [vmem:[%s272 + $0xf8] sm:$0xff] %v335
                %v337 = vld [vmem:[%s271 + $0x200] sm:$0xff]
                %338 = vst [vmem:[%s272 + $0x100] sm:$0xff] %v337
                %v339 = vld [vmem:[%s271 + $0x208] sm:$0xff]
                %340 = vst [vmem:[%s272 + $0x108] sm:$0xff] %v339
                %v341 = vld [vmem:[%s271 + $0x210] sm:$0xff]
                %342 = vst [vmem:[%s272 + $0x110] sm:$0xff] %v341
                %v343 = vld [vmem:[%s271 + $0x218] sm:$0xff]
                %344 = vst [vmem:[%s272 + $0x118] sm:$0xff] %v343
                %v345 = vld [vmem:[%s271 + $0x220] sm:$0xff]
                %346 = vst [vmem:[%s272 + $0x120] sm:$0xff] %v345
                %v347 = vld [vmem:[%s271 + $0x228] sm:$0xff]
                %348 = vst [vmem:[%s272 + $0x128] sm:$0xff] %v347
                %v349 = vld [vmem:[%s271 + $0x230] sm:$0xff]
                %350 = vst [vmem:[%s272 + $0x130] sm:$0xff] %v349
                %v351 = vld [vmem:[%s271 + $0x238] sm:$0xff]
                %352 = vst [vmem:[%s272 + $0x138] sm:$0xff] %v351
                %v353 = vld [vmem:[%s271 + $0x280] sm:$0xff]
                %354 = vst [vmem:[%s272 + $0x140] sm:$0xff] %v353
                %v355 = vld [vmem:[%s271 + $0x288] sm:$0xff]
                %356 = vst [vmem:[%s272 + $0x148] sm:$0xff] %v355
                %v357 = vld [vmem:[%s271 + $0x290] sm:$0xff]
                %358 = vst [vmem:[%s272 + $0x150] sm:$0xff] %v357
                %v359 = vld [vmem:[%s271 + $0x298] sm:$0xff]
                %360 = vst [vmem:[%s272 + $0x158] sm:$0xff] %v359
                %v361 = vld [vmem:[%s271 + $0x2a0] sm:$0xff]
                %362 = vst [vmem:[%s272 + $0x160] sm:$0xff] %v361
                %v363 = vld [vmem:[%s271 + $0x2a8] sm:$0xff]
                %364 = vst [vmem:[%s272 + $0x168] sm:$0xff] %v363
                %v365 = vld [vmem:[%s271 + $0x2b0] sm:$0xff]
                %366 = vst [vmem:[%s272 + $0x170] sm:$0xff] %v365
                %v367 = vld [vmem:[%s271 + $0x2b8] sm:$0xff]
                %368 = vst [vmem:[%s272 + $0x178] sm:$0xff] %v367
                %v369 = vld [vmem:[%s271 + $0x300] sm:$0xff]
                %370 = vst [vmem:[%s272 + $0x180] sm:$0xff] %v369
                %v371 = vld [vmem:[%s271 + $0x308] sm:$0xff]
                %372 = vst [vmem:[%s272 + $0x188] sm:$0xff] %v371
                %v373 = vld [vmem:[%s271 + $0x310] sm:$0xff]
                %374 = vst [vmem:[%s272 + $0x190] sm:$0xff] %v373
                %v375 = vld [vmem:[%s271 + $0x318] sm:$0xff]
                %376 = vst [vmem:[%s272 + $0x198] sm:$0xff] %v375
                %v377 = vld [vmem:[%s271 + $0x320] sm:$0xff]
                %378 = vst [vmem:[%s272 + $0x1a0] sm:$0xff] %v377
                %v379 = vld [vmem:[%s271 + $0x328] sm:$0xff]
                %380 = vst [vmem:[%s272 + $0x1a8] sm:$0xff] %v379
                %v381 = vld [vmem:[%s271 + $0x330] sm:$0xff]
                %382 = vst [vmem:[%s272 + $0x1b0] sm:$0xff] %v381
                %v383 = vld [vmem:[%s271 + $0x338] sm:$0xff]
                %384 = vst [vmem:[%s272 + $0x1b8] sm:$0xff] %v383
                %v385 = vld [vmem:[%s271 + $0x380] sm:$0xff]
                %386 = vst [vmem:[%s272 + $0x1c0] sm:$0xff] %v385
                %v387 = vld [vmem:[%s271 + $0x388] sm:$0xff]
                %388 = vst [vmem:[%s272 + $0x1c8] sm:$0xff] %v387
                %v389 = vld [vmem:[%s271 + $0x390] sm:$0xff]
                %390 = vst [vmem:[%s272 + $0x1d0] sm:$0xff] %v389
                %v391 = vld [vmem:[%s271 + $0x398] sm:$0xff]
                %392 = vst [vmem:[%s272 + $0x1d8] sm:$0xff] %v391
                %v393 = vld [vmem:[%s271 + $0x3a0] sm:$0xff]
                %394 = vst [vmem:[%s272 + $0x1e0] sm:$0xff] %v393
                %v395 = vld [vmem:[%s271 + $0x3a8] sm:$0xff]
                %396 = vst [vmem:[%s272 + $0x1e8] sm:$0xff] %v395
                %v397 = vld [vmem:[%s271 + $0x3b0] sm:$0xff]
                %398 = vst [vmem:[%s272 + $0x1f0] sm:$0xff] %v397
                %v399 = vld [vmem:[%s271 + $0x3b8] sm:$0xff]
                %400 = vst [vmem:[%s272 + $0x1f8] sm:$0xff] %v399
                %v401 = vld [vmem:[%s271 + $0x400] sm:$0xff]
                %402 = vst [vmem:[%s272 + $0x200] sm:$0xff] %v401
                %v403 = vld [vmem:[%s271 + $0x408] sm:$0xff]
                %404 = vst [vmem:[%s272 + $0x208] sm:$0xff] %v403
                %v405 = vld [vmem:[%s271 + $0x410] sm:$0xff]
                %406 = vst [vmem:[%s272 + $0x210] sm:$0xff] %v405
                %v407 = vld [vmem:[%s271 + $0x418] sm:$0xff]
                %408 = vst [vmem:[%s272 + $0x218] sm:$0xff] %v407
                %v409 = vld [vmem:[%s271 + $0x420] sm:$0xff]
                %410 = vst [vmem:[%s272 + $0x220] sm:$0xff] %v409
                %v411 = vld [vmem:[%s271 + $0x428] sm:$0xff]
                %412 = vst [vmem:[%s272 + $0x228] sm:$0xff] %v411
                %v413 = vld [vmem:[%s271 + $0x430] sm:$0xff]
                %414 = vst [vmem:[%s272 + $0x230] sm:$0xff] %v413
                %v415 = vld [vmem:[%s271 + $0x438] sm:$0xff]
                %416 = vst [vmem:[%s272 + $0x238] sm:$0xff] %v415
                %v417 = vld [vmem:[%s271 + $0x480] sm:$0xff]
                %418 = vst [vmem:[%s272 + $0x240] sm:$0xff] %v417
                %v419 = vld [vmem:[%s271 + $0x488] sm:$0xff]
                %420 = vst [vmem:[%s272 + $0x248] sm:$0xff] %v419
                %v421 = vld [vmem:[%s271 + $0x490] sm:$0xff]
                %422 = vst [vmem:[%s272 + $0x250] sm:$0xff] %v421
                %v423 = vld [vmem:[%s271 + $0x498] sm:$0xff]
                %424 = vst [vmem:[%s272 + $0x258] sm:$0xff] %v423
                %v425 = vld [vmem:[%s271 + $0x4a0] sm:$0xff]
                %426 = vst [vmem:[%s272 + $0x260] sm:$0xff] %v425
                %v427 = vld [vmem:[%s271 + $0x4a8] sm:$0xff]
                %428 = vst [vmem:[%s272 + $0x268] sm:$0xff] %v427
                %v429 = vld [vmem:[%s271 + $0x4b0] sm:$0xff]
                %430 = vst [vmem:[%s272 + $0x270] sm:$0xff] %v429
                %v431 = vld [vmem:[%s271 + $0x4b8] sm:$0xff]
                %432 = vst [vmem:[%s272 + $0x278] sm:$0xff] %v431
                %v433 = vld [vmem:[%s271 + $0x500] sm:$0xff]
                %434 = vst [vmem:[%s272 + $0x280] sm:$0xff] %v433
                %v435 = vld [vmem:[%s271 + $0x508] sm:$0xff]
                %436 = vst [vmem:[%s272 + $0x288] sm:$0xff] %v435
                %v437 = vld [vmem:[%s271 + $0x510] sm:$0xff]
                %438 = vst [vmem:[%s272 + $0x290] sm:$0xff] %v437
                %v439 = vld [vmem:[%s271 + $0x518] sm:$0xff]
                %440 = vst [vmem:[%s272 + $0x298] sm:$0xff] %v439
                %v441 = vld [vmem:[%s271 + $0x520] sm:$0xff]
                %442 = vst [vmem:[%s272 + $0x2a0] sm:$0xff] %v441
                %v443 = vld [vmem:[%s271 + $0x528] sm:$0xff]
                %444 = vst [vmem:[%s272 + $0x2a8] sm:$0xff] %v443
                %v445 = vld [vmem:[%s271 + $0x530] sm:$0xff]
                %446 = vst [vmem:[%s272 + $0x2b0] sm:$0xff] %v445
                %v447 = vld [vmem:[%s271 + $0x538] sm:$0xff]
                %448 = vst [vmem:[%s272 + $0x2b8] sm:$0xff] %v447
                %v449 = vld [vmem:[%s271 + $0x580] sm:$0xff]
                %450 = vst [vmem:[%s272 + $0x2c0] sm:$0xff] %v449
                %v451 = vld [vmem:[%s271 + $0x588] sm:$0xff]
                %452 = vst [vmem:[%s272 + $0x2c8] sm:$0xff] %v451
                %v453 = vld [vmem:[%s271 + $0x590] sm:$0xff]
                %454 = vst [vmem:[%s272 + $0x2d0] sm:$0xff] %v453
                %v455 = vld [vmem:[%s271 + $0x598] sm:$0xff]
                %456 = vst [vmem:[%s272 + $0x2d8] sm:$0xff] %v455
                %v457 = vld [vmem:[%s271 + $0x5a0] sm:$0xff]
                %458 = vst [vmem:[%s272 + $0x2e0] sm:$0xff] %v457
                %v459 = vld [vmem:[%s271 + $0x5a8] sm:$0xff]
                %460 = vst [vmem:[%s272 + $0x2e8] sm:$0xff] %v459
                %v461 = vld [vmem:[%s271 + $0x5b0] sm:$0xff]
                %462 = vst [vmem:[%s272 + $0x2f0] sm:$0xff] %v461
                %v463 = vld [vmem:[%s271 + $0x5b8] sm:$0xff]
                %464 = vst [vmem:[%s272 + $0x2f8] sm:$0xff] %v463
              $region49: #{tpu_custom_call.1} parent=43 // loop_footer
                %s270 = sadd.s32 1, %s266
              $region50: #{tpu_custom_call.1} parent=43 // loop_footer_branch
                %265 = sbr.rel target = $region46
              $region51: #{tpu_custom_call.1} parent=43 // loop_exit
                _
            $region44: #{tpu_custom_call.1} parent=35 // pred_fallthru
              _
          $region36: #{tpu_custom_call.1} parent=31 // pred_fallthru
            _
          %669 = vnop
        $region32: #{tpu_custom_call.1} parent=23 // pred_fallthru
          _
        // Predicated region
        $region67: #{tpu_custom_call.1} parent=23 // pred_check
          %p670 = pneg %p105
        $region68: #{tpu_custom_call.1} parent=23 // pred_check_branch
          %672 = sbr.rel (%p670) target = $region70
        $region69: #{tpu_custom_call.1} parent=23 // pred_region
          %s673 = sand.u32 %s95, 1
          %s674 = sand.u32 %s95, 1
          %s675 = smul.addr %s674, 24
          %s676 = scalar_lea.vmem [#allocation3], %s675
          %s677 = smul.u32 2, %s26
          %s678 = scalar_lea.vmem %s2, %s677
          // Predicated region
          $region71: #{tpu_custom_call.1} parent=69 // pred_check
            _
          $region72: #{tpu_custom_call.1} parent=69 // pred_check_branch
            %680 = sbr.rel (0) target = $region74
          $region73: #{tpu_custom_call.1} parent=69 // pred_region
            // Predicated region
            $region75: #{tpu_custom_call.1} parent=73 // pred_check
              _
            $region76: #{tpu_custom_call.1} parent=73 // pred_check_branch
              %682 = sbr.rel target = $region78
            $region77: #{tpu_custom_call.1} parent=73 // pred_region
              // Predicated region
              $region90: #{tpu_custom_call.1} parent=77 // pred_check
                _
              $region91: #{tpu_custom_call.1} parent=77 // pred_check_branch
                %719 = sbr.rel (0) target = $region93
              $region92: #{tpu_custom_call.1} parent=77 // pred_region
                loop: start=0, step=1, limit=1
                $region94: #{tpu_custom_call.1} parent=92 // loop_pre_header
                  _
                $region95: #{tpu_custom_call.1} parent=92 // loop_header
                  %s721 = sphi 0, %s725
                  %p722 = scmp.ge.s32.totalorder %s721, 1
                  %s726 = sphi %s678, %s678
                  %s727 = sphi %s676, %s676
                $region96: #{tpu_custom_call.1} parent=92 // loop_header_branch
                  %724 = sbr.rel (%p722) target = $region100
                $region97: #{tpu_custom_call.1} parent=92 // loop_body
                  _
                $region98: #{tpu_custom_call.1} parent=92 // loop_footer
                  %s725 = sadd.s32 1, %s721
                $region99: #{tpu_custom_call.1} parent=92 // loop_footer_branch
                  %720 = sbr.rel target = $region95
                $region100: #{tpu_custom_call.1} parent=92 // loop_exit
                  _
                loop: start=0, step=1, limit=1
                $region101: #{tpu_custom_call.1} parent=92 // loop_pre_header
                  _
                $region102: #{tpu_custom_call.1} parent=92 // loop_header
                  %s730 = sphi 0, %s734
                  %p731 = scmp.ge.s32.totalorder %s730, 1
                  %s735 = sphi %s678, %s678
                  %s736 = sphi %s676, %s676
                $region103: #{tpu_custom_call.1} parent=92 // loop_header_branch
                  %733 = sbr.rel (%p731) target = $region107
                $region104: #{tpu_custom_call.1} parent=92 // loop_body
                  %v737 = vld [vmem:[%s735] sm:$0x3]
                  %738 = vst [vmem:[%s736] sm:$0x3] %v737
                  %v739 = vld [vmem:[%s735 + $0x4] sm:$0x3]
                  %740 = vst [vmem:[%s736 + $0x2] sm:$0x3] %v739
                  %v741 = vld [vmem:[%s735 + $0x8] sm:$0x3]
                  %742 = vst [vmem:[%s736 + $0x4] sm:$0x3] %v741
                  %v743 = vld [vmem:[%s735 + $0xc] sm:$0x3]
                  %744 = vst [vmem:[%s736 + $0x6] sm:$0x3] %v743
                  %v745 = vld [vmem:[%s735 + $0x10] sm:$0x3]
                  %746 = vst [vmem:[%s736 + $0x8] sm:$0x3] %v745
                  %v747 = vld [vmem:[%s735 + $0x14] sm:$0x3]
                  %748 = vst [vmem:[%s736 + $0xa] sm:$0x3] %v747
                  %v749 = vld [vmem:[%s735 + $0x18] sm:$0x3]
                  %750 = vst [vmem:[%s736 + $0xc] sm:$0x3] %v749
                  %v751 = vld [vmem:[%s735 + $0x1c] sm:$0x3]
                  %752 = vst [vmem:[%s736 + $0xe] sm:$0x3] %v751
                  %v753 = vld [vmem:[%s735 + $0x20] sm:$0x3]
                  %754 = vst [vmem:[%s736 + $0x10] sm:$0x3] %v753
                  %v755 = vld [vmem:[%s735 + $0x24] sm:$0x3]
                  %756 = vst [vmem:[%s736 + $0x12] sm:$0x3] %v755
                  %v757 = vld [vmem:[%s735 + $0x28] sm:$0x3]
                  %758 = vst [vmem:[%s736 + $0x14] sm:$0x3] %v757
                  %v759 = vld [vmem:[%s735 + $0x2c] sm:$0x3]
                  %760 = vst [vmem:[%s736 + $0x16] sm:$0x3] %v759
                $region105: #{tpu_custom_call.1} parent=92 // loop_footer
                  %s734 = sadd.s32 1, %s730
                $region106: #{tpu_custom_call.1} parent=92 // loop_footer_branch
                  %729 = sbr.rel target = $region102
                $region107: #{tpu_custom_call.1} parent=92 // loop_exit
                  _
              $region93: #{tpu_custom_call.1} parent=77 // pred_fallthru
                _
            $region78: #{tpu_custom_call.1} parent=73 // pred_fallthru
              _
            // Predicated region
            $region79: #{tpu_custom_call.1} parent=73 // pred_check
              _
            $region80: #{tpu_custom_call.1} parent=73 // pred_check_branch
              %684 = sbr.rel (0) target = $region82
            $region81: #{tpu_custom_call.1} parent=73 // pred_region
              loop: start=0, step=1, limit=1
              $region83: #{tpu_custom_call.1} parent=81 // loop_pre_header
                _
              $region84: #{tpu_custom_call.1} parent=81 // loop_header
                %s687 = sphi 0, %s691
                %p688 = scmp.ge.s32.totalorder %s687, 1
                %s692 = sphi %s678, %s678
                %s693 = sphi %s676, %s676
              $region85: #{tpu_custom_call.1} parent=81 // loop_header_branch
                %690 = sbr.rel (%p688) target = $region89
              $region86: #{tpu_custom_call.1} parent=81 // loop_body
                %v694 = vld [vmem:[%s692] sm:$0x3]
                %695 = vst [vmem:[%s693] sm:$0x3] %v694
                %v696 = vld [vmem:[%s692 + $0x4] sm:$0x3]
                %697 = vst [vmem:[%s693 + $0x2] sm:$0x3] %v696
                %v698 = vld [vmem:[%s692 + $0x8] sm:$0x3]
                %699 = vst [vmem:[%s693 + $0x4] sm:$0x3] %v698
                %v700 = vld [vmem:[%s692 + $0xc] sm:$0x3]
                %701 = vst [vmem:[%s693 + $0x6] sm:$0x3] %v700
                %v702 = vld [vmem:[%s692 + $0x10] sm:$0x3]
                %703 = vst [vmem:[%s693 + $0x8] sm:$0x3] %v702
                %v704 = vld [vmem:[%s692 + $0x14] sm:$0x3]
                %705 = vst [vmem:[%s693 + $0xa] sm:$0x3] %v704
                %v706 = vld [vmem:[%s692 + $0x18] sm:$0x3]
                %707 = vst [vmem:[%s693 + $0xc] sm:$0x3] %v706
                %v708 = vld [vmem:[%s692 + $0x1c] sm:$0x3]
                %709 = vst [vmem:[%s693 + $0xe] sm:$0x3] %v708
                %v710 = vld [vmem:[%s692 + $0x20] sm:$0x3]
                %711 = vst [vmem:[%s693 + $0x10] sm:$0x3] %v710
                %v712 = vld [vmem:[%s692 + $0x24] sm:$0x3]
                %713 = vst [vmem:[%s693 + $0x12] sm:$0x3] %v712
                %v714 = vld [vmem:[%s692 + $0x28] sm:$0x3]
                %715 = vst [vmem:[%s693 + $0x14] sm:$0x3] %v714
                %v716 = vld [vmem:[%s692 + $0x2c] sm:$0x3]
                %717 = vst [vmem:[%s693 + $0x16] sm:$0x3] %v716
              $region87: #{tpu_custom_call.1} parent=81 // loop_footer
                %s691 = sadd.s32 1, %s687
              $region88: #{tpu_custom_call.1} parent=81 // loop_footer_branch
                %686 = sbr.rel target = $region84
              $region89: #{tpu_custom_call.1} parent=81 // loop_exit
                _
            $region82: #{tpu_custom_call.1} parent=73 // pred_fallthru
              _
          $region74: #{tpu_custom_call.1} parent=69 // pred_fallthru
            _
          %761 = vnop
        $region70: #{tpu_custom_call.1} parent=23 // pred_fallthru
          _
      $region24: #{tpu_custom_call.1} parent=5 // pred_fallthru
        _
      %p762 = scmp.le.s32.totalorder 1, %s19
      %p763 = scmp.lt.s32.totalorder %s19, 5
      %p764 = pnand %p762, %p763
      %p765 = pneg %p764
      // Predicated region
      $region108: #{tpu_custom_call.1} parent=5 // pred_check
        _
      $region109: #{tpu_custom_call.1} parent=5 // pred_check_branch
        %767 = sbr.rel (%p764) target = $region111
      $region110: #{tpu_custom_call.1} parent=5 // pred_region
        %s768 = ssub.s32 %s19, 1
        %s769 = sand.u32 %s72, 1
        %s770 = sand.u32 %s72, 1
        %s771 = smul.addr %s770, 768
        %s772 = scalar_lea.vmem [#allocation2], %s771
        // Predicated region
        $region112: #{tpu_custom_call.1} parent=110 // pred_check
          %p773 = pneg %p85
        $region113: #{tpu_custom_call.1} parent=110 // pred_check_branch
          %775 = sbr.rel (%p773) target = $region115
        $region114: #{tpu_custom_call.1} parent=110 // pred_region
          _
        $region115: #{tpu_custom_call.1} parent=110 // pred_fallthru
          _
        %s776 = sand.u32 %s98, 1
        %s777 = sand.u32 %s98, 1
        %s778 = smul.addr %s777, 24
        %s779 = scalar_lea.vmem [#allocation3], %s778
        // Predicated region
        $region116: #{tpu_custom_call.1} parent=110 // pred_check
          %p780 = pneg %p111
        $region117: #{tpu_custom_call.1} parent=110 // pred_check_branch
          %782 = sbr.rel (%p780) target = $region119
        $region118: #{tpu_custom_call.1} parent=110 // pred_region
          _
        $region119: #{tpu_custom_call.1} parent=110 // pred_fallthru
          _
        %s783 = smul.u32 2, %s28
        %p784 = scmp.lt.s32.totalorder %s29, 1
        %s785 = scalar_select %p784, %s29, 1
        %p786 = scmp.lt.s32.totalorder %s783, 3
        %s787 = scalar_select %p786, %s783, 3
        %s788 = smul.addr %s785, 4
        %s789 = sadd.s32 %s787, %s788
        %s790 = smul.addr %s789, 8
        %s791 = scalar_lea.vmem %s0, %s790
        %p792 = pneg %p59
        %p793 = pneg %p56
        %s794 = sand.u32 %s72, 1
        %s795 = sand.u32 %s72, 1
        %s796 = smul.addr %s795, 768
        %s797 = scalar_lea.vmem [#allocation2], %s796
        %p798 = pneg %p85
        %p799 = pneg %p82
        %s800 = sand.u32 %s98, 1
        %s801 = sand.u32 %s98, 1
        %s802 = smul.addr %s801, 24
        %s803 = scalar_lea.vmem [#allocation3], %s802
        %p804 = pneg %p111
        %p805 = pneg %p108
        %p806 = pneg %p132
        %p807 = pneg %p129
        %p808 = pneg %p153
        %p809 = pneg %p150
        %p810 = pneg %p181
        %p811 = pneg %p178
        %s812 = sand.u32 %s168, 1
        %s813 = scalar_lea.sflag [#allocation5], %s812
        %s814 = sand.u32 %s168, 1
        %s815 = smul.addr %s814, 16
        %s816 = scalar_lea.vmem [#allocation4], %s815
        %p817 = pneg %p209
        %p818 = pneg %p206
        %s819 = sand.u32 %s196, 1
        %s820 = scalar_lea.sflag [#allocation7], %s819
        %s821 = sand.u32 %s196, 1
        %s822 = smul.addr %s821, 64
        %s823 = scalar_lea.vmem [#allocation6], %s822
        %s824 = smul.u32 2, %s28
        %p825 = scmp.lt.s32.totalorder %s29, 1
        %s826 = scalar_select %p825, %s29, 1
        %p827 = scmp.lt.s32.totalorder %s824, 3
        %s828 = scalar_select %p827, %s824, 3
        %s829 = smul.addr %s826, 4
        %s830 = sadd.s32 %s828, %s829
        %s831 = smul.addr %s830, 8
        %s832 = scalar_lea.vmem %s0, %s831
        %s833 = smul.u32 2, %s28
        %s834 = smul.u32 2, %s28
        %s835 = smul.u32 2, %s28
        %s836 = smul.u32 2, %s28
        %s837 = smul.u32 2, %s28
        %v838 = vld [vmem:[%s832] sm:$0xff]
        %v839 = vld [vmem:[%s832 + $0x8] sm:$0xff]
        %v840 = vld [vmem:[%s772] sm:$0xff]
        %v841 = vld [vmem:[%s772 + $0x8] sm:$0xff]
        %v842 = vld [vmem:[%s772 + $0x10] sm:$0xff]
        %v843 = vld [vmem:[%s772 + $0x18] sm:$0xff]
        %v844 = vld [vmem:[%s772 + $0x20] sm:$0xff]
        %v845 = vld [vmem:[%s772 + $0x28] sm:$0xff]
        %v846 = vld [vmem:[%s772 + $0x30] sm:$0xff]
        %v847 = vld [vmem:[%s772 + $0x38] sm:$0xff]
        %v848 = vld [vmem:[%s779] sm:$0x1]
        %v849 = vld [vmem:[%s779 + $0x1] sm:$0x1]
        %v852 = vlaneseq
        %v853 = vshrl.u32 %v852, 7
        %v854 = vsub.s32 0, %v853
        %v855 = vrot.slane %v848, %v854
        %v856 = vlaneseq
        %v857 = vshrl.u32 %v856, 7
        %v858 = vsub.s32 0, %v857
        %v859 = vrot.slane %v849, %v858
        %vm862 = vcmask 261120
        %v864 = vsel %vm862, %v838, 0
        %866 = vmatprep.subr.mxu0 0.0
        %867 = vmatpush1.msra.mxu0 %v840
        %868 = vmatprep.subr.mxu0 0.0
        %869 = vmatpush1.msra.mxu0 %v841
        %870 = vmatprep.subr.mxu0 0.0
        %871 = vmatpush1.msra.mxu0 %v842
        %872 = vmatprep.subr.mxu0 0.0
        %873 = vmatpush1.msra.mxu0 %v843
        %874 = vmatprep.subr.mxu0 0.0
        %875 = vmatpush1.msra.mxu0 0.0
        %876 = vmatprep.subr.mxu0 0.0
        %877 = vmatpush1.msra.mxu0 0.0
        %878 = vmatprep.subr.mxu0 0.0
        %879 = vmatpush1.msra.mxu0 0.0
        %880 = vmatprep.subr.mxu0 0.0
        %881 = vmatpush1.msra.mxu0 0.0
        %882 = vmatprep.subr.mxu0 0.0
        %883 = vmatpush1.msra.mxu0 0.0
        %884 = vmatprep.subr.mxu0 0.0
        %885 = vmatpush1.msra.mxu0 0.0
        %886 = vmatprep.subr.mxu0 0.0
        %887 = vmatpush1.msra.mxu0 0.0
        %888 = vmatprep.subr.mxu0 0.0
        %889 = vmatpush1.msra.mxu0 0.0
        %890 = vmatprep.subr.mxu0 0.0
        %891 = vmatpush1.msra.mxu0 0.0
        %892 = vmatprep.subr.mxu0 0.0
        %893 = vmatpush1.msra.mxu0 0.0
        %894 = vmatprep.subr.mxu0 0.0
        %895 = vmatpush1.msra.mxu0 0.0
        %896 = vmatprep.subr.mxu0 0.0
        %897 = vmatpush1.msra.mxu0 0.0
        %898 = vmatprep.subr.mxu0 0.0
        %899 = vmatpush1.msra.mxu0 0.0
        %900 = vmatprep.subr.mxu0 0.0
        %901 = vmatpush1.msra.mxu0 0.0
        %902 = vmatprep.subr.mxu0 0.0
        %903 = vmatpush1.msra.mxu0 0.0
        %904 = vmatprep.subr.mxu0 0.0
        %905 = vmatpush1.msra.mxu0 0.0
        %906 = vmatprep.subr.mxu0 0.0
        %907 = vmatpush1.msra.mxu0 0.0
        %908 = vmatprep.subr.mxu0 0.0
        %909 = vmatpush1.msra.mxu0 0.0
        %910 = vmatprep.subr.mxu0 0.0
        %911 = vmatpush1.msra.mxu0 0.0
        %912 = vmatprep.subr.mxu0 0.0
        %913 = vmatpush1.msra.mxu0 0.0
        %914 = vmatprep.subr.mxu0 0.0
        %915 = vmatpush1.msra.mxu0 0.0
        %916 = vmatprep.subr.mxu0 0.0
        %917 = vmatpush1.msra.mxu0 0.0
        %918 = vmatprep.subr.mxu0 0.0
        %919 = vmatpush1.msra.mxu0 0.0
        %920 = vmatprep.subr.mxu0 0.0
        %921 = vmatpush1.msra.mxu0 0.0
        %922 = vmatprep.subr.mxu0 0.0
        %923 = vmatpush1.msra.mxu0 0.0
        %924 = vmatprep.subr.mxu0 0.0
        %925 = vmatpush1.msra.mxu0 0.0
        %926 = vmatprep.subr.mxu0 0.0
        %927 = vmatpush1.msra.mxu0 0.0
        %928 = vmatprep.subr.mxu0 0.0
        %929 = vmatpush1.msra.mxu0 0.0
        %930 = vmatprep.mubr.f32.mxu0 0.0
        %931 = vmatmul.mubr.f32.gmra.mrb[0].mxu0 %v864
        %v932 = vpop.f32.mrb[0].mxu0
        %v933 = vadd.f32 %v855, %v932
        %v934 = vpop.f32.mrb[0].mxu0
        %935 = vdwg.mxu0
        %v937 = vsel %vm862, %v839, 0
        %939 = vmatprep.subr.mxu0 0.0
        %940 = vmatpush1.msra.mxu0 %v844
        %941 = vmatprep.subr.mxu0 0.0
        %942 = vmatpush1.msra.mxu0 %v845
        %943 = vmatprep.subr.mxu0 0.0
        %944 = vmatpush1.msra.mxu0 %v846
        %945 = vmatprep.subr.mxu0 0.0
        %946 = vmatpush1.msra.mxu0 %v847
        %947 = vmatprep.subr.mxu0 0.0
        %948 = vmatpush1.msra.mxu0 0.0
        %949 = vmatprep.subr.mxu0 0.0
        %950 = vmatpush1.msra.mxu0 0.0
        %951 = vmatprep.subr.mxu0 0.0
        %952 = vmatpush1.msra.mxu0 0.0
        %953 = vmatprep.subr.mxu0 0.0
        %954 = vmatpush1.msra.mxu0 0.0
        %955 = vmatprep.subr.mxu0 0.0
        %956 = vmatpush1.msra.mxu0 0.0
        %957 = vmatprep.subr.mxu0 0.0
        %958 = vmatpush1.msra.mxu0 0.0
        %959 = vmatprep.subr.mxu0 0.0
        %960 = vmatpush1.msra.mxu0 0.0
        %961 = vmatprep.subr.mxu0 0.0
        %962 = vmatpush1.msra.mxu0 0.0
        %963 = vmatprep.subr.mxu0 0.0
        %964 = vmatpush1.msra.mxu0 0.0
        %965 = vmatprep.subr.mxu0 0.0
        %966 = vmatpush1.msra.mxu0 0.0
        %967 = vmatprep.subr.mxu0 0.0
        %968 = vmatpush1.msra.mxu0 0.0
        %969 = vmatprep.subr.mxu0 0.0
        %970 = vmatpush1.msra.mxu0 0.0
        %971 = vmatprep.subr.mxu0 0.0
        %972 = vmatpush1.msra.mxu0 0.0
        %973 = vmatprep.subr.mxu0 0.0
        %974 = vmatpush1.msra.mxu0 0.0
        %975 = vmatprep.subr.mxu0 0.0
        %976 = vmatpush1.msra.mxu0 0.0
        %977 = vmatprep.subr.mxu0 0.0
        %978 = vmatpush1.msra.mxu0 0.0
        %979 = vmatprep.subr.mxu0 0.0
        %980 = vmatpush1.msra.mxu0 0.0
        %981 = vmatprep.subr.mxu0 0.0
        %982 = vmatpush1.msra.mxu0 0.0
        %983 = vmatprep.subr.mxu0 0.0
        %984 = vmatpush1.msra.mxu0 0.0
        %985 = vmatprep.subr.mxu0 0.0
        %986 = vmatpush1.msra.mxu0 0.0
        %987 = vmatprep.subr.mxu0 0.0
        %988 = vmatpush1.msra.mxu0 0.0
        %989 = vmatprep.subr.mxu0 0.0
        %990 = vmatpush1.msra.mxu0 0.0
        %991 = vmatprep.subr.mxu0 0.0
        %992 = vmatpush1.msra.mxu0 0.0
        %993 = vmatprep.subr.mxu0 0.0
        %994 = vmatpush1.msra.mxu0 0.0
        %995 = vmatprep.subr.mxu0 0.0
        %996 = vmatpush1.msra.mxu0 0.0
        %997 = vmatprep.subr.mxu0 0.0
        %998 = vmatpush1.msra.mxu0 0.0
        %999 = vmatprep.subr.mxu0 0.0
        %1000 = vmatpush1.msra.mxu0 0.0
        %1001 = vmatprep.subr.mxu0 0.0
        %1002 = vmatpush1.msra.mxu0 0.0
        %1003 = vmatprep.mubr.f32.mxu0 0.0
        %1004 = vmatmul.mubr.f32.gmra.mrb[0].mxu0 %v937
        %v1005 = vpop.f32.mrb[0].mxu0
        %v1006 = vadd.f32 %v859, %v1005
        %v1007 = vpop.f32.mrb[0].mxu0
        %1008 = vdwg.mxu0
        %s1009 = scalar_lea.vmem %s772, 256 [#allocation2]
        %v1010 = vld [vmem:[%s1009] sm:$0xff]
        %v1011 = vld [vmem:[%s1009 + $0x8] sm:$0xff]
        %v1012 = vld [vmem:[%s1009 + $0x10] sm:$0xff]
        %v1013 = vld [vmem:[%s1009 + $0x18] sm:$0xff]
        %v1014 = vld [vmem:[%s1009 + $0x20] sm:$0xff]
        %v1015 = vld [vmem:[%s1009 + $0x28] sm:$0xff]
        %v1016 = vld [vmem:[%s1009 + $0x30] sm:$0xff]
        %v1017 = vld [vmem:[%s1009 + $0x38] sm:$0xff]
        %s1018 = scalar_lea.vmem %s779, 8 [#allocation3]
        %v1019 = vld [vmem:[%s1018] sm:$0x1]
        %v1020 = vld [vmem:[%s1018 + $0x1] sm:$0x1]
        %v1023 = vlaneseq
        %v1024 = vshrl.u32 %v1023, 7
        %v1025 = vsub.s32 0, %v1024
        %v1026 = vrot.slane %v1019, %v1025
        %v1027 = vlaneseq
        %v1028 = vshrl.u32 %v1027, 7
        %v1029 = vsub.s32 0, %v1028
        %v1030 = vrot.slane %v1020, %v1029
        %1033 = vmatprep.subr.mxu0 0.0
        %1034 = vmatpush1.msra.mxu0 %v1010
        %1035 = vmatprep.subr.mxu0 0.0
        %1036 = vmatpush1.msra.mxu0 %v1011
        %1037 = vmatprep.subr.mxu0 0.0
        %1038 = vmatpush1.msra.mxu0 %v1012
        %1039 = vmatprep.subr.mxu0 0.0
        %1040 = vmatpush1.msra.mxu0 %v1013
        %1041 = vmatprep.subr.mxu0 0.0
        %1042 = vmatpush1.msra.mxu0 0.0
        %1043 = vmatprep.subr.mxu0 0.0
        %1044 = vmatpush1.msra.mxu0 0.0
        %1045 = vmatprep.subr.mxu0 0.0
        %1046 = vmatpush1.msra.mxu0 0.0
        %1047 = vmatprep.subr.mxu0 0.0
        %1048 = vmatpush1.msra.mxu0 0.0
        %1049 = vmatprep.subr.mxu0 0.0
        %1050 = vmatpush1.msra.mxu0 0.0
        %1051 = vmatprep.subr.mxu0 0.0
        %1052 = vmatpush1.msra.mxu0 0.0
        %1053 = vmatprep.subr.mxu0 0.0
        %1054 = vmatpush1.msra.mxu0 0.0
        %1055 = vmatprep.subr.mxu0 0.0
        %1056 = vmatpush1.msra.mxu0 0.0
        %1057 = vmatprep.subr.mxu0 0.0
        %1058 = vmatpush1.msra.mxu0 0.0
        %1059 = vmatprep.subr.mxu0 0.0
        %1060 = vmatpush1.msra.mxu0 0.0
        %1061 = vmatprep.subr.mxu0 0.0
        %1062 = vmatpush1.msra.mxu0 0.0
        %1063 = vmatprep.subr.mxu0 0.0
        %1064 = vmatpush1.msra.mxu0 0.0
        %1065 = vmatprep.subr.mxu0 0.0
        %1066 = vmatpush1.msra.mxu0 0.0
        %1067 = vmatprep.subr.mxu0 0.0
        %1068 = vmatpush1.msra.mxu0 0.0
        %1069 = vmatprep.subr.mxu0 0.0
        %1070 = vmatpush1.msra.mxu0 0.0
        %1071 = vmatprep.subr.mxu0 0.0
        %1072 = vmatpush1.msra.mxu0 0.0
        %1073 = vmatprep.subr.mxu0 0.0
        %1074 = vmatpush1.msra.mxu0 0.0
        %1075 = vmatprep.subr.mxu0 0.0
        %1076 = vmatpush1.msra.mxu0 0.0
        %1077 = vmatprep.subr.mxu0 0.0
        %1078 = vmatpush1.msra.mxu0 0.0
        %1079 = vmatprep.subr.mxu0 0.0
        %1080 = vmatpush1.msra.mxu0 0.0
        %1081 = vmatprep.subr.mxu0 0.0
        %1082 = vmatpush1.msra.mxu0 0.0
        %1083 = vmatprep.subr.mxu0 0.0
        %1084 = vmatpush1.msra.mxu0 0.0
        %1085 = vmatprep.subr.mxu0 0.0
        %1086 = vmatpush1.msra.mxu0 0.0
        %1087 = vmatprep.subr.mxu0 0.0
        %1088 = vmatpush1.msra.mxu0 0.0
        %1089 = vmatprep.subr.mxu0 0.0
        %1090 = vmatpush1.msra.mxu0 0.0
        %1091 = vmatprep.subr.mxu0 0.0
        %1092 = vmatpush1.msra.mxu0 0.0
        %1093 = vmatprep.subr.mxu0 0.0
        %1094 = vmatpush1.msra.mxu0 0.0
        %1095 = vmatprep.subr.mxu0 0.0
        %1096 = vmatpush1.msra.mxu0 0.0
        %1097 = vmatprep.mubr.f32.mxu0 0.0
        %1098 = vmatmul.mubr.f32.gmra.mrb[0].mxu0 %v864
        %v1099 = vpop.f32.mrb[0].mxu0
        %v1100 = vadd.f32 %v1026, %v1099
        %v1101 = vpop.f32.mrb[0].mxu0
        %1102 = vdwg.mxu0
        %1103 = vmatprep.subr.mxu0 0.0
        %1104 = vmatpush1.msra.mxu0 %v1014
        %1105 = vmatprep.subr.mxu0 0.0
        %1106 = vmatpush1.msra.mxu0 %v1015
        %1107 = vmatprep.subr.mxu0 0.0
        %1108 = vmatpush1.msra.mxu0 %v1016
        %1109 = vmatprep.subr.mxu0 0.0
        %1110 = vmatpush1.msra.mxu0 %v1017
        %1111 = vmatprep.subr.mxu0 0.0
        %1112 = vmatpush1.msra.mxu0 0.0
        %1113 = vmatprep.subr.mxu0 0.0
        %1114 = vmatpush1.msra.mxu0 0.0
        %1115 = vmatprep.subr.mxu0 0.0
        %1116 = vmatpush1.msra.mxu0 0.0
        %1117 = vmatprep.subr.mxu0 0.0
        %1118 = vmatpush1.msra.mxu0 0.0
        %1119 = vmatprep.subr.mxu0 0.0
        %1120 = vmatpush1.msra.mxu0 0.0
        %1121 = vmatprep.subr.mxu0 0.0
        %1122 = vmatpush1.msra.mxu0 0.0
        %1123 = vmatprep.subr.mxu0 0.0
        %1124 = vmatpush1.msra.mxu0 0.0
        %1125 = vmatprep.subr.mxu0 0.0
        %1126 = vmatpush1.msra.mxu0 0.0
        %1127 = vmatprep.subr.mxu0 0.0
        %1128 = vmatpush1.msra.mxu0 0.0
        %1129 = vmatprep.subr.mxu0 0.0
        %1130 = vmatpush1.msra.mxu0 0.0
        %1131 = vmatprep.subr.mxu0 0.0
        %1132 = vmatpush1.msra.mxu0 0.0
        %1133 = vmatprep.subr.mxu0 0.0
        %1134 = vmatpush1.msra.mxu0 0.0
        %1135 = vmatprep.subr.mxu0 0.0
        %1136 = vmatpush1.msra.mxu0 0.0
        %1137 = vmatprep.subr.mxu0 0.0
        %1138 = vmatpush1.msra.mxu0 0.0
        %1139 = vmatprep.subr.mxu0 0.0
        %1140 = vmatpush1.msra.mxu0 0.0
        %1141 = vmatprep.subr.mxu0 0.0
        %1142 = vmatpush1.msra.mxu0 0.0
        %1143 = vmatprep.subr.mxu0 0.0
        %1144 = vmatpush1.msra.mxu0 0.0
        %1145 = vmatprep.subr.mxu0 0.0
        %1146 = vmatpush1.msra.mxu0 0.0
        %1147 = vmatprep.subr.mxu0 0.0
        %1148 = vmatpush1.msra.mxu0 0.0
        %1149 = vmatprep.subr.mxu0 0.0
        %1150 = vmatpush1.msra.mxu0 0.0
        %1151 = vmatprep.subr.mxu0 0.0
        %1152 = vmatpush1.msra.mxu0 0.0
        %1153 = vmatprep.subr.mxu0 0.0
        %1154 = vmatpush1.msra.mxu0 0.0
        %1155 = vmatprep.subr.mxu0 0.0
        %1156 = vmatpush1.msra.mxu0 0.0
        %1157 = vmatprep.subr.mxu0 0.0
        %1158 = vmatpush1.msra.mxu0 0.0
        %1159 = vmatprep.subr.mxu0 0.0
        %1160 = vmatpush1.msra.mxu0 0.0
        %1161 = vmatprep.subr.mxu0 0.0
        %1162 = vmatpush1.msra.mxu0 0.0
        %1163 = vmatprep.subr.mxu0 0.0
        %1164 = vmatpush1.msra.mxu0 0.0
        %1165 = vmatprep.subr.mxu0 0.0
        %1166 = vmatpush1.msra.mxu0 0.0
        %1167 = vmatprep.mubr.f32.mxu0 0.0
        %1168 = vmatmul.mubr.f32.gmra.mrb[0].mxu0 %v937
        %v1169 = vpop.f32.mrb[0].mxu0
        %v1170 = vadd.f32 %v1030, %v1169
        %v1171 = vpop.f32.mrb[0].mxu0
        %1172 = vdwg.mxu0
        %s1173 = scalar_lea.vmem %s772, 512 [#allocation2]
        %v1174 = vld [vmem:[%s1173] sm:$0xff]
        %v1175 = vld [vmem:[%s1173 + $0x8] sm:$0xff]
        %v1176 = vld [vmem:[%s1173 + $0x10] sm:$0xff]
        %v1177 = vld [vmem:[%s1173 + $0x18] sm:$0xff]
        %v1178 = vld [vmem:[%s1173 + $0x20] sm:$0xff]
        %v1179 = vld [vmem:[%s1173 + $0x28] sm:$0xff]
        %v1180 = vld [vmem:[%s1173 + $0x30] sm:$0xff]
        %v1181 = vld [vmem:[%s1173 + $0x38] sm:$0xff]
        %s1182 = scalar_lea.vmem %s779, 16 [#allocation3]
        %v1183 = vld [vmem:[%s1182] sm:$0x1]
        %v1184 = vld [vmem:[%s1182 + $0x1] sm:$0x1]
        %v1187 = vlaneseq
        %v1188 = vshrl.u32 %v1187, 7
        %v1189 = vsub.s32 0, %v1188
        %v1190 = vrot.slane %v1183, %v1189
        %v1191 = vlaneseq
        %v1192 = vshrl.u32 %v1191, 7
        %v1193 = vsub.s32 0, %v1192
        %v1194 = vrot.slane %v1184, %v1193
        %1197 = vmatprep.subr.mxu0 0.0
        %1198 = vmatpush1.msra.mxu0 %v1174
        %1199 = vmatprep.subr.mxu0 0.0
        %1200 = vmatpush1.msra.mxu0 %v1175
        %1201 = vmatprep.subr.mxu0 0.0
        %1202 = vmatpush1.msra.mxu0 %v1176
        %1203 = vmatprep.subr.mxu0 0.0
        %1204 = vmatpush1.msra.mxu0 %v1177
        %1205 = vmatprep.subr.mxu0 0.0
        %1206 = vmatpush1.msra.mxu0 0.0
        %1207 = vmatprep.subr.mxu0 0.0
        %1208 = vmatpush1.msra.mxu0 0.0
        %1209 = vmatprep.subr.mxu0 0.0
        %1210 = vmatpush1.msra.mxu0 0.0
        %1211 = vmatprep.subr.mxu0 0.0
        %1212 = vmatpush1.msra.mxu0 0.0
        %1213 = vmatprep.subr.mxu0 0.0
        %1214 = vmatpush1.msra.mxu0 0.0
        %1215 = vmatprep.subr.mxu0 0.0
        %1216 = vmatpush1.msra.mxu0 0.0
        %1217 = vmatprep.subr.mxu0 0.0
        %1218 = vmatpush1.msra.mxu0 0.0
        %1219 = vmatprep.subr.mxu0 0.0
        %1220 = vmatpush1.msra.mxu0 0.0
        %1221 = vmatprep.subr.mxu0 0.0
        %1222 = vmatpush1.msra.mxu0 0.0
        %1223 = vmatprep.subr.mxu0 0.0
        %1224 = vmatpush1.msra.mxu0 0.0
        %1225 = vmatprep.subr.mxu0 0.0
        %1226 = vmatpush1.msra.mxu0 0.0
        %1227 = vmatprep.subr.mxu0 0.0
        %1228 = vmatpush1.msra.mxu0 0.0
        %1229 = vmatprep.subr.mxu0 0.0
        %1230 = vmatpush1.msra.mxu0 0.0
        %1231 = vmatprep.subr.mxu0 0.0
        %1232 = vmatpush1.msra.mxu0 0.0
        %1233 = vmatprep.subr.mxu0 0.0
        %1234 = vmatpush1.msra.mxu0 0.0
        %1235 = vmatprep.subr.mxu0 0.0
        %1236 = vmatpush1.msra.mxu0 0.0
        %1237 = vmatprep.subr.mxu0 0.0
        %1238 = vmatpush1.msra.mxu0 0.0
        %1239 = vmatprep.subr.mxu0 0.0
        %1240 = vmatpush1.msra.mxu0 0.0
        %1241 = vmatprep.subr.mxu0 0.0
        %1242 = vmatpush1.msra.mxu0 0.0
        %1243 = vmatprep.subr.mxu0 0.0
        %1244 = vmatpush1.msra.mxu0 0.0
        %1245 = vmatprep.subr.mxu0 0.0
        %1246 = vmatpush1.msra.mxu0 0.0
        %1247 = vmatprep.subr.mxu0 0.0
        %1248 = vmatpush1.msra.mxu0 0.0
        %1249 = vmatprep.subr.mxu0 0.0
        %1250 = vmatpush1.msra.mxu0 0.0
        %1251 = vmatprep.subr.mxu0 0.0
        %1252 = vmatpush1.msra.mxu0 0.0
        %1253 = vmatprep.subr.mxu0 0.0
        %1254 = vmatpush1.msra.mxu0 0.0
        %1255 = vmatprep.subr.mxu0 0.0
        %1256 = vmatpush1.msra.mxu0 0.0
        %1257 = vmatprep.subr.mxu0 0.0
        %1258 = vmatpush1.msra.mxu0 0.0
        %1259 = vmatprep.subr.mxu0 0.0
        %1260 = vmatpush1.msra.mxu0 0.0
        %1261 = vmatprep.mubr.f32.mxu0 0.0
        %1262 = vmatmul.mubr.f32.gmra.mrb[0].mxu0 %v864
        %v1263 = vpop.f32.mrb[0].mxu0
        %v1264 = vadd.f32 %v1190, %v1263
        %v1265 = vpop.f32.mrb[0].mxu0
        %1266 = vdwg.mxu0
        %1267 = vmatprep.subr.mxu0 0.0
        %1268 = vmatpush1.msra.mxu0 %v1178
        %1269 = vmatprep.subr.mxu0 0.0
        %1270 = vmatpush1.msra.mxu0 %v1179
        %1271 = vmatprep.subr.mxu0 0.0
        %1272 = vmatpush1.msra.mxu0 %v1180
        %1273 = vmatprep.subr.mxu0 0.0
        %1274 = vmatpush1.msra.mxu0 %v1181
        %1275 = vmatprep.subr.mxu0 0.0
        %1276 = vmatpush1.msra.mxu0 0.0
        %1277 = vmatprep.subr.mxu0 0.0
        %1278 = vmatpush1.msra.mxu0 0.0
        %1279 = vmatprep.subr.mxu0 0.0
        %1280 = vmatpush1.msra.mxu0 0.0
        %1281 = vmatprep.subr.mxu0 0.0
        %1282 = vmatpush1.msra.mxu0 0.0
        %1283 = vmatprep.subr.mxu0 0.0
        %1284 = vmatpush1.msra.mxu0 0.0
        %1285 = vmatprep.subr.mxu0 0.0
        %1286 = vmatpush1.msra.mxu0 0.0
        %1287 = vmatprep.subr.mxu0 0.0
        %1288 = vmatpush1.msra.mxu0 0.0
        %1289 = vmatprep.subr.mxu0 0.0
        %1290 = vmatpush1.msra.mxu0 0.0
        %1291 = vmatprep.subr.mxu0 0.0
        %1292 = vmatpush1.msra.mxu0 0.0
        %1293 = vmatprep.subr.mxu0 0.0
        %1294 = vmatpush1.msra.mxu0 0.0
        %1295 = vmatprep.subr.mxu0 0.0
        %1296 = vmatpush1.msra.mxu0 0.0
        %1297 = vmatprep.subr.mxu0 0.0
        %1298 = vmatpush1.msra.mxu0 0.0
        %1299 = vmatprep.subr.mxu0 0.0
        %1300 = vmatpush1.msra.mxu0 0.0
        %1301 = vmatprep.subr.mxu0 0.0
        %1302 = vmatpush1.msra.mxu0 0.0
        %1303 = vmatprep.subr.mxu0 0.0
        %1304 = vmatpush1.msra.mxu0 0.0
        %1305 = vmatprep.subr.mxu0 0.0
        %1306 = vmatpush1.msra.mxu0 0.0
        %1307 = vmatprep.subr.mxu0 0.0
        %1308 = vmatpush1.msra.mxu0 0.0
        %1309 = vmatprep.subr.mxu0 0.0
        %1310 = vmatpush1.msra.mxu0 0.0
        %1311 = vmatprep.subr.mxu0 0.0
        %1312 = vmatpush1.msra.mxu0 0.0
        %1313 = vmatprep.subr.mxu0 0.0
        %1314 = vmatpush1.msra.mxu0 0.0
        %1315 = vmatprep.subr.mxu0 0.0
        %1316 = vmatpush1.msra.mxu0 0.0
        %1317 = vmatprep.subr.mxu0 0.0
        %1318 = vmatpush1.msra.mxu0 0.0
        %1319 = vmatprep.subr.mxu0 0.0
        %1320 = vmatpush1.msra.mxu0 0.0
        %1321 = vmatprep.subr.mxu0 0.0
        %1322 = vmatpush1.msra.mxu0 0.0
        %1323 = vmatprep.subr.mxu0 0.0
        %1324 = vmatpush1.msra.mxu0 0.0
        %1325 = vmatprep.subr.mxu0 0.0
        %1326 = vmatpush1.msra.mxu0 0.0
        %1327 = vmatprep.subr.mxu0 0.0
        %1328 = vmatpush1.msra.mxu0 0.0
        %1329 = vmatprep.subr.mxu0 0.0
        %1330 = vmatpush1.msra.mxu0 0.0
        %1331 = vmatprep.mubr.f32.mxu0 0.0
        %1332 = vmatmul.mubr.f32.gmra.mrb[0].mxu0 %v937
        %v1333 = vpop.f32.mrb[0].mxu0
        %v1334 = vadd.f32 %v1194, %v1333
        %v1335 = vpop.f32.mrb[0].mxu0
        %1336 = vdwg.mxu0
        %vm1337 = vcmask 64512
        %v1339 = vsel %vm1337, %v933, 0
        %v1342 = vsel %vm1337, %v1100, 0
        %1344 = vmatprep.subr.mxu0 0.0
        %1345 = vmatpush1.xpose.msra.mxu0 %v1342
        %1346 = vmatprep.subr.mxu0 0.0
        %1347 = vmatpush1.xpose.msra.mxu0 0.0
        %1348 = vmatprep.subr.mxu0 0.0
        %1349 = vmatpush1.xpose.msra.mxu0 0.0
        %1350 = vmatprep.subr.mxu0 0.0
        %1351 = vmatpush1.xpose.msra.mxu0 0.0
        %1352 = vmatprep.subr.mxu0 0.0
        %1353 = vmatpush1.xpose.msra.mxu0 0.0
        %1354 = vmatprep.subr.mxu0 0.0
        %1355 = vmatpush1.xpose.msra.mxu0 0.0
        %1356 = vmatprep.subr.mxu0 0.0
        %1357 = vmatpush1.xpose.msra.mxu0 0.0
        %1358 = vmatprep.subr.mxu0 0.0
        %1359 = vmatpush1.xpose.msra.mxu0 0.0
        %1360 = vmatprep.subr.mxu0 0.0
        %1361 = vmatpush1.xpose.msra.mxu0 0.0
        %1362 = vmatprep.subr.mxu0 0.0
        %1363 = vmatpush1.xpose.msra.mxu0 0.0
        %1364 = vmatprep.subr.mxu0 0.0
        %1365 = vmatpush1.xpose.msra.mxu0 0.0
        %1366 = vmatprep.subr.mxu0 0.0
        %1367 = vmatpush1.xpose.msra.mxu0 0.0
        %1368 = vmatprep.subr.mxu0 0.0
        %1369 = vmatpush1.xpose.msra.mxu0 0.0
        %1370 = vmatprep.subr.mxu0 0.0
        %1371 = vmatpush1.xpose.msra.mxu0 0.0
        %1372 = vmatprep.subr.mxu0 0.0
        %1373 = vmatpush1.xpose.msra.mxu0 0.0
        %1374 = vmatprep.subr.mxu0 0.0
        %1375 = vmatpush1.xpose.msra.mxu0 0.0
        %1376 = vmatprep.subr.mxu0 0.0
        %1377 = vmatpush1.xpose.msra.mxu0 0.0
        %1378 = vmatprep.subr.mxu0 0.0
        %1379 = vmatpush1.xpose.msra.mxu0 0.0
        %1380 = vmatprep.subr.mxu0 0.0
        %1381 = vmatpush1.xpose.msra.mxu0 0.0
        %1382 = vmatprep.subr.mxu0 0.0
        %1383 = vmatpush1.xpose.msra.mxu0 0.0
        %1384 = vmatprep.subr.mxu0 0.0
        %1385 = vmatpush1.xpose.msra.mxu0 0.0
        %1386 = vmatprep.subr.mxu0 0.0
        %1387 = vmatpush1.xpose.msra.mxu0 0.0
        %1388 = vmatprep.subr.mxu0 0.0
        %1389 = vmatpush1.xpose.msra.mxu0 0.0
        %1390 = vmatprep.subr.mxu0 0.0
        %1391 = vmatpush1.xpose.msra.mxu0 0.0
        %1392 = vmatprep.subr.mxu0 0.0
        %1393 = vmatpush1.xpose.msra.mxu0 0.0
        %1394 = vmatprep.subr.mxu0 0.0
        %1395 = vmatpush1.xpose.msra.mxu0 0.0
        %1396 = vmatprep.subr.mxu0 0.0
        %1397 = vmatpush1.xpose.msra.mxu0 0.0
        %1398 = vmatprep.subr.mxu0 0.0
        %1399 = vmatpush1.xpose.msra.mxu0 0.0
        %1400 = vmatprep.subr.mxu0 0.0
        %1401 = vmatpush1.xpose.msra.mxu0 0.0
        %1402 = vmatprep.subr.mxu0 0.0
        %1403 = vmatpush1.xpose.msra.mxu0 0.0
        %1404 = vmatprep.subr.mxu0 0.0
        %1405 = vmatpush1.xpose.msra.mxu0 0.0
        %1406 = vmatprep.subr.mxu0 0.0
        %1407 = vmatpush1.xpose.msra.mxu0 0.0
        %1408 = vmatprep.mubr.f32.mxu0 0.0
        %1409 = vmatmul.mubr.f32.gmra.mrb[0].mxu0 %v1339
        %v1410 = vpop.f32.mrb[0].mxu0
        %v1411 = vadd.f32 0.0, %v1410
        %v1412 = vpop.f32.mrb[0].mxu0
        %1413 = vdwg.mxu0
        %v1415 = vsel %vm1337, %v1006, 0
        %v1418 = vsel %vm1337, %v1170, 0
        %1420 = vmatprep.subr.mxu0 0.0
        %1421 = vmatpush1.xpose.msra.mxu0 %v1418
        %1422 = vmatprep.subr.mxu0 0.0
        %1423 = vmatpush1.xpose.msra.mxu0 0.0
        %1424 = vmatprep.subr.mxu0 0.0
        %1425 = vmatpush1.xpose.msra.mxu0 0.0
        %1426 = vmatprep.subr.mxu0 0.0
        %1427 = vmatpush1.xpose.msra.mxu0 0.0
        %1428 = vmatprep.subr.mxu0 0.0
        %1429 = vmatpush1.xpose.msra.mxu0 0.0
        %1430 = vmatprep.subr.mxu0 0.0
        %1431 = vmatpush1.xpose.msra.mxu0 0.0
        %1432 = vmatprep.subr.mxu0 0.0
        %1433 = vmatpush1.xpose.msra.mxu0 0.0
        %1434 = vmatprep.subr.mxu0 0.0
        %1435 = vmatpush1.xpose.msra.mxu0 0.0
        %1436 = vmatprep.subr.mxu0 0.0
        %1437 = vmatpush1.xpose.msra.mxu0 0.0
        %1438 = vmatprep.subr.mxu0 0.0
        %1439 = vmatpush1.xpose.msra.mxu0 0.0
        %1440 = vmatprep.subr.mxu0 0.0
        %1441 = vmatpush1.xpose.msra.mxu0 0.0
        %1442 = vmatprep.subr.mxu0 0.0
        %1443 = vmatpush1.xpose.msra.mxu0 0.0
        %1444 = vmatprep.subr.mxu0 0.0
        %1445 = vmatpush1.xpose.msra.mxu0 0.0
        %1446 = vmatprep.subr.mxu0 0.0
        %1447 = vmatpush1.xpose.msra.mxu0 0.0
        %1448 = vmatprep.subr.mxu0 0.0
        %1449 = vmatpush1.xpose.msra.mxu0 0.0
        %1450 = vmatprep.subr.mxu0 0.0
        %1451 = vmatpush1.xpose.msra.mxu0 0.0
        %1452 = vmatprep.subr.mxu0 0.0
        %1453 = vmatpush1.xpose.msra.mxu0 0.0
        %1454 = vmatprep.subr.mxu0 0.0
        %1455 = vmatpush1.xpose.msra.mxu0 0.0
        %1456 = vmatprep.subr.mxu0 0.0
        %1457 = vmatpush1.xpose.msra.mxu0 0.0
        %1458 = vmatprep.subr.mxu0 0.0
        %1459 = vmatpush1.xpose.msra.mxu0 0.0
        %1460 = vmatprep.subr.mxu0 0.0
        %1461 = vmatpush1.xpose.msra.mxu0 0.0
        %1462 = vmatprep.subr.mxu0 0.0
        %1463 = vmatpush1.xpose.msra.mxu0 0.0
        %1464 = vmatprep.subr.mxu0 0.0
        %1465 = vmatpush1.xpose.msra.mxu0 0.0
        %1466 = vmatprep.subr.mxu0 0.0
        %1467 = vmatpush1.xpose.msra.mxu0 0.0
        %1468 = vmatprep.subr.mxu0 0.0
        %1469 = vmatpush1.xpose.msra.mxu0 0.0
        %1470 = vmatprep.subr.mxu0 0.0
        %1471 = vmatpush1.xpose.msra.mxu0 0.0
        %1472 = vmatprep.subr.mxu0 0.0
        %1473 = vmatpush1.xpose.msra.mxu0 0.0
        %1474 = vmatprep.subr.mxu0 0.0
        %1475 = vmatpush1.xpose.msra.mxu0 0.0
        %1476 = vmatprep.subr.mxu0 0.0
        %1477 = vmatpush1.xpose.msra.mxu0 0.0
        %1478 = vmatprep.subr.mxu0 0.0
        %1479 = vmatpush1.xpose.msra.mxu0 0.0
        %1480 = vmatprep.subr.mxu0 0.0
        %1481 = vmatpush1.xpose.msra.mxu0 0.0
        %1482 = vmatprep.subr.mxu0 0.0
        %1483 = vmatpush1.xpose.msra.mxu0 0.0
        %1484 = vmatprep.mubr.f32.mxu0 0.0
        %1485 = vmatmul.mubr.f32.gmra.mrb[0].mxu0 %v1415
        %v1486 = vpop.f32.mrb[0].mxu0
        %v1487 = vadd.f32 0.0, %v1486
        %v1488 = vpop.f32.mrb[0].mxu0
        %1489 = vdwg.mxu0
        %v1490 = vmul.f32 %v1411, 0.35355338
        %v1491 = vmul.f32 %v1487, 0.35355338
        %v1492 = vsel %vm1337, %v1490, -inf
        %1493 = vmax.xlane.f32.xlu0 %v1492
        %v1494 = vpop.xlane.xlu0 %1493
        %v1495 = vsel %vm1337, %v1491, -inf
        %1496 = vmax.xlane.f32.xlu0 %v1495
        %v1497 = vpop.xlane.xlu0 %1496
        %v1498 = vsub.f32 %v1490, %v1494
        %v1499 = vsub.f32 %v1491, %v1497
        %v1500 = vmul.f32 %v1498, 1.442695
        %v1501 = vpow.pop %v1500
        %v1502 = vmul.f32 %v1499, 1.442695
        %v1503 = vpow.pop %v1502
        %v1504 = vsel %vm1337, %v1501, 0.0
        %1505 = vadd.xlane.f32.xlu0 %v1504
        %v1506 = vpop.xlane.xlu0 %1505
        %v1507 = vsel %vm1337, %v1503, 0.0
        %1508 = vadd.xlane.f32.xlu0 %v1507
        %v1509 = vpop.xlane.xlu0 %1508
        %v1510 = vrcp.pop %v1506
        %v1511 = vrcp.pop %v1509
        %v1512 = vmul.f32 %v1501, %v1510
        %v1513 = vmul.f32 %v1503, %v1511
        %1514 = vst.msk [vmem:[%s823] sm:$0xff] %vm1337, %v1512
        %1515 = vst.msk [vmem:[%s823 + $0x20] sm:$0xff] %vm1337, %v1513
        %v1517 = vsel %vm1337, %v1512, 0
        %1519 = vmatprep.subr.mxu0 0.0
        %1520 = vmatpush1.msra.mxu0 %v1264
        %1521 = vmatprep.subr.mxu0 0.0
        %1522 = vmatpush1.msra.mxu0 0.0
        %1523 = vmatprep.subr.mxu0 0.0
        %1524 = vmatpush1.msra.mxu0 0.0
        %1525 = vmatprep.subr.mxu0 0.0
        %1526 = vmatpush1.msra.mxu0 0.0
        %1527 = vmatprep.subr.mxu0 0.0
        %1528 = vmatpush1.msra.mxu0 0.0
        %1529 = vmatprep.subr.mxu0 0.0
        %1530 = vmatpush1.msra.mxu0 0.0
        %1531 = vmatprep.subr.mxu0 0.0
        %1532 = vmatpush1.msra.mxu0 0.0
        %1533 = vmatprep.subr.mxu0 0.0
        %1534 = vmatpush1.msra.mxu0 0.0
        %1535 = vmatprep.subr.mxu0 0.0
        %1536 = vmatpush1.msra.mxu0 0.0
        %1537 = vmatprep.subr.mxu0 0.0
        %1538 = vmatpush1.msra.mxu0 0.0
        %1539 = vmatprep.subr.mxu0 0.0
        %1540 = vmatpush1.msra.mxu0 0.0
        %1541 = vmatprep.subr.mxu0 0.0
        %1542 = vmatpush1.msra.mxu0 0.0
        %1543 = vmatprep.subr.mxu0 0.0
        %1544 = vmatpush1.msra.mxu0 0.0
        %1545 = vmatprep.subr.mxu0 0.0
        %1546 = vmatpush1.msra.mxu0 0.0
        %1547 = vmatprep.subr.mxu0 0.0
        %1548 = vmatpush1.msra.mxu0 0.0
        %1549 = vmatprep.subr.mxu0 0.0
        %1550 = vmatpush1.msra.mxu0 0.0
        %1551 = vmatprep.subr.mxu0 0.0
        %1552 = vmatpush1.msra.mxu0 0.0
        %1553 = vmatprep.subr.mxu0 0.0
        %1554 = vmatpush1.msra.mxu0 0.0
        %1555 = vmatprep.subr.mxu0 0.0
        %1556 = vmatpush1.msra.mxu0 0.0
        %1557 = vmatprep.subr.mxu0 0.0
        %1558 = vmatpush1.msra.mxu0 0.0
        %1559 = vmatprep.subr.mxu0 0.0
        %1560 = vmatpush1.msra.mxu0 0.0
        %1561 = vmatprep.subr.mxu0 0.0
        %1562 = vmatpush1.msra.mxu0 0.0
        %1563 = vmatprep.subr.mxu0 0.0
        %1564 = vmatpush1.msra.mxu0 0.0
        %1565 = vmatprep.subr.mxu0 0.0
        %1566 = vmatpush1.msra.mxu0 0.0
        %1567 = vmatprep.subr.mxu0 0.0
        %1568 = vmatpush1.msra.mxu0 0.0
        %1569 = vmatprep.subr.mxu0 0.0
        %1570 = vmatpush1.msra.mxu0 0.0
        %1571 = vmatprep.subr.mxu0 0.0
        %1572 = vmatpush1.msra.mxu0 0.0
        %1573 = vmatprep.subr.mxu0 0.0
        %1574 = vmatpush1.msra.mxu0 0.0
        %1575 = vmatprep.subr.mxu0 0.0
        %1576 = vmatpush1.msra.mxu0 0.0
        %1577 = vmatprep.subr.mxu0 0.0
        %1578 = vmatpush1.msra.mxu0 0.0
        %1579 = vmatprep.subr.mxu0 0.0
        %1580 = vmatpush1.msra.mxu0 0.0
        %1581 = vmatprep.subr.mxu0 0.0
        %1582 = vmatpush1.msra.mxu0 0.0
        %1583 = vmatprep.mubr.f32.mxu0 0.0
        %1584 = vmatmul.mubr.f32.gmra.mrb[0].mxu0 %v1517
        %v1585 = vpop.f32.mrb[0].mxu0
        %v1586 = vadd.f32 0.0, %v1585
        %v1587 = vpop.f32.mrb[0].mxu0
        %1588 = vdwg.mxu0
        %v1590 = vsel %vm1337, %v1513, 0
        %1592 = vmatprep.subr.mxu0 0.0
        %1593 = vmatpush1.msra.mxu0 %v1334
        %1594 = vmatprep.subr.mxu0 0.0
        %1595 = vmatpush1.msra.mxu0 0.0
        %1596 = vmatprep.subr.mxu0 0.0
        %1597 = vmatpush1.msra.mxu0 0.0
        %1598 = vmatprep.subr.mxu0 0.0
        %1599 = vmatpush1.msra.mxu0 0.0
        %1600 = vmatprep.subr.mxu0 0.0
        %1601 = vmatpush1.msra.mxu0 0.0
        %1602 = vmatprep.subr.mxu0 0.0
        %1603 = vmatpush1.msra.mxu0 0.0
        %1604 = vmatprep.subr.mxu0 0.0
        %1605 = vmatpush1.msra.mxu0 0.0
        %1606 = vmatprep.subr.mxu0 0.0
        %1607 = vmatpush1.msra.mxu0 0.0
        %1608 = vmatprep.subr.mxu0 0.0
        %1609 = vmatpush1.msra.mxu0 0.0
        %1610 = vmatprep.subr.mxu0 0.0
        %1611 = vmatpush1.msra.mxu0 0.0
        %1612 = vmatprep.subr.mxu0 0.0
        %1613 = vmatpush1.msra.mxu0 0.0
        %1614 = vmatprep.subr.mxu0 0.0
        %1615 = vmatpush1.msra.mxu0 0.0
        %1616 = vmatprep.subr.mxu0 0.0
        %1617 = vmatpush1.msra.mxu0 0.0
        %1618 = vmatprep.subr.mxu0 0.0
        %1619 = vmatpush1.msra.mxu0 0.0
        %1620 = vmatprep.subr.mxu0 0.0
        %1621 = vmatpush1.msra.mxu0 0.0
        %1622 = vmatprep.subr.mxu0 0.0
        %1623 = vmatpush1.msra.mxu0 0.0
        %1624 = vmatprep.subr.mxu0 0.0
        %1625 = vmatpush1.msra.mxu0 0.0
        %1626 = vmatprep.subr.mxu0 0.0
        %1627 = vmatpush1.msra.mxu0 0.0
        %1628 = vmatprep.subr.mxu0 0.0
        %1629 = vmatpush1.msra.mxu0 0.0
        %1630 = vmatprep.subr.mxu0 0.0
        %1631 = vmatpush1.msra.mxu0 0.0
        %1632 = vmatprep.subr.mxu0 0.0
        %1633 = vmatpush1.msra.mxu0 0.0
        %1634 = vmatprep.subr.mxu0 0.0
        %1635 = vmatpush1.msra.mxu0 0.0
        %1636 = vmatprep.subr.mxu0 0.0
        %1637 = vmatpush1.msra.mxu0 0.0
        %1638 = vmatprep.subr.mxu0 0.0
        %1639 = vmatpush1.msra.mxu0 0.0
        %1640 = vmatprep.subr.mxu0 0.0
        %1641 = vmatpush1.msra.mxu0 0.0
        %1642 = vmatprep.subr.mxu0 0.0
        %1643 = vmatpush1.msra.mxu0 0.0
        %1644 = vmatprep.subr.mxu0 0.0
        %1645 = vmatpush1.msra.mxu0 0.0
        %1646 = vmatprep.subr.mxu0 0.0
        %1647 = vmatpush1.msra.mxu0 0.0
        %1648 = vmatprep.subr.mxu0 0.0
        %1649 = vmatpush1.msra.mxu0 0.0
        %1650 = vmatprep.subr.mxu0 0.0
        %1651 = vmatpush1.msra.mxu0 0.0
        %1652 = vmatprep.subr.mxu0 0.0
        %1653 = vmatpush1.msra.mxu0 0.0
        %1654 = vmatprep.subr.mxu0 0.0
        %1655 = vmatpush1.msra.mxu0 0.0
        %1656 = vmatprep.mubr.f32.mxu0 0.0
        %1657 = vmatmul.mubr.f32.gmra.mrb[0].mxu0 %v1590
        %v1658 = vpop.f32.mrb[0].mxu0
        %v1659 = vadd.f32 0.0, %v1658
        %v1660 = vpop.f32.mrb[0].mxu0
        %1661 = vdwg.mxu0
        %v1662 = vld [vmem:[%s3] sm:$0xff]
        %s1663 = scalar_lea.vmem %s772, 64 [#allocation2]
        %v1664 = vld [vmem:[%s1663] sm:$0xff]
        %v1665 = vld [vmem:[%s1663 + $0x8] sm:$0xff]
        %v1666 = vld [vmem:[%s1663 + $0x10] sm:$0xff]
        %v1667 = vld [vmem:[%s1663 + $0x18] sm:$0xff]
        %v1668 = vld [vmem:[%s1663 + $0x20] sm:$0xff]
        %v1669 = vld [vmem:[%s1663 + $0x28] sm:$0xff]
        %v1670 = vld [vmem:[%s1663 + $0x30] sm:$0xff]
        %v1671 = vld [vmem:[%s1663 + $0x38] sm:$0xff]
        %s1672 = scalar_lea.vmem %s779, 2 [#allocation3]
        %v1673 = vld [vmem:[%s1672] sm:$0x1]
        %v1674 = vld [vmem:[%s1672 + $0x1] sm:$0x1]
        %v1677 = vlaneseq
        %v1678 = vshrl.u32 %v1677, 7
        %v1679 = vsub.s32 0, %v1678
        %v1680 = vrot.slane %v1673, %v1679
        %v1681 = vlaneseq
        %v1682 = vshrl.u32 %v1681, 7
        %v1683 = vsub.s32 0, %v1682
        %v1684 = vrot.slane %v1674, %v1683
        %1687 = vmatprep.subr.mxu0 0.0
        %1688 = vmatpush1.msra.mxu0 %v1664
        %1689 = vmatprep.subr.mxu0 0.0
        %1690 = vmatpush1.msra.mxu0 %v1665
        %1691 = vmatprep.subr.mxu0 0.0
        %1692 = vmatpush1.msra.mxu0 %v1666
        %1693 = vmatprep.subr.mxu0 0.0
        %1694 = vmatpush1.msra.mxu0 %v1667
        %1695 = vmatprep.subr.mxu0 0.0
        %1696 = vmatpush1.msra.mxu0 0.0
        %1697 = vmatprep.subr.mxu0 0.0
        %1698 = vmatpush1.msra.mxu0 0.0
        %1699 = vmatprep.subr.mxu0 0.0
        %1700 = vmatpush1.msra.mxu0 0.0
        %1701 = vmatprep.subr.mxu0 0.0
        %1702 = vmatpush1.msra.mxu0 0.0
        %1703 = vmatprep.subr.mxu0 0.0
        %1704 = vmatpush1.msra.mxu0 0.0
        %1705 = vmatprep.subr.mxu0 0.0
        %1706 = vmatpush1.msra.mxu0 0.0
        %1707 = vmatprep.subr.mxu0 0.0
        %1708 = vmatpush1.msra.mxu0 0.0
        %1709 = vmatprep.subr.mxu0 0.0
        %1710 = vmatpush1.msra.mxu0 0.0
        %1711 = vmatprep.subr.mxu0 0.0
        %1712 = vmatpush1.msra.mxu0 0.0
        %1713 = vmatprep.subr.mxu0 0.0
        %1714 = vmatpush1.msra.mxu0 0.0
        %1715 = vmatprep.subr.mxu0 0.0
        %1716 = vmatpush1.msra.mxu0 0.0
        %1717 = vmatprep.subr.mxu0 0.0
        %1718 = vmatpush1.msra.mxu0 0.0
        %1719 = vmatprep.subr.mxu0 0.0
        %1720 = vmatpush1.msra.mxu0 0.0
        %1721 = vmatprep.subr.mxu0 0.0
        %1722 = vmatpush1.msra.mxu0 0.0
        %1723 = vmatprep.subr.mxu0 0.0
        %1724 = vmatpush1.msra.mxu0 0.0
        %1725 = vmatprep.subr.mxu0 0.0
        %1726 = vmatpush1.msra.mxu0 0.0
        %1727 = vmatprep.subr.mxu0 0.0
        %1728 = vmatpush1.msra.mxu0 0.0
        %1729 = vmatprep.subr.mxu0 0.0
        %1730 = vmatpush1.msra.mxu0 0.0
        %1731 = vmatprep.subr.mxu0 0.0
        %1732 = vmatpush1.msra.mxu0 0.0
        %1733 = vmatprep.subr.mxu0 0.0
        %1734 = vmatpush1.msra.mxu0 0.0
        %1735 = vmatprep.subr.mxu0 0.0
        %1736 = vmatpush1.msra.mxu0 0.0
        %1737 = vmatprep.subr.mxu0 0.0
        %1738 = vmatpush1.msra.mxu0 0.0
        %1739 = vmatprep.subr.mxu0 0.0
        %1740 = vmatpush1.msra.mxu0 0.0
        %1741 = vmatprep.subr.mxu0 0.0
        %1742 = vmatpush1.msra.mxu0 0.0
        %1743 = vmatprep.subr.mxu0 0.0
        %1744 = vmatpush1.msra.mxu0 0.0
        %1745 = vmatprep.subr.mxu0 0.0
        %1746 = vmatpush1.msra.mxu0 0.0
        %1747 = vmatprep.subr.mxu0 0.0
        %1748 = vmatpush1.msra.mxu0 0.0
        %1749 = vmatprep.subr.mxu0 0.0
        %1750 = vmatpush1.msra.mxu0 0.0
        %1751 = vmatprep.mubr.f32.mxu0 0.0
        %1752 = vmatmul.mubr.f32.gmra.mrb[0].mxu0 %v864
        %v1753 = vpop.f32.mrb[0].mxu0
        %v1754 = vadd.f32 %v1680, %v1753
        %v1755 = vpop.f32.mrb[0].mxu0
        %1756 = vdwg.mxu0
        %1757 = vmatprep.subr.mxu0 0.0
        %1758 = vmatpush1.msra.mxu0 %v1668
        %1759 = vmatprep.subr.mxu0 0.0
        %1760 = vmatpush1.msra.mxu0 %v1669
        %1761 = vmatprep.subr.mxu0 0.0
        %1762 = vmatpush1.msra.mxu0 %v1670
        %1763 = vmatprep.subr.mxu0 0.0
        %1764 = vmatpush1.msra.mxu0 %v1671
        %1765 = vmatprep.subr.mxu0 0.0
        %1766 = vmatpush1.msra.mxu0 0.0
        %1767 = vmatprep.subr.mxu0 0.0
        %1768 = vmatpush1.msra.mxu0 0.0
        %1769 = vmatprep.subr.mxu0 0.0
        %1770 = vmatpush1.msra.mxu0 0.0
        %1771 = vmatprep.subr.mxu0 0.0
        %1772 = vmatpush1.msra.mxu0 0.0
        %1773 = vmatprep.subr.mxu0 0.0
        %1774 = vmatpush1.msra.mxu0 0.0
        %1775 = vmatprep.subr.mxu0 0.0
        %1776 = vmatpush1.msra.mxu0 0.0
        %1777 = vmatprep.subr.mxu0 0.0
        %1778 = vmatpush1.msra.mxu0 0.0
        %1779 = vmatprep.subr.mxu0 0.0
        %1780 = vmatpush1.msra.mxu0 0.0
        %1781 = vmatprep.subr.mxu0 0.0
        %1782 = vmatpush1.msra.mxu0 0.0
        %1783 = vmatprep.subr.mxu0 0.0
        %1784 = vmatpush1.msra.mxu0 0.0
        %1785 = vmatprep.subr.mxu0 0.0
        %1786 = vmatpush1.msra.mxu0 0.0
        %1787 = vmatprep.subr.mxu0 0.0
        %1788 = vmatpush1.msra.mxu0 0.0
        %1789 = vmatprep.subr.mxu0 0.0
        %1790 = vmatpush1.msra.mxu0 0.0
        %1791 = vmatprep.subr.mxu0 0.0
        %1792 = vmatpush1.msra.mxu0 0.0
        %1793 = vmatprep.subr.mxu0 0.0
        %1794 = vmatpush1.msra.mxu0 0.0
        %1795 = vmatprep.subr.mxu0 0.0
        %1796 = vmatpush1.msra.mxu0 0.0
        %1797 = vmatprep.subr.mxu0 0.0
        %1798 = vmatpush1.msra.mxu0 0.0
        %1799 = vmatprep.subr.mxu0 0.0
        %1800 = vmatpush1.msra.mxu0 0.0
        %1801 = vmatprep.subr.mxu0 0.0
        %1802 = vmatpush1.msra.mxu0 0.0
        %1803 = vmatprep.subr.mxu0 0.0
        %1804 = vmatpush1.msra.mxu0 0.0
        %1805 = vmatprep.subr.mxu0 0.0
        %1806 = vmatpush1.msra.mxu0 0.0
        %1807 = vmatprep.subr.mxu0 0.0
        %1808 = vmatpush1.msra.mxu0 0.0
        %1809 = vmatprep.subr.mxu0 0.0
        %1810 = vmatpush1.msra.mxu0 0.0
        %1811 = vmatprep.subr.mxu0 0.0
        %1812 = vmatpush1.msra.mxu0 0.0
        %1813 = vmatprep.subr.mxu0 0.0
        %1814 = vmatpush1.msra.mxu0 0.0
        %1815 = vmatprep.subr.mxu0 0.0
        %1816 = vmatpush1.msra.mxu0 0.0
        %1817 = vmatprep.subr.mxu0 0.0
        %1818 = vmatpush1.msra.mxu0 0.0
        %1819 = vmatprep.subr.mxu0 0.0
        %1820 = vmatpush1.msra.mxu0 0.0
        %1821 = vmatprep.mubr.f32.mxu0 0.0
        %1822 = vmatmul.mubr.f32.gmra.mrb[0].mxu0 %v937
        %v1823 = vpop.f32.mrb[0].mxu0
        %v1824 = vadd.f32 %v1684, %v1823
        %v1825 = vpop.f32.mrb[0].mxu0
        %1826 = vdwg.mxu0
        %s1827 = scalar_lea.vmem %s772, 320 [#allocation2]
        %v1828 = vld [vmem:[%s1827] sm:$0xff]
        %v1829 = vld [vmem:[%s1827 + $0x8] sm:$0xff]
        %v1830 = vld [vmem:[%s1827 + $0x10] sm:$0xff]
        %v1831 = vld [vmem:[%s1827 + $0x18] sm:$0xff]
        %v1832 = vld [vmem:[%s1827 + $0x20] sm:$0xff]
        %v1833 = vld [vmem:[%s1827 + $0x28] sm:$0xff]
        %v1834 = vld [vmem:[%s1827 + $0x30] sm:$0xff]
        %v1835 = vld [vmem:[%s1827 + $0x38] sm:$0xff]
        %s1836 = scalar_lea.vmem %s779, 10 [#allocation3]
        %v1837 = vld [vmem:[%s1836] sm:$0x1]
        %v1838 = vld [vmem:[%s1836 + $0x1] sm:$0x1]
        %v1841 = vlaneseq
        %v1842 = vshrl.u32 %v1841, 7
        %v1843 = vsub.s32 0, %v1842
        %v1844 = vrot.slane %v1837, %v1843
        %v1845 = vlaneseq
        %v1846 = vshrl.u32 %v1845, 7
        %v1847 = vsub.s32 0, %v1846
        %v1848 = vrot.slane %v1838, %v1847
        %1851 = vmatprep.subr.mxu0 0.0
        %1852 = vmatpush1.msra.mxu0 %v1828
        %1853 = vmatprep.subr.mxu0 0.0
        %1854 = vmatpush1.msra.mxu0 %v1829
        %1855 = vmatprep.subr.mxu0 0.0
        %1856 = vmatpush1.msra.mxu0 %v1830
        %1857 = vmatprep.subr.mxu0 0.0
        %1858 = vmatpush1.msra.mxu0 %v1831
        %1859 = vmatprep.subr.mxu0 0.0
        %1860 = vmatpush1.msra.mxu0 0.0
        %1861 = vmatprep.subr.mxu0 0.0
        %1862 = vmatpush1.msra.mxu0 0.0
        %1863 = vmatprep.subr.mxu0 0.0
        %1864 = vmatpush1.msra.mxu0 0.0
        %1865 = vmatprep.subr.mxu0 0.0
        %1866 = vmatpush1.msra.mxu0 0.0
        %1867 = vmatprep.subr.mxu0 0.0
        %1868 = vmatpush1.msra.mxu0 0.0
        %1869 = vmatprep.subr.mxu0 0.0
        %1870 = vmatpush1.msra.mxu0 0.0
        %1871 = vmatprep.subr.mxu0 0.0
        %1872 = vmatpush1.msra.mxu0 0.0
        %1873 = vmatprep.subr.mxu0 0.0
        %1874 = vmatpush1.msra.mxu0 0.0
        %1875 = vmatprep.subr.mxu0 0.0
        %1876 = vmatpush1.msra.mxu0 0.0
        %1877 = vmatprep.subr.mxu0 0.0
        %1878 = vmatpush1.msra.mxu0 0.0
        %1879 = vmatprep.subr.mxu0 0.0
        %1880 = vmatpush1.msra.mxu0 0.0
        %1881 = vmatprep.subr.mxu0 0.0
        %1882 = vmatpush1.msra.mxu0 0.0
        %1883 = vmatprep.subr.mxu0 0.0
        %1884 = vmatpush1.msra.mxu0 0.0
        %1885 = vmatprep.subr.mxu0 0.0
        %1886 = vmatpush1.msra.mxu0 0.0
        %1887 = vmatprep.subr.mxu0 0.0
        %1888 = vmatpush1.msra.mxu0 0.0
        %1889 = vmatprep.subr.mxu0 0.0
        %1890 = vmatpush1.msra.mxu0 0.0
        %1891 = vmatprep.subr.mxu0 0.0
        %1892 = vmatpush1.msra.mxu0 0.0
        %1893 = vmatprep.subr.mxu0 0.0
        %1894 = vmatpush1.msra.mxu0 0.0
        %1895 = vmatprep.subr.mxu0 0.0
        %1896 = vmatpush1.msra.mxu0 0.0
        %1897 = vmatprep.subr.mxu0 0.0
        %1898 = vmatpush1.msra.mxu0 0.0
        %1899 = vmatprep.subr.mxu0 0.0
        %1900 = vmatpush1.msra.mxu0 0.0
        %1901 = vmatprep.subr.mxu0 0.0
        %1902 = vmatpush1.msra.mxu0 0.0
        %1903 = vmatprep.subr.mxu0 0.0
        %1904 = vmatpush1.msra.mxu0 0.0
        %1905 = vmatprep.subr.mxu0 0.0
        %1906 = vmatpush1.msra.mxu0 0.0
        %1907 = vmatprep.subr.mxu0 0.0
        %1908 = vmatpush1.msra.mxu0 0.0
        %1909 = vmatprep.subr.mxu0 0.0
        %1910 = vmatpush1.msra.mxu0 0.0
        %1911 = vmatprep.subr.mxu0 0.0
        %1912 = vmatpush1.msra.mxu0 0.0
        %1913 = vmatprep.subr.mxu0 0.0
        %1914 = vmatpush1.msra.mxu0 0.0
        %1915 = vmatprep.mubr.f32.mxu0 0.0
        %1916 = vmatmul.mubr.f32.gmra.mrb[0].mxu0 %v864
        %v1917 = vpop.f32.mrb[0].mxu0
        %v1918 = vadd.f32 %v1844, %v1917
        %v1919 = vpop.f32.mrb[0].mxu0
        %1920 = vdwg.mxu0
        %1921 = vmatprep.subr.mxu0 0.0
        %1922 = vmatpush1.msra.mxu0 %v1832
        %1923 = vmatprep.subr.mxu0 0.0
        %1924 = vmatpush1.msra.mxu0 %v1833
        %1925 = vmatprep.subr.mxu0 0.0
        %1926 = vmatpush1.msra.mxu0 %v1834
        %1927 = vmatprep.subr.mxu0 0.0
        %1928 = vmatpush1.msra.mxu0 %v1835
        %1929 = vmatprep.subr.mxu0 0.0
        %1930 = vmatpush1.msra.mxu0 0.0
        %1931 = vmatprep.subr.mxu0 0.0
        %1932 = vmatpush1.msra.mxu0 0.0
        %1933 = vmatprep.subr.mxu0 0.0
        %1934 = vmatpush1.msra.mxu0 0.0
        %1935 = vmatprep.subr.mxu0 0.0
        %1936 = vmatpush1.msra.mxu0 0.0
        %1937 = vmatprep.subr.mxu0 0.0
        %1938 = vmatpush1.msra.mxu0 0.0
        %1939 = vmatprep.subr.mxu0 0.0
        %1940 = vmatpush1.msra.mxu0 0.0
        %1941 = vmatprep.subr.mxu0 0.0
        %1942 = vmatpush1.msra.mxu0 0.0
        %1943 = vmatprep.subr.mxu0 0.0
        %1944 = vmatpush1.msra.mxu0 0.0
        %1945 = vmatprep.subr.mxu0 0.0
        %1946 = vmatpush1.msra.mxu0 0.0
        %1947 = vmatprep.subr.mxu0 0.0
        %1948 = vmatpush1.msra.mxu0 0.0
        %1949 = vmatprep.subr.mxu0 0.0
        %1950 = vmatpush1.msra.mxu0 0.0
        %1951 = vmatprep.subr.mxu0 0.0
        %1952 = vmatpush1.msra.mxu0 0.0
        %1953 = vmatprep.subr.mxu0 0.0
        %1954 = vmatpush1.msra.mxu0 0.0
        %1955 = vmatprep.subr.mxu0 0.0
        %1956 = vmatpush1.msra.mxu0 0.0
        %1957 = vmatprep.subr.mxu0 0.0
        %1958 = vmatpush1.msra.mxu0 0.0
        %1959 = vmatprep.subr.mxu0 0.0
        %1960 = vmatpush1.msra.mxu0 0.0
        %1961 = vmatprep.subr.mxu0 0.0
        %1962 = vmatpush1.msra.mxu0 0.0
        %1963 = vmatprep.subr.mxu0 0.0
        %1964 = vmatpush1.msra.mxu0 0.0
        %1965 = vmatprep.subr.mxu0 0.0
        %1966 = vmatpush1.msra.mxu0 0.0
        %1967 = vmatprep.subr.mxu0 0.0
        %1968 = vmatpush1.msra.mxu0 0.0
        %1969 = vmatprep.subr.mxu0 0.0
        %1970 = vmatpush1.msra.mxu0 0.0
        %1971 = vmatprep.subr.mxu0 0.0
        %1972 = vmatpush1.msra.mxu0 0.0
        %1973 = vmatprep.subr.mxu0 0.0
        %1974 = vmatpush1.msra.mxu0 0.0
        %1975 = vmatprep.subr.mxu0 0.0
        %1976 = vmatpush1.msra.mxu0 0.0
        %1977 = vmatprep.subr.mxu0 0.0
        %1978 = vmatpush1.msra.mxu0 0.0
        %1979 = vmatprep.subr.mxu0 0.0
        %1980 = vmatpush1.msra.mxu0 0.0
        %1981 = vmatprep.subr.mxu0 0.0
        %1982 = vmatpush1.msra.mxu0 0.0
        %1983 = vmatprep.subr.mxu0 0.0
        %1984 = vmatpush1.msra.mxu0 0.0
        %1985 = vmatprep.mubr.f32.mxu0 0.0
        %1986 = vmatmul.mubr.f32.gmra.mrb[0].mxu0 %v937
        %v1987 = vpop.f32.mrb[0].mxu0
        %v1988 = vadd.f32 %v1848, %v1987
        %v1989 = vpop.f32.mrb[0].mxu0
        %1990 = vdwg.mxu0
        %s1991 = scalar_lea.vmem %s772, 576 [#allocation2]
        %v1992 = vld [vmem:[%s1991] sm:$0xff]
        %v1993 = vld [vmem:[%s1991 + $0x8] sm:$0xff]
        %v1994 = vld [vmem:[%s1991 + $0x10] sm:$0xff]
        %v1995 = vld [vmem:[%s1991 + $0x18] sm:$0xff]
        %v1996 = vld [vmem:[%s1991 + $0x20] sm:$0xff]
        %v1997 = vld [vmem:[%s1991 + $0x28] sm:$0xff]
        %v1998 = vld [vmem:[%s1991 + $0x30] sm:$0xff]
        %v1999 = vld [vmem:[%s1991 + $0x38] sm:$0xff]
        %s2000 = scalar_lea.vmem %s779, 18 [#allocation3]
        %v2001 = vld [vmem:[%s2000] sm:$0x1]
        %v2002 = vld [vmem:[%s2000 + $0x1] sm:$0x1]
        %v2005 = vlaneseq
        %v2006 = vshrl.u32 %v2005, 7
        %v2007 = vsub.s32 0, %v2006
        %v2008 = vrot.slane %v2001, %v2007
        %v2009 = vlaneseq
        %v2010 = vshrl.u32 %v2009, 7
        %v2011 = vsub.s32 0, %v2010
        %v2012 = vrot.slane %v2002, %v2011
        %2015 = vmatprep.subr.mxu0 0.0
        %2016 = vmatpush1.msra.mxu0 %v1992
        %2017 = vmatprep.subr.mxu0 0.0
        %2018 = vmatpush1.msra.mxu0 %v1993
        %2019 = vmatprep.subr.mxu0 0.0
        %2020 = vmatpush1.msra.mxu0 %v1994
        %2021 = vmatprep.subr.mxu0 0.0
        %2022 = vmatpush1.msra.mxu0 %v1995
        %2023 = vmatprep.subr.mxu0 0.0
        %2024 = vmatpush1.msra.mxu0 0.0
        %2025 = vmatprep.subr.mxu0 0.0
        %2026 = vmatpush1.msra.mxu0 0.0
        %2027 = vmatprep.subr.mxu0 0.0
        %2028 = vmatpush1.msra.mxu0 0.0
        %2029 = vmatprep.subr.mxu0 0.0
        %2030 = vmatpush1.msra.mxu0 0.0
        %2031 = vmatprep.subr.mxu0 0.0
        %2032 = vmatpush1.msra.mxu0 0.0
        %2033 = vmatprep.subr.mxu0 0.0
        %2034 = vmatpush1.msra.mxu0 0.0
        %2035 = vmatprep.subr.mxu0 0.0
        %2036 = vmatpush1.msra.mxu0 0.0
        %2037 = vmatprep.subr.mxu0 0.0
        %2038 = vmatpush1.msra.mxu0 0.0
        %2039 = vmatprep.subr.mxu0 0.0
        %2040 = vmatpush1.msra.mxu0 0.0
        %2041 = vmatprep.subr.mxu0 0.0
        %2042 = vmatpush1.msra.mxu0 0.0
        %2043 = vmatprep.subr.mxu0 0.0
        %2044 = vmatpush1.msra.mxu0 0.0
        %2045 = vmatprep.subr.mxu0 0.0
        %2046 = vmatpush1.msra.mxu0 0.0
        %2047 = vmatprep.subr.mxu0 0.0
        %2048 = vmatpush1.msra.mxu0 0.0
        %2049 = vmatprep.subr.mxu0 0.0
        %2050 = vmatpush1.msra.mxu0 0.0
        %2051 = vmatprep.subr.mxu0 0.0
        %2052 = vmatpush1.msra.mxu0 0.0
        %2053 = vmatprep.subr.mxu0 0.0
        %2054 = vmatpush1.msra.mxu0 0.0
        %2055 = vmatprep.subr.mxu0 0.0
        %2056 = vmatpush1.msra.mxu0 0.0
        %2057 = vmatprep.subr.mxu0 0.0
        %2058 = vmatpush1.msra.mxu0 0.0
        %2059 = vmatprep.subr.mxu0 0.0
        %2060 = vmatpush1.msra.mxu0 0.0
        %2061 = vmatprep.subr.mxu0 0.0
        %2062 = vmatpush1.msra.mxu0 0.0
        %2063 = vmatprep.subr.mxu0 0.0
        %2064 = vmatpush1.msra.mxu0 0.0
        %2065 = vmatprep.subr.mxu0 0.0
        %2066 = vmatpush1.msra.mxu0 0.0
        %2067 = vmatprep.subr.mxu0 0.0
        %2068 = vmatpush1.msra.mxu0 0.0
        %2069 = vmatprep.subr.mxu0 0.0
        %2070 = vmatpush1.msra.mxu0 0.0
        %2071 = vmatprep.subr.mxu0 0.0
        %2072 = vmatpush1.msra.mxu0 0.0
        %2073 = vmatprep.subr.mxu0 0.0
        %2074 = vmatpush1.msra.mxu0 0.0
        %2075 = vmatprep.subr.mxu0 0.0
        %2076 = vmatpush1.msra.mxu0 0.0
        %2077 = vmatprep.subr.mxu0 0.0
        %2078 = vmatpush1.msra.mxu0 0.0
        %2079 = vmatprep.mubr.f32.mxu0 0.0
        %2080 = vmatmul.mubr.f32.gmra.mrb[0].mxu0 %v864
        %v2081 = vpop.f32.mrb[0].mxu0
        %v2082 = vadd.f32 %v2008, %v2081
        %v2083 = vpop.f32.mrb[0].mxu0
        %2084 = vdwg.mxu0
        %2085 = vmatprep.subr.mxu0 0.0
        %2086 = vmatpush1.msra.mxu0 %v1996
        %2087 = vmatprep.subr.mxu0 0.0
        %2088 = vmatpush1.msra.mxu0 %v1997
        %2089 = vmatprep.subr.mxu0 0.0
        %2090 = vmatpush1.msra.mxu0 %v1998
        %2091 = vmatprep.subr.mxu0 0.0
        %2092 = vmatpush1.msra.mxu0 %v1999
        %2093 = vmatprep.subr.mxu0 0.0
        %2094 = vmatpush1.msra.mxu0 0.0
        %2095 = vmatprep.subr.mxu0 0.0
        %2096 = vmatpush1.msra.mxu0 0.0
        %2097 = vmatprep.subr.mxu0 0.0
        %2098 = vmatpush1.msra.mxu0 0.0
        %2099 = vmatprep.subr.mxu0 0.0
        %2100 = vmatpush1.msra.mxu0 0.0
        %2101 = vmatprep.subr.mxu0 0.0
        %2102 = vmatpush1.msra.mxu0 0.0
        %2103 = vmatprep.subr.mxu0 0.0
        %2104 = vmatpush1.msra.mxu0 0.0
        %2105 = vmatprep.subr.mxu0 0.0
        %2106 = vmatpush1.msra.mxu0 0.0
        %2107 = vmatprep.subr.mxu0 0.0
        %2108 = vmatpush1.msra.mxu0 0.0
        %2109 = vmatprep.subr.mxu0 0.0
        %2110 = vmatpush1.msra.mxu0 0.0
        %2111 = vmatprep.subr.mxu0 0.0
        %2112 = vmatpush1.msra.mxu0 0.0
        %2113 = vmatprep.subr.mxu0 0.0
        %2114 = vmatpush1.msra.mxu0 0.0
        %2115 = vmatprep.subr.mxu0 0.0
        %2116 = vmatpush1.msra.mxu0 0.0
        %2117 = vmatprep.subr.mxu0 0.0
        %2118 = vmatpush1.msra.mxu0 0.0
        %2119 = vmatprep.subr.mxu0 0.0
        %2120 = vmatpush1.msra.mxu0 0.0
        %2121 = vmatprep.subr.mxu0 0.0
        %2122 = vmatpush1.msra.mxu0 0.0
        %2123 = vmatprep.subr.mxu0 0.0
        %2124 = vmatpush1.msra.mxu0 0.0
        %2125 = vmatprep.subr.mxu0 0.0
        %2126 = vmatpush1.msra.mxu0 0.0
        %2127 = vmatprep.subr.mxu0 0.0
        %2128 = vmatpush1.msra.mxu0 0.0
        %2129 = vmatprep.subr.mxu0 0.0
        %2130 = vmatpush1.msra.mxu0 0.0
        %2131 = vmatprep.subr.mxu0 0.0
        %2132 = vmatpush1.msra.mxu0 0.0
        %2133 = vmatprep.subr.mxu0 0.0
        %2134 = vmatpush1.msra.mxu0 0.0
        %2135 = vmatprep.subr.mxu0 0.0
        %2136 = vmatpush1.msra.mxu0 0.0
        %2137 = vmatprep.subr.mxu0 0.0
        %2138 = vmatpush1.msra.mxu0 0.0
        %2139 = vmatprep.subr.mxu0 0.0
        %2140 = vmatpush1.msra.mxu0 0.0
        %2141 = vmatprep.subr.mxu0 0.0
        %2142 = vmatpush1.msra.mxu0 0.0
        %2143 = vmatprep.subr.mxu0 0.0
        %2144 = vmatpush1.msra.mxu0 0.0
        %2145 = vmatprep.subr.mxu0 0.0
        %2146 = vmatpush1.msra.mxu0 0.0
        %2147 = vmatprep.subr.mxu0 0.0
        %2148 = vmatpush1.msra.mxu0 0.0
        %2149 = vmatprep.mubr.f32.mxu0 0.0
        %2150 = vmatmul.mubr.f32.gmra.mrb[0].mxu0 %v937
        %v2151 = vpop.f32.mrb[0].mxu0
        %v2152 = vadd.f32 %v2012, %v2151
        %v2153 = vpop.f32.mrb[0].mxu0
        %2154 = vdwg.mxu0
        %v2156 = vsel %vm1337, %v1754, 0
        %v2159 = vsel %vm1337, %v1918, 0
        %2161 = vmatprep.subr.mxu0 0.0
        %2162 = vmatpush1.xpose.msra.mxu0 %v2159
        %2163 = vmatprep.subr.mxu0 0.0
        %2164 = vmatpush1.xpose.msra.mxu0 0.0
        %2165 = vmatprep.subr.mxu0 0.0
        %2166 = vmatpush1.xpose.msra.mxu0 0.0
        %2167 = vmatprep.subr.mxu0 0.0
        %2168 = vmatpush1.xpose.msra.mxu0 0.0
        %2169 = vmatprep.subr.mxu0 0.0
        %2170 = vmatpush1.xpose.msra.mxu0 0.0
        %2171 = vmatprep.subr.mxu0 0.0
        %2172 = vmatpush1.xpose.msra.mxu0 0.0
        %2173 = vmatprep.subr.mxu0 0.0
        %2174 = vmatpush1.xpose.msra.mxu0 0.0
        %2175 = vmatprep.subr.mxu0 0.0
        %2176 = vmatpush1.xpose.msra.mxu0 0.0
        %2177 = vmatprep.subr.mxu0 0.0
        %2178 = vmatpush1.xpose.msra.mxu0 0.0
        %2179 = vmatprep.subr.mxu0 0.0
        %2180 = vmatpush1.xpose.msra.mxu0 0.0
        %2181 = vmatprep.subr.mxu0 0.0
        %2182 = vmatpush1.xpose.msra.mxu0 0.0
        %2183 = vmatprep.subr.mxu0 0.0
        %2184 = vmatpush1.xpose.msra.mxu0 0.0
        %2185 = vmatprep.subr.mxu0 0.0
        %2186 = vmatpush1.xpose.msra.mxu0 0.0
        %2187 = vmatprep.subr.mxu0 0.0
        %2188 = vmatpush1.xpose.msra.mxu0 0.0
        %2189 = vmatprep.subr.mxu0 0.0
        %2190 = vmatpush1.xpose.msra.mxu0 0.0
        %2191 = vmatprep.subr.mxu0 0.0
        %2192 = vmatpush1.xpose.msra.mxu0 0.0
        %2193 = vmatprep.subr.mxu0 0.0
        %2194 = vmatpush1.xpose.msra.mxu0 0.0
        %2195 = vmatprep.subr.mxu0 0.0
        %2196 = vmatpush1.xpose.msra.mxu0 0.0
        %2197 = vmatprep.subr.mxu0 0.0
        %2198 = vmatpush1.xpose.msra.mxu0 0.0
        %2199 = vmatprep.subr.mxu0 0.0
        %2200 = vmatpush1.xpose.msra.mxu0 0.0
        %2201 = vmatprep.subr.mxu0 0.0
        %2202 = vmatpush1.xpose.msra.mxu0 0.0
        %2203 = vmatprep.subr.mxu0 0.0
        %2204 = vmatpush1.xpose.msra.mxu0 0.0
        %2205 = vmatprep.subr.mxu0 0.0
        %2206 = vmatpush1.xpose.msra.mxu0 0.0
        %2207 = vmatprep.subr.mxu0 0.0
        %2208 = vmatpush1.xpose.msra.mxu0 0.0
        %2209 = vmatprep.subr.mxu0 0.0
        %2210 = vmatpush1.xpose.msra.mxu0 0.0
        %2211 = vmatprep.subr.mxu0 0.0
        %2212 = vmatpush1.xpose.msra.mxu0 0.0
        %2213 = vmatprep.subr.mxu0 0.0
        %2214 = vmatpush1.xpose.msra.mxu0 0.0
        %2215 = vmatprep.subr.mxu0 0.0
        %2216 = vmatpush1.xpose.msra.mxu0 0.0
        %2217 = vmatprep.subr.mxu0 0.0
        %2218 = vmatpush1.xpose.msra.mxu0 0.0
        %2219 = vmatprep.subr.mxu0 0.0
        %2220 = vmatpush1.xpose.msra.mxu0 0.0
        %2221 = vmatprep.subr.mxu0 0.0
        %2222 = vmatpush1.xpose.msra.mxu0 0.0
        %2223 = vmatprep.subr.mxu0 0.0
        %2224 = vmatpush1.xpose.msra.mxu0 0.0
        %2225 = vmatprep.mubr.f32.mxu0 0.0
        %2226 = vmatmul.mubr.f32.gmra.mrb[0].mxu0 %v2156
        %v2227 = vpop.f32.mrb[0].mxu0
        %v2228 = vadd.f32 0.0, %v2227
        %v2229 = vpop.f32.mrb[0].mxu0
        %2230 = vdwg.mxu0
        %v2232 = vsel %vm1337, %v1824, 0
        %v2235 = vsel %vm1337, %v1988, 0
        %2237 = vmatprep.subr.mxu0 0.0
        %2238 = vmatpush1.xpose.msra.mxu0 %v2235
        %2239 = vmatprep.subr.mxu0 0.0
        %2240 = vmatpush1.xpose.msra.mxu0 0.0
        %2241 = vmatprep.subr.mxu0 0.0
        %2242 = vmatpush1.xpose.msra.mxu0 0.0
        %2243 = vmatprep.subr.mxu0 0.0
        %2244 = vmatpush1.xpose.msra.mxu0 0.0
        %2245 = vmatprep.subr.mxu0 0.0
        %2246 = vmatpush1.xpose.msra.mxu0 0.0
        %2247 = vmatprep.subr.mxu0 0.0
        %2248 = vmatpush1.xpose.msra.mxu0 0.0
        %2249 = vmatprep.subr.mxu0 0.0
        %2250 = vmatpush1.xpose.msra.mxu0 0.0
        %2251 = vmatprep.subr.mxu0 0.0
        %2252 = vmatpush1.xpose.msra.mxu0 0.0
        %2253 = vmatprep.subr.mxu0 0.0
        %2254 = vmatpush1.xpose.msra.mxu0 0.0
        %2255 = vmatprep.subr.mxu0 0.0
        %2256 = vmatpush1.xpose.msra.mxu0 0.0
        %2257 = vmatprep.subr.mxu0 0.0
        %2258 = vmatpush1.xpose.msra.mxu0 0.0
        %2259 = vmatprep.subr.mxu0 0.0
        %2260 = vmatpush1.xpose.msra.mxu0 0.0
        %2261 = vmatprep.subr.mxu0 0.0
        %2262 = vmatpush1.xpose.msra.mxu0 0.0
        %2263 = vmatprep.subr.mxu0 0.0
        %2264 = vmatpush1.xpose.msra.mxu0 0.0
        %2265 = vmatprep.subr.mxu0 0.0
        %2266 = vmatpush1.xpose.msra.mxu0 0.0
        %2267 = vmatprep.subr.mxu0 0.0
        %2268 = vmatpush1.xpose.msra.mxu0 0.0
        %2269 = vmatprep.subr.mxu0 0.0
        %2270 = vmatpush1.xpose.msra.mxu0 0.0
        %2271 = vmatprep.subr.mxu0 0.0
        %2272 = vmatpush1.xpose.msra.mxu0 0.0
        %2273 = vmatprep.subr.mxu0 0.0
        %2274 = vmatpush1.xpose.msra.mxu0 0.0
        %2275 = vmatprep.subr.mxu0 0.0
        %2276 = vmatpush1.xpose.msra.mxu0 0.0
        %2277 = vmatprep.subr.mxu0 0.0
        %2278 = vmatpush1.xpose.msra.mxu0 0.0
        %2279 = vmatprep.subr.mxu0 0.0
        %2280 = vmatpush1.xpose.msra.mxu0 0.0
        %2281 = vmatprep.subr.mxu0 0.0
        %2282 = vmatpush1.xpose.msra.mxu0 0.0
        %2283 = vmatprep.subr.mxu0 0.0
        %2284 = vmatpush1.xpose.msra.mxu0 0.0
        %2285 = vmatprep.subr.mxu0 0.0
        %2286 = vmatpush1.xpose.msra.mxu0 0.0
        %2287 = vmatprep.subr.mxu0 0.0
        %2288 = vmatpush1.xpose.msra.mxu0 0.0
        %2289 = vmatprep.subr.mxu0 0.0
        %2290 = vmatpush1.xpose.msra.mxu0 0.0
        %2291 = vmatprep.subr.mxu0 0.0
        %2292 = vmatpush1.xpose.msra.mxu0 0.0
        %2293 = vmatprep.subr.mxu0 0.0
        %2294 = vmatpush1.xpose.msra.mxu0 0.0
        %2295 = vmatprep.subr.mxu0 0.0
        %2296 = vmatpush1.xpose.msra.mxu0 0.0
        %2297 = vmatprep.subr.mxu0 0.0
        %2298 = vmatpush1.xpose.msra.mxu0 0.0
        %2299 = vmatprep.subr.mxu0 0.0
        %2300 = vmatpush1.xpose.msra.mxu0 0.0
        %2301 = vmatprep.mubr.f32.mxu0 0.0
        %2302 = vmatmul.mubr.f32.gmra.mrb[0].mxu0 %v2232
        %v2303 = vpop.f32.mrb[0].mxu0
        %v2304 = vadd.f32 0.0, %v2303
        %v2305 = vpop.f32.mrb[0].mxu0
        %2306 = vdwg.mxu0
        %v2307 = vmul.f32 %v2228, 0.35355338
        %v2308 = vmul.f32 %v2304, 0.35355338
        %v2309 = vsel %vm1337, %v2307, -inf
        %2310 = vmax.xlane.f32.xlu0 %v2309
        %v2311 = vpop.xlane.xlu0 %2310
        %v2312 = vsel %vm1337, %v2308, -inf
        %2313 = vmax.xlane.f32.xlu0 %v2312
        %v2314 = vpop.xlane.xlu0 %2313
        %v2315 = vsub.f32 %v2307, %v2311
        %v2316 = vsub.f32 %v2308, %v2314
        %v2317 = vmul.f32 %v2315, 1.442695
        %v2318 = vpow.pop %v2317
        %v2319 = vmul.f32 %v2316, 1.442695
        %v2320 = vpow.pop %v2319
        %v2321 = vsel %vm1337, %v2318, 0.0
        %2322 = vadd.xlane.f32.xlu0 %v2321
        %v2323 = vpop.xlane.xlu0 %2322
        %v2324 = vsel %vm1337, %v2320, 0.0
        %2325 = vadd.xlane.f32.xlu0 %v2324
        %v2326 = vpop.xlane.xlu0 %2325
        %v2327 = vrcp.pop %v2323
        %v2328 = vrcp.pop %v2326
        %v2329 = vmul.f32 %v2318, %v2327
        %v2330 = vmul.f32 %v2320, %v2328
        %s2331 = scalar_lea.vmem %s823, 8 [#allocation6]
        %2332 = vst.msk [vmem:[%s2331] sm:$0xff] %vm1337, %v2329
        %2333 = vst.msk [vmem:[%s2331 + $0x20] sm:$0xff] %vm1337, %v2330
        %v2335 = vsel %vm1337, %v2329, 0
        %2337 = vmatprep.subr.mxu0 0.0
        %2338 = vmatpush1.msra.mxu0 %v2082
        %2339 = vmatprep.subr.mxu0 0.0
        %2340 = vmatpush1.msra.mxu0 0.0
        %2341 = vmatprep.subr.mxu0 0.0
        %2342 = vmatpush1.msra.mxu0 0.0
        %2343 = vmatprep.subr.mxu0 0.0
        %2344 = vmatpush1.msra.mxu0 0.0
        %2345 = vmatprep.subr.mxu0 0.0
        %2346 = vmatpush1.msra.mxu0 0.0
        %2347 = vmatprep.subr.mxu0 0.0
        %2348 = vmatpush1.msra.mxu0 0.0
        %2349 = vmatprep.subr.mxu0 0.0
        %2350 = vmatpush1.msra.mxu0 0.0
        %2351 = vmatprep.subr.mxu0 0.0
        %2352 = vmatpush1.msra.mxu0 0.0
        %2353 = vmatprep.subr.mxu0 0.0
        %2354 = vmatpush1.msra.mxu0 0.0
        %2355 = vmatprep.subr.mxu0 0.0
        %2356 = vmatpush1.msra.mxu0 0.0
        %2357 = vmatprep.subr.mxu0 0.0
        %2358 = vmatpush1.msra.mxu0 0.0
        %2359 = vmatprep.subr.mxu0 0.0
        %2360 = vmatpush1.msra.mxu0 0.0
        %2361 = vmatprep.subr.mxu0 0.0
        %2362 = vmatpush1.msra.mxu0 0.0
        %2363 = vmatprep.subr.mxu0 0.0
        %2364 = vmatpush1.msra.mxu0 0.0
        %2365 = vmatprep.subr.mxu0 0.0
        %2366 = vmatpush1.msra.mxu0 0.0
        %2367 = vmatprep.subr.mxu0 0.0
        %2368 = vmatpush1.msra.mxu0 0.0
        %2369 = vmatprep.subr.mxu0 0.0
        %2370 = vmatpush1.msra.mxu0 0.0
        %2371 = vmatprep.subr.mxu0 0.0
        %2372 = vmatpush1.msra.mxu0 0.0
        %2373 = vmatprep.subr.mxu0 0.0
        %2374 = vmatpush1.msra.mxu0 0.0
        %2375 = vmatprep.subr.mxu0 0.0
        %2376 = vmatpush1.msra.mxu0 0.0
        %2377 = vmatprep.subr.mxu0 0.0
        %2378 = vmatpush1.msra.mxu0 0.0
        %2379 = vmatprep.subr.mxu0 0.0
        %2380 = vmatpush1.msra.mxu0 0.0
        %2381 = vmatprep.subr.mxu0 0.0
        %2382 = vmatpush1.msra.mxu0 0.0
        %2383 = vmatprep.subr.mxu0 0.0
        %2384 = vmatpush1.msra.mxu0 0.0
        %2385 = vmatprep.subr.mxu0 0.0
        %2386 = vmatpush1.msra.mxu0 0.0
        %2387 = vmatprep.subr.mxu0 0.0
        %2388 = vmatpush1.msra.mxu0 0.0
        %2389 = vmatprep.subr.mxu0 0.0
        %2390 = vmatpush1.msra.mxu0 0.0
        %2391 = vmatprep.subr.mxu0 0.0
        %2392 = vmatpush1.msra.mxu0 0.0
        %2393 = vmatprep.subr.mxu0 0.0
        %2394 = vmatpush1.msra.mxu0 0.0
        %2395 = vmatprep.subr.mxu0 0.0
        %2396 = vmatpush1.msra.mxu0 0.0
        %2397 = vmatprep.subr.mxu0 0.0
        %2398 = vmatpush1.msra.mxu0 0.0
        %2399 = vmatprep.subr.mxu0 0.0
        %2400 = vmatpush1.msra.mxu0 0.0
        %2401 = vmatprep.mubr.f32.mxu0 0.0
        %2402 = vmatmul.mubr.f32.gmra.mrb[0].mxu0 %v2335
        %v2403 = vpop.f32.mrb[0].mxu0
        %v2404 = vadd.f32 0.0, %v2403
        %v2405 = vpop.f32.mrb[0].mxu0
        %2406 = vdwg.mxu0
        %v2408 = vsel %vm1337, %v2330, 0
        %2410 = vmatprep.subr.mxu0 0.0
        %2411 = vmatpush1.msra.mxu0 %v2152
        %2412 = vmatprep.subr.mxu0 0.0
        %2413 = vmatpush1.msra.mxu0 0.0
        %2414 = vmatprep.subr.mxu0 0.0
        %2415 = vmatpush1.msra.mxu0 0.0
        %2416 = vmatprep.subr.mxu0 0.0
        %2417 = vmatpush1.msra.mxu0 0.0
        %2418 = vmatprep.subr.mxu0 0.0
        %2419 = vmatpush1.msra.mxu0 0.0
        %2420 = vmatprep.subr.mxu0 0.0
        %2421 = vmatpush1.msra.mxu0 0.0
        %2422 = vmatprep.subr.mxu0 0.0
        %2423 = vmatpush1.msra.mxu0 0.0
        %2424 = vmatprep.subr.mxu0 0.0
        %2425 = vmatpush1.msra.mxu0 0.0
        %2426 = vmatprep.subr.mxu0 0.0
        %2427 = vmatpush1.msra.mxu0 0.0
        %2428 = vmatprep.subr.mxu0 0.0
        %2429 = vmatpush1.msra.mxu0 0.0
        %2430 = vmatprep.subr.mxu0 0.0
        %2431 = vmatpush1.msra.mxu0 0.0
        %2432 = vmatprep.subr.mxu0 0.0
        %2433 = vmatpush1.msra.mxu0 0.0
        %2434 = vmatprep.subr.mxu0 0.0
        %2435 = vmatpush1.msra.mxu0 0.0
        %2436 = vmatprep.subr.mxu0 0.0
        %2437 = vmatpush1.msra.mxu0 0.0
        %2438 = vmatprep.subr.mxu0 0.0
        %2439 = vmatpush1.msra.mxu0 0.0
        %2440 = vmatprep.subr.mxu0 0.0
        %2441 = vmatpush1.msra.mxu0 0.0
        %2442 = vmatprep.subr.mxu0 0.0
        %2443 = vmatpush1.msra.mxu0 0.0
        %2444 = vmatprep.subr.mxu0 0.0
        %2445 = vmatpush1.msra.mxu0 0.0
        %2446 = vmatprep.subr.mxu0 0.0
        %2447 = vmatpush1.msra.mxu0 0.0
        %2448 = vmatprep.subr.mxu0 0.0
        %2449 = vmatpush1.msra.mxu0 0.0
        %2450 = vmatprep.subr.mxu0 0.0
        %2451 = vmatpush1.msra.mxu0 0.0
        %2452 = vmatprep.subr.mxu0 0.0
        %2453 = vmatpush1.msra.mxu0 0.0
        %2454 = vmatprep.subr.mxu0 0.0
        %2455 = vmatpush1.msra.mxu0 0.0
        %2456 = vmatprep.subr.mxu0 0.0
        %2457 = vmatpush1.msra.mxu0 0.0
        %2458 = vmatprep.subr.mxu0 0.0
        %2459 = vmatpush1.msra.mxu0 0.0
        %2460 = vmatprep.subr.mxu0 0.0
        %2461 = vmatpush1.msra.mxu0 0.0
        %2462 = vmatprep.subr.mxu0 0.0
        %2463 = vmatpush1.msra.mxu0 0.0
        %2464 = vmatprep.subr.mxu0 0.0
        %2465 = vmatpush1.msra.mxu0 0.0
        %2466 = vmatprep.subr.mxu0 0.0
        %2467 = vmatpush1.msra.mxu0 0.0
        %2468 = vmatprep.subr.mxu0 0.0
        %2469 = vmatpush1.msra.mxu0 0.0
        %2470 = vmatprep.subr.mxu0 0.0
        %2471 = vmatpush1.msra.mxu0 0.0
        %2472 = vmatprep.subr.mxu0 0.0
        %2473 = vmatpush1.msra.mxu0 0.0
        %2474 = vmatprep.mubr.f32.mxu0 0.0
        %2475 = vmatmul.mubr.f32.gmra.mrb[0].mxu0 %v2408
        %v2476 = vpop.f32.mrb[0].mxu0
        %v2477 = vadd.f32 0.0, %v2476
        %v2478 = vpop.f32.mrb[0].mxu0
        %2479 = vdwg.mxu0
        %s2480 = scalar_lea.vmem %s3, 8
        %v2481 = vld [vmem:[%s2480] sm:$0xff]
        %v2483 = vsel %vm1337, %v2404, 0
        %v2486 = vsel %vm1337, %v2477, 0
        %2488 = vmatprep.subr.mxu0 0.0
        %2489 = vmatpush1.msra.mxu0 %v2481
        %2490 = vmatprep.subr.mxu0 0.0
        %2491 = vmatpush1.msra.mxu0 0.0
        %2492 = vmatprep.subr.mxu0 0.0
        %2493 = vmatpush1.msra.mxu0 0.0
        %2494 = vmatprep.subr.mxu0 0.0
        %2495 = vmatpush1.msra.mxu0 0.0
        %2496 = vmatprep.subr.mxu0 0.0
        %2497 = vmatpush1.msra.mxu0 0.0
        %2498 = vmatprep.subr.mxu0 0.0
        %2499 = vmatpush1.msra.mxu0 0.0
        %2500 = vmatprep.subr.mxu0 0.0
        %2501 = vmatpush1.msra.mxu0 0.0
        %2502 = vmatprep.subr.mxu0 0.0
        %2503 = vmatpush1.msra.mxu0 0.0
        %2504 = vmatprep.subr.mxu0 0.0
        %2505 = vmatpush1.msra.mxu0 0.0
        %2506 = vmatprep.subr.mxu0 0.0
        %2507 = vmatpush1.msra.mxu0 0.0
        %2508 = vmatprep.subr.mxu0 0.0
        %2509 = vmatpush1.msra.mxu0 0.0
        %2510 = vmatprep.subr.mxu0 0.0
        %2511 = vmatpush1.msra.mxu0 0.0
        %2512 = vmatprep.subr.mxu0 0.0
        %2513 = vmatpush1.msra.mxu0 0.0
        %2514 = vmatprep.subr.mxu0 0.0
        %2515 = vmatpush1.msra.mxu0 0.0
        %2516 = vmatprep.subr.mxu0 0.0
        %2517 = vmatpush1.msra.mxu0 0.0
        %2518 = vmatprep.subr.mxu0 0.0
        %2519 = vmatpush1.msra.mxu0 0.0
        %2520 = vmatprep.subr.mxu0 0.0
        %2521 = vmatpush1.msra.mxu0 0.0
        %2522 = vmatprep.subr.mxu0 0.0
        %2523 = vmatpush1.msra.mxu0 0.0
        %2524 = vmatprep.subr.mxu0 0.0
        %2525 = vmatpush1.msra.mxu0 0.0
        %2526 = vmatprep.subr.mxu0 0.0
        %2527 = vmatpush1.msra.mxu0 0.0
        %2528 = vmatprep.subr.mxu0 0.0
        %2529 = vmatpush1.msra.mxu0 0.0
        %2530 = vmatprep.subr.mxu0 0.0
        %2531 = vmatpush1.msra.mxu0 0.0
        %2532 = vmatprep.subr.mxu0 0.0
        %2533 = vmatpush1.msra.mxu0 0.0
        %2534 = vmatprep.subr.mxu0 0.0
        %2535 = vmatpush1.msra.mxu0 0.0
        %2536 = vmatprep.subr.mxu0 0.0
        %2537 = vmatpush1.msra.mxu0 0.0
        %2538 = vmatprep.subr.mxu0 0.0
        %2539 = vmatpush1.msra.mxu0 0.0
        %2540 = vmatprep.subr.mxu0 0.0
        %2541 = vmatpush1.msra.mxu0 0.0
        %2542 = vmatprep.subr.mxu0 0.0
        %2543 = vmatpush1.msra.mxu0 0.0
        %2544 = vmatprep.subr.mxu0 0.0
        %2545 = vmatpush1.msra.mxu0 0.0
        %2546 = vmatprep.subr.mxu0 0.0
        %2547 = vmatpush1.msra.mxu0 0.0
        %2548 = vmatprep.subr.mxu0 0.0
        %2549 = vmatpush1.msra.mxu0 0.0
        %2550 = vmatprep.subr.mxu0 0.0
        %2551 = vmatpush1.msra.mxu0 0.0
        %2552 = vmatprep.mubr.f32.mxu0 0.0
        %2553 = vmatmul.mubr.f32.gmra.mrb[0].mxu0 %v2483
        %v2554 = vpop.f32.mrb[0].mxu0
        %v2555 = vadd.f32 0.0, %v2554
        %v2556 = vpop.f32.mrb[0].mxu0
        %2557 = vmatprep.mubr.f32.mxu0 0.0
        %2558 = vmatmul.mubr.f32.gmra.mrb[0].mxu0 %v2486
        %v2559 = vpop.f32.mrb[0].mxu0
        %v2560 = vadd.f32 0.0, %v2559
        %v2561 = vpop.f32.mrb[0].mxu0
        %2562 = vdwg.mxu0
        %v2564 = vsel %vm1337, %v1586, 0
        %v2567 = vsel %vm1337, %v1659, 0
        %2569 = vmatprep.subr.mxu0 0.0
        %2570 = vmatpush1.msra.mxu0 %v1662
        %2571 = vmatprep.subr.mxu0 0.0
        %2572 = vmatpush1.msra.mxu0 0.0
        %2573 = vmatprep.subr.mxu0 0.0
        %2574 = vmatpush1.msra.mxu0 0.0
        %2575 = vmatprep.subr.mxu0 0.0
        %2576 = vmatpush1.msra.mxu0 0.0
        %2577 = vmatprep.subr.mxu0 0.0
        %2578 = vmatpush1.msra.mxu0 0.0
        %2579 = vmatprep.subr.mxu0 0.0
        %2580 = vmatpush1.msra.mxu0 0.0
        %2581 = vmatprep.subr.mxu0 0.0
        %2582 = vmatpush1.msra.mxu0 0.0
        %2583 = vmatprep.subr.mxu0 0.0
        %2584 = vmatpush1.msra.mxu0 0.0
        %2585 = vmatprep.subr.mxu0 0.0
        %2586 = vmatpush1.msra.mxu0 0.0
        %2587 = vmatprep.subr.mxu0 0.0
        %2588 = vmatpush1.msra.mxu0 0.0
        %2589 = vmatprep.subr.mxu0 0.0
        %2590 = vmatpush1.msra.mxu0 0.0
        %2591 = vmatprep.subr.mxu0 0.0
        %2592 = vmatpush1.msra.mxu0 0.0
        %2593 = vmatprep.subr.mxu0 0.0
        %2594 = vmatpush1.msra.mxu0 0.0
        %2595 = vmatprep.subr.mxu0 0.0
        %2596 = vmatpush1.msra.mxu0 0.0
        %2597 = vmatprep.subr.mxu0 0.0
        %2598 = vmatpush1.msra.mxu0 0.0
        %2599 = vmatprep.subr.mxu0 0.0
        %2600 = vmatpush1.msra.mxu0 0.0
        %2601 = vmatprep.subr.mxu0 0.0
        %2602 = vmatpush1.msra.mxu0 0.0
        %2603 = vmatprep.subr.mxu0 0.0
        %2604 = vmatpush1.msra.mxu0 0.0
        %2605 = vmatprep.subr.mxu0 0.0
        %2606 = vmatpush1.msra.mxu0 0.0
        %2607 = vmatprep.subr.mxu0 0.0
        %2608 = vmatpush1.msra.mxu0 0.0
        %2609 = vmatprep.subr.mxu0 0.0
        %2610 = vmatpush1.msra.mxu0 0.0
        %2611 = vmatprep.subr.mxu0 0.0
        %2612 = vmatpush1.msra.mxu0 0.0
        %2613 = vmatprep.subr.mxu0 0.0
        %2614 = vmatpush1.msra.mxu0 0.0
        %2615 = vmatprep.subr.mxu0 0.0
        %2616 = vmatpush1.msra.mxu0 0.0
        %2617 = vmatprep.subr.mxu0 0.0
        %2618 = vmatpush1.msra.mxu0 0.0
        %2619 = vmatprep.subr.mxu0 0.0
        %2620 = vmatpush1.msra.mxu0 0.0
        %2621 = vmatprep.subr.mxu0 0.0
        %2622 = vmatpush1.msra.mxu0 0.0
        %2623 = vmatprep.subr.mxu0 0.0
        %2624 = vmatpush1.msra.mxu0 0.0
        %2625 = vmatprep.subr.mxu0 0.0
        %2626 = vmatpush1.msra.mxu0 0.0
        %2627 = vmatprep.subr.mxu0 0.0
        %2628 = vmatpush1.msra.mxu0 0.0
        %2629 = vmatprep.subr.mxu0 0.0
        %2630 = vmatpush1.msra.mxu0 0.0
        %2631 = vmatprep.subr.mxu0 0.0
        %2632 = vmatpush1.msra.mxu0 0.0
        %2633 = vmatprep.mubr.f32.mxu0 0.0
        %2634 = vmatmul.mubr.f32.gmra.mrb[0].mxu0 %v2564
        %v2635 = vpop.f32.mrb[0].mxu0
        %v2636 = vadd.f32 %v2555, %v2635
        %v2637 = vpop.f32.mrb[0].mxu0
        %2638 = vmatprep.mubr.f32.mxu0 0.0
        %2639 = vmatmul.mubr.f32.gmra.mrb[0].mxu0 %v2567
        %v2640 = vpop.f32.mrb[0].mxu0
        %v2641 = vadd.f32 %v2560, %v2640
        %v2642 = vpop.f32.mrb[0].mxu0
        %2643 = vdwg.mxu0
        %s2644 = scalar_lea.vmem %s772, 128 [#allocation2]
        %v2645 = vld [vmem:[%s2644] sm:$0xff]
        %v2646 = vld [vmem:[%s2644 + $0x8] sm:$0xff]
        %v2647 = vld [vmem:[%s2644 + $0x10] sm:$0xff]
        %v2648 = vld [vmem:[%s2644 + $0x18] sm:$0xff]
        %v2649 = vld [vmem:[%s2644 + $0x20] sm:$0xff]
        %v2650 = vld [vmem:[%s2644 + $0x28] sm:$0xff]
        %v2651 = vld [vmem:[%s2644 + $0x30] sm:$0xff]
        %v2652 = vld [vmem:[%s2644 + $0x38] sm:$0xff]
        %s2653 = scalar_lea.vmem %s779, 4 [#allocation3]
        %v2654 = vld [vmem:[%s2653] sm:$0x1]
        %v2655 = vld [vmem:[%s2653 + $0x1] sm:$0x1]
        %v2658 = vlaneseq
        %v2659 = vshrl.u32 %v2658, 7
        %v2660 = vsub.s32 0, %v2659
        %v2661 = vrot.slane %v2654, %v2660
        %v2662 = vlaneseq
        %v2663 = vshrl.u32 %v2662, 7
        %v2664 = vsub.s32 0, %v2663
        %v2665 = vrot.slane %v2655, %v2664
        %2668 = vmatprep.subr.mxu0 0.0
        %2669 = vmatpush1.msra.mxu0 %v2645
        %2670 = vmatprep.subr.mxu0 0.0
        %2671 = vmatpush1.msra.mxu0 %v2646
        %2672 = vmatprep.subr.mxu0 0.0
        %2673 = vmatpush1.msra.mxu0 %v2647
        %2674 = vmatprep.subr.mxu0 0.0
        %2675 = vmatpush1.msra.mxu0 %v2648
        %2676 = vmatprep.subr.mxu0 0.0
        %2677 = vmatpush1.msra.mxu0 0.0
        %2678 = vmatprep.subr.mxu0 0.0
        %2679 = vmatpush1.msra.mxu0 0.0
        %2680 = vmatprep.subr.mxu0 0.0
        %2681 = vmatpush1.msra.mxu0 0.0
        %2682 = vmatprep.subr.mxu0 0.0
        %2683 = vmatpush1.msra.mxu0 0.0
        %2684 = vmatprep.subr.mxu0 0.0
        %2685 = vmatpush1.msra.mxu0 0.0
        %2686 = vmatprep.subr.mxu0 0.0
        %2687 = vmatpush1.msra.mxu0 0.0
        %2688 = vmatprep.subr.mxu0 0.0
        %2689 = vmatpush1.msra.mxu0 0.0
        %2690 = vmatprep.subr.mxu0 0.0
        %2691 = vmatpush1.msra.mxu0 0.0
        %2692 = vmatprep.subr.mxu0 0.0
        %2693 = vmatpush1.msra.mxu0 0.0
        %2694 = vmatprep.subr.mxu0 0.0
        %2695 = vmatpush1.msra.mxu0 0.0
        %2696 = vmatprep.subr.mxu0 0.0
        %2697 = vmatpush1.msra.mxu0 0.0
        %2698 = vmatprep.subr.mxu0 0.0
        %2699 = vmatpush1.msra.mxu0 0.0
        %2700 = vmatprep.subr.mxu0 0.0
        %2701 = vmatpush1.msra.mxu0 0.0
        %2702 = vmatprep.subr.mxu0 0.0
        %2703 = vmatpush1.msra.mxu0 0.0
        %2704 = vmatprep.subr.mxu0 0.0
        %2705 = vmatpush1.msra.mxu0 0.0
        %2706 = vmatprep.subr.mxu0 0.0
        %2707 = vmatpush1.msra.mxu0 0.0
        %2708 = vmatprep.subr.mxu0 0.0
        %2709 = vmatpush1.msra.mxu0 0.0
        %2710 = vmatprep.subr.mxu0 0.0
        %2711 = vmatpush1.msra.mxu0 0.0
        %2712 = vmatprep.subr.mxu0 0.0
        %2713 = vmatpush1.msra.mxu0 0.0
        %2714 = vmatprep.subr.mxu0 0.0
        %2715 = vmatpush1.msra.mxu0 0.0
        %2716 = vmatprep.subr.mxu0 0.0
        %2717 = vmatpush1.msra.mxu0 0.0
        %2718 = vmatprep.subr.mxu0 0.0
        %2719 = vmatpush1.msra.mxu0 0.0
        %2720 = vmatprep.subr.mxu0 0.0
        %2721 = vmatpush1.msra.mxu0 0.0
        %2722 = vmatprep.subr.mxu0 0.0
        %2723 = vmatpush1.msra.mxu0 0.0
        %2724 = vmatprep.subr.mxu0 0.0
        %2725 = vmatpush1.msra.mxu0 0.0
        %2726 = vmatprep.subr.mxu0 0.0
        %2727 = vmatpush1.msra.mxu0 0.0
        %2728 = vmatprep.subr.mxu0 0.0
        %2729 = vmatpush1.msra.mxu0 0.0
        %2730 = vmatprep.subr.mxu0 0.0
        %2731 = vmatpush1.msra.mxu0 0.0
        %2732 = vmatprep.mubr.f32.mxu0 0.0
        %2733 = vmatmul.mubr.f32.gmra.mrb[0].mxu0 %v864
        %v2734 = vpop.f32.mrb[0].mxu0
        %v2735 = vadd.f32 %v2661, %v2734
        %v2736 = vpop.f32.mrb[0].mxu0
        %2737 = vdwg.mxu0
        %2738 = vmatprep.subr.mxu0 0.0
        %2739 = vmatpush1.msra.mxu0 %v2649
        %2740 = vmatprep.subr.mxu0 0.0
        %2741 = vmatpush1.msra.mxu0 %v2650
        %2742 = vmatprep.subr.mxu0 0.0
        %2743 = vmatpush1.msra.mxu0 %v2651
        %2744 = vmatprep.subr.mxu0 0.0
        %2745 = vmatpush1.msra.mxu0 %v2652
        %2746 = vmatprep.subr.mxu0 0.0
        %2747 = vmatpush1.msra.mxu0 0.0
        %2748 = vmatprep.subr.mxu0 0.0
        %2749 = vmatpush1.msra.mxu0 0.0
        %2750 = vmatprep.subr.mxu0 0.0
        %2751 = vmatpush1.msra.mxu0 0.0
        %2752 = vmatprep.subr.mxu0 0.0
        %2753 = vmatpush1.msra.mxu0 0.0
        %2754 = vmatprep.subr.mxu0 0.0
        %2755 = vmatpush1.msra.mxu0 0.0
        %2756 = vmatprep.subr.mxu0 0.0
        %2757 = vmatpush1.msra.mxu0 0.0
        %2758 = vmatprep.subr.mxu0 0.0
        %2759 = vmatpush1.msra.mxu0 0.0
        %2760 = vmatprep.subr.mxu0 0.0
        %2761 = vmatpush1.msra.mxu0 0.0
        %2762 = vmatprep.subr.mxu0 0.0
        %2763 = vmatpush1.msra.mxu0 0.0
        %2764 = vmatprep.subr.mxu0 0.0
        %2765 = vmatpush1.msra.mxu0 0.0
        %2766 = vmatprep.subr.mxu0 0.0
        %2767 = vmatpush1.msra.mxu0 0.0
        %2768 = vmatprep.subr.mxu0 0.0
        %2769 = vmatpush1.msra.mxu0 0.0
        %2770 = vmatprep.subr.mxu0 0.0
        %2771 = vmatpush1.msra.mxu0 0.0
        %2772 = vmatprep.subr.mxu0 0.0
        %2773 = vmatpush1.msra.mxu0 0.0
        %2774 = vmatprep.subr.mxu0 0.0
        %2775 = vmatpush1.msra.mxu0 0.0
        %2776 = vmatprep.subr.mxu0 0.0
        %2777 = vmatpush1.msra.mxu0 0.0
        %2778 = vmatprep.subr.mxu0 0.0
        %2779 = vmatpush1.msra.mxu0 0.0
        %2780 = vmatprep.subr.mxu0 0.0
        %2781 = vmatpush1.msra.mxu0 0.0
        %2782 = vmatprep.subr.mxu0 0.0
        %2783 = vmatpush1.msra.mxu0 0.0
        %2784 = vmatprep.subr.mxu0 0.0
        %2785 = vmatpush1.msra.mxu0 0.0
        %2786 = vmatprep.subr.mxu0 0.0
        %2787 = vmatpush1.msra.mxu0 0.0
        %2788 = vmatprep.subr.mxu0 0.0
        %2789 = vmatpush1.msra.mxu0 0.0
        %2790 = vmatprep.subr.mxu0 0.0
        %2791 = vmatpush1.msra.mxu0 0.0
        %2792 = vmatprep.subr.mxu0 0.0
        %2793 = vmatpush1.msra.mxu0 0.0
        %2794 = vmatprep.subr.mxu0 0.0
        %2795 = vmatpush1.msra.mxu0 0.0
        %2796 = vmatprep.subr.mxu0 0.0
        %2797 = vmatpush1.msra.mxu0 0.0
        %2798 = vmatprep.subr.mxu0 0.0
        %2799 = vmatpush1.msra.mxu0 0.0
        %2800 = vmatprep.subr.mxu0 0.0
        %2801 = vmatpush1.msra.mxu0 0.0
        %2802 = vmatprep.mubr.f32.mxu0 0.0
        %2803 = vmatmul.mubr.f32.gmra.mrb[0].mxu0 %v937
        %v2804 = vpop.f32.mrb[0].mxu0
        %v2805 = vadd.f32 %v2665, %v2804
        %v2806 = vpop.f32.mrb[0].mxu0
        %2807 = vdwg.mxu0
        %s2808 = scalar_lea.vmem %s772, 384 [#allocation2]
        %v2809 = vld [vmem:[%s2808] sm:$0xff]
        %v2810 = vld [vmem:[%s2808 + $0x8] sm:$0xff]
        %v2811 = vld [vmem:[%s2808 + $0x10] sm:$0xff]
        %v2812 = vld [vmem:[%s2808 + $0x18] sm:$0xff]
        %v2813 = vld [vmem:[%s2808 + $0x20] sm:$0xff]
        %v2814 = vld [vmem:[%s2808 + $0x28] sm:$0xff]
        %v2815 = vld [vmem:[%s2808 + $0x30] sm:$0xff]
        %v2816 = vld [vmem:[%s2808 + $0x38] sm:$0xff]
        %s2817 = scalar_lea.vmem %s779, 12 [#allocation3]
        %v2818 = vld [vmem:[%s2817] sm:$0x1]
        %v2819 = vld [vmem:[%s2817 + $0x1] sm:$0x1]
        %v2822 = vlaneseq
        %v2823 = vshrl.u32 %v2822, 7
        %v2824 = vsub.s32 0, %v2823
        %v2825 = vrot.slane %v2818, %v2824
        %v2826 = vlaneseq
        %v2827 = vshrl.u32 %v2826, 7
        %v2828 = vsub.s32 0, %v2827
        %v2829 = vrot.slane %v2819, %v2828
        %2832 = vmatprep.subr.mxu0 0.0
        %2833 = vmatpush1.msra.mxu0 %v2809
        %2834 = vmatprep.subr.mxu0 0.0
        %2835 = vmatpush1.msra.mxu0 %v2810
        %2836 = vmatprep.subr.mxu0 0.0
        %2837 = vmatpush1.msra.mxu0 %v2811
        %2838 = vmatprep.subr.mxu0 0.0
        %2839 = vmatpush1.msra.mxu0 %v2812
        %2840 = vmatprep.subr.mxu0 0.0
        %2841 = vmatpush1.msra.mxu0 0.0
        %2842 = vmatprep.subr.mxu0 0.0
        %2843 = vmatpush1.msra.mxu0 0.0
        %2844 = vmatprep.subr.mxu0 0.0
        %2845 = vmatpush1.msra.mxu0 0.0
        %2846 = vmatprep.subr.mxu0 0.0
        %2847 = vmatpush1.msra.mxu0 0.0
        %2848 = vmatprep.subr.mxu0 0.0
        %2849 = vmatpush1.msra.mxu0 0.0
        %2850 = vmatprep.subr.mxu0 0.0
        %2851 = vmatpush1.msra.mxu0 0.0
        %2852 = vmatprep.subr.mxu0 0.0
        %2853 = vmatpush1.msra.mxu0 0.0
        %2854 = vmatprep.subr.mxu0 0.0
        %2855 = vmatpush1.msra.mxu0 0.0
        %2856 = vmatprep.subr.mxu0 0.0
        %2857 = vmatpush1.msra.mxu0 0.0
        %2858 = vmatprep.subr.mxu0 0.0
        %2859 = vmatpush1.msra.mxu0 0.0
        %2860 = vmatprep.subr.mxu0 0.0
        %2861 = vmatpush1.msra.mxu0 0.0
        %2862 = vmatprep.subr.mxu0 0.0
        %2863 = vmatpush1.msra.mxu0 0.0
        %2864 = vmatprep.subr.mxu0 0.0
        %2865 = vmatpush1.msra.mxu0 0.0
        %2866 = vmatprep.subr.mxu0 0.0
        %2867 = vmatpush1.msra.mxu0 0.0
        %2868 = vmatprep.subr.mxu0 0.0
        %2869 = vmatpush1.msra.mxu0 0.0
        %2870 = vmatprep.subr.mxu0 0.0
        %2871 = vmatpush1.msra.mxu0 0.0
        %2872 = vmatprep.subr.mxu0 0.0
        %2873 = vmatpush1.msra.mxu0 0.0
        %2874 = vmatprep.subr.mxu0 0.0
        %2875 = vmatpush1.msra.mxu0 0.0
        %2876 = vmatprep.subr.mxu0 0.0
        %2877 = vmatpush1.msra.mxu0 0.0
        %2878 = vmatprep.subr.mxu0 0.0
        %2879 = vmatpush1.msra.mxu0 0.0
        %2880 = vmatprep.subr.mxu0 0.0
        %2881 = vmatpush1.msra.mxu0 0.0
        %2882 = vmatprep.subr.mxu0 0.0
        %2883 = vmatpush1.msra.mxu0 0.0
        %2884 = vmatprep.subr.mxu0 0.0
        %2885 = vmatpush1.msra.mxu0 0.0
        %2886 = vmatprep.subr.mxu0 0.0
        %2887 = vmatpush1.msra.mxu0 0.0
        %2888 = vmatprep.subr.mxu0 0.0
        %2889 = vmatpush1.msra.mxu0 0.0
        %2890 = vmatprep.subr.mxu0 0.0
        %2891 = vmatpush1.msra.mxu0 0.0
        %2892 = vmatprep.subr.mxu0 0.0
        %2893 = vmatpush1.msra.mxu0 0.0
        %2894 = vmatprep.subr.mxu0 0.0
        %2895 = vmatpush1.msra.mxu0 0.0
        %2896 = vmatprep.mubr.f32.mxu0 0.0
        %2897 = vmatmul.mubr.f32.gmra.mrb[0].mxu0 %v864
        %v2898 = vpop.f32.mrb[0].mxu0
        %v2899 = vadd.f32 %v2825, %v2898
        %v2900 = vpop.f32.mrb[0].mxu0
        %2901 = vdwg.mxu0
        %2902 = vmatprep.subr.mxu0 0.0
        %2903 = vmatpush1.msra.mxu0 %v2813
        %2904 = vmatprep.subr.mxu0 0.0
        %2905 = vmatpush1.msra.mxu0 %v2814
        %2906 = vmatprep.subr.mxu0 0.0
        %2907 = vmatpush1.msra.mxu0 %v2815
        %2908 = vmatprep.subr.mxu0 0.0
        %2909 = vmatpush1.msra.mxu0 %v2816
        %2910 = vmatprep.subr.mxu0 0.0
        %2911 = vmatpush1.msra.mxu0 0.0
        %2912 = vmatprep.subr.mxu0 0.0
        %2913 = vmatpush1.msra.mxu0 0.0
        %2914 = vmatprep.subr.mxu0 0.0
        %2915 = vmatpush1.msra.mxu0 0.0
        %2916 = vmatprep.subr.mxu0 0.0
        %2917 = vmatpush1.msra.mxu0 0.0
        %2918 = vmatprep.subr.mxu0 0.0
        %2919 = vmatpush1.msra.mxu0 0.0
        %2920 = vmatprep.subr.mxu0 0.0
        %2921 = vmatpush1.msra.mxu0 0.0
        %2922 = vmatprep.subr.mxu0 0.0
        %2923 = vmatpush1.msra.mxu0 0.0
        %2924 = vmatprep.subr.mxu0 0.0
        %2925 = vmatpush1.msra.mxu0 0.0
        %2926 = vmatprep.subr.mxu0 0.0
        %2927 = vmatpush1.msra.mxu0 0.0
        %2928 = vmatprep.subr.mxu0 0.0
        %2929 = vmatpush1.msra.mxu0 0.0
        %2930 = vmatprep.subr.mxu0 0.0
        %2931 = vmatpush1.msra.mxu0 0.0
        %2932 = vmatprep.subr.mxu0 0.0
        %2933 = vmatpush1.msra.mxu0 0.0
        %2934 = vmatprep.subr.mxu0 0.0
        %2935 = vmatpush1.msra.mxu0 0.0
        %2936 = vmatprep.subr.mxu0 0.0
        %2937 = vmatpush1.msra.mxu0 0.0
        %2938 = vmatprep.subr.mxu0 0.0
        %2939 = vmatpush1.msra.mxu0 0.0
        %2940 = vmatprep.subr.mxu0 0.0
        %2941 = vmatpush1.msra.mxu0 0.0
        %2942 = vmatprep.subr.mxu0 0.0
        %2943 = vmatpush1.msra.mxu0 0.0
        %2944 = vmatprep.subr.mxu0 0.0
        %2945 = vmatpush1.msra.mxu0 0.0
        %2946 = vmatprep.subr.mxu0 0.0
        %2947 = vmatpush1.msra.mxu0 0.0
        %2948 = vmatprep.subr.mxu0 0.0
        %2949 = vmatpush1.msra.mxu0 0.0
        %2950 = vmatprep.subr.mxu0 0.0
        %2951 = vmatpush1.msra.mxu0 0.0
        %2952 = vmatprep.subr.mxu0 0.0
        %2953 = vmatpush1.msra.mxu0 0.0
        %2954 = vmatprep.subr.mxu0 0.0
        %2955 = vmatpush1.msra.mxu0 0.0
        %2956 = vmatprep.subr.mxu0 0.0
        %2957 = vmatpush1.msra.mxu0 0.0
        %2958 = vmatprep.subr.mxu0 0.0
        %2959 = vmatpush1.msra.mxu0 0.0
        %2960 = vmatprep.subr.mxu0 0.0
        %2961 = vmatpush1.msra.mxu0 0.0
        %2962 = vmatprep.subr.mxu0 0.0
        %2963 = vmatpush1.msra.mxu0 0.0
        %2964 = vmatprep.subr.mxu0 0.0
        %2965 = vmatpush1.msra.mxu0 0.0
        %2966 = vmatprep.mubr.f32.mxu0 0.0
        %2967 = vmatmul.mubr.f32.gmra.mrb[0].mxu0 %v937
        %v2968 = vpop.f32.mrb[0].mxu0
        %v2969 = vadd.f32 %v2829, %v2968
        %v2970 = vpop.f32.mrb[0].mxu0
        %2971 = vdwg.mxu0
        %s2972 = scalar_lea.vmem %s772, 640 [#allocation2]
        %v2973 = vld [vmem:[%s2972] sm:$0xff]
        %v2974 = vld [vmem:[%s2972 + $0x8] sm:$0xff]
        %v2975 = vld [vmem:[%s2972 + $0x10] sm:$0xff]
        %v2976 = vld [vmem:[%s2972 + $0x18] sm:$0xff]
        %v2977 = vld [vmem:[%s2972 + $0x20] sm:$0xff]
        %v2978 = vld [vmem:[%s2972 + $0x28] sm:$0xff]
        %v2979 = vld [vmem:[%s2972 + $0x30] sm:$0xff]
        %v2980 = vld [vmem:[%s2972 + $0x38] sm:$0xff]
        %s2981 = scalar_lea.vmem %s779, 20 [#allocation3]
        %v2982 = vld [vmem:[%s2981] sm:$0x1]
        %v2983 = vld [vmem:[%s2981 + $0x1] sm:$0x1]
        %v2986 = vlaneseq
        %v2987 = vshrl.u32 %v2986, 7
        %v2988 = vsub.s32 0, %v2987
        %v2989 = vrot.slane %v2982, %v2988
        %v2990 = vlaneseq
        %v2991 = vshrl.u32 %v2990, 7
        %v2992 = vsub.s32 0, %v2991
        %v2993 = vrot.slane %v2983, %v2992
        %2996 = vmatprep.subr.mxu0 0.0
        %2997 = vmatpush1.msra.mxu0 %v2973
        %2998 = vmatprep.subr.mxu0 0.0
        %2999 = vmatpush1.msra.mxu0 %v2974
        %3000 = vmatprep.subr.mxu0 0.0
        %3001 = vmatpush1.msra.mxu0 %v2975
        %3002 = vmatprep.subr.mxu0 0.0
        %3003 = vmatpush1.msra.mxu0 %v2976
        %3004 = vmatprep.subr.mxu0 0.0
        %3005 = vmatpush1.msra.mxu0 0.0
        %3006 = vmatprep.subr.mxu0 0.0
        %3007 = vmatpush1.msra.mxu0 0.0
        %3008 = vmatprep.subr.mxu0 0.0
        %3009 = vmatpush1.msra.mxu0 0.0
        %3010 = vmatprep.subr.mxu0 0.0
        %3011 = vmatpush1.msra.mxu0 0.0
        %3012 = vmatprep.subr.mxu0 0.0
        %3013 = vmatpush1.msra.mxu0 0.0
        %3014 = vmatprep.subr.mxu0 0.0
        %3015 = vmatpush1.msra.mxu0 0.0
        %3016 = vmatprep.subr.mxu0 0.0
        %3017 = vmatpush1.msra.mxu0 0.0
        %3018 = vmatprep.subr.mxu0 0.0
        %3019 = vmatpush1.msra.mxu0 0.0
        %3020 = vmatprep.subr.mxu0 0.0
        %3021 = vmatpush1.msra.mxu0 0.0
        %3022 = vmatprep.subr.mxu0 0.0
        %3023 = vmatpush1.msra.mxu0 0.0
        %3024 = vmatprep.subr.mxu0 0.0
        %3025 = vmatpush1.msra.mxu0 0.0
        %3026 = vmatprep.subr.mxu0 0.0
        %3027 = vmatpush1.msra.mxu0 0.0
        %3028 = vmatprep.subr.mxu0 0.0
        %3029 = vmatpush1.msra.mxu0 0.0
        %3030 = vmatprep.subr.mxu0 0.0
        %3031 = vmatpush1.msra.mxu0 0.0
        %3032 = vmatprep.subr.mxu0 0.0
        %3033 = vmatpush1.msra.mxu0 0.0
        %3034 = vmatprep.subr.mxu0 0.0
        %3035 = vmatpush1.msra.mxu0 0.0
        %3036 = vmatprep.subr.mxu0 0.0
        %3037 = vmatpush1.msra.mxu0 0.0
        %3038 = vmatprep.subr.mxu0 0.0
        %3039 = vmatpush1.msra.mxu0 0.0
        %3040 = vmatprep.subr.mxu0 0.0
        %3041 = vmatpush1.msra.mxu0 0.0
        %3042 = vmatprep.subr.mxu0 0.0
        %3043 = vmatpush1.msra.mxu0 0.0
        %3044 = vmatprep.subr.mxu0 0.0
        %3045 = vmatpush1.msra.mxu0 0.0
        %3046 = vmatprep.subr.mxu0 0.0
        %3047 = vmatpush1.msra.mxu0 0.0
        %3048 = vmatprep.subr.mxu0 0.0
        %3049 = vmatpush1.msra.mxu0 0.0
        %3050 = vmatprep.subr.mxu0 0.0
        %3051 = vmatpush1.msra.mxu0 0.0
        %3052 = vmatprep.subr.mxu0 0.0
        %3053 = vmatpush1.msra.mxu0 0.0
        %3054 = vmatprep.subr.mxu0 0.0
        %3055 = vmatpush1.msra.mxu0 0.0
        %3056 = vmatprep.subr.mxu0 0.0
        %3057 = vmatpush1.msra.mxu0 0.0
        %3058 = vmatprep.subr.mxu0 0.0
        %3059 = vmatpush1.msra.mxu0 0.0
        %3060 = vmatprep.mubr.f32.mxu0 0.0
        %3061 = vmatmul.mubr.f32.gmra.mrb[0].mxu0 %v864
        %v3062 = vpop.f32.mrb[0].mxu0
        %v3063 = vadd.f32 %v2989, %v3062
        %v3064 = vpop.f32.mrb[0].mxu0
        %3065 = vdwg.mxu0
        %3066 = vmatprep.subr.mxu0 0.0
        %3067 = vmatpush1.msra.mxu0 %v2977
        %3068 = vmatprep.subr.mxu0 0.0
        %3069 = vmatpush1.msra.mxu0 %v2978
        %3070 = vmatprep.subr.mxu0 0.0
        %3071 = vmatpush1.msra.mxu0 %v2979
        %3072 = vmatprep.subr.mxu0 0.0
        %3073 = vmatpush1.msra.mxu0 %v2980
        %3074 = vmatprep.subr.mxu0 0.0
        %3075 = vmatpush1.msra.mxu0 0.0
        %3076 = vmatprep.subr.mxu0 0.0
        %3077 = vmatpush1.msra.mxu0 0.0
        %3078 = vmatprep.subr.mxu0 0.0
        %3079 = vmatpush1.msra.mxu0 0.0
        %3080 = vmatprep.subr.mxu0 0.0
        %3081 = vmatpush1.msra.mxu0 0.0
        %3082 = vmatprep.subr.mxu0 0.0
        %3083 = vmatpush1.msra.mxu0 0.0
        %3084 = vmatprep.subr.mxu0 0.0
        %3085 = vmatpush1.msra.mxu0 0.0
        %3086 = vmatprep.subr.mxu0 0.0
        %3087 = vmatpush1.msra.mxu0 0.0
        %3088 = vmatprep.subr.mxu0 0.0
        %3089 = vmatpush1.msra.mxu0 0.0
        %3090 = vmatprep.subr.mxu0 0.0
        %3091 = vmatpush1.msra.mxu0 0.0
        %3092 = vmatprep.subr.mxu0 0.0
        %3093 = vmatpush1.msra.mxu0 0.0
        %3094 = vmatprep.subr.mxu0 0.0
        %3095 = vmatpush1.msra.mxu0 0.0
        %3096 = vmatprep.subr.mxu0 0.0
        %3097 = vmatpush1.msra.mxu0 0.0
        %3098 = vmatprep.subr.mxu0 0.0
        %3099 = vmatpush1.msra.mxu0 0.0
        %3100 = vmatprep.subr.mxu0 0.0
        %3101 = vmatpush1.msra.mxu0 0.0
        %3102 = vmatprep.subr.mxu0 0.0
        %3103 = vmatpush1.msra.mxu0 0.0
        %3104 = vmatprep.subr.mxu0 0.0
        %3105 = vmatpush1.msra.mxu0 0.0
        %3106 = vmatprep.subr.mxu0 0.0
        %3107 = vmatpush1.msra.mxu0 0.0
        %3108 = vmatprep.subr.mxu0 0.0
        %3109 = vmatpush1.msra.mxu0 0.0
        %3110 = vmatprep.subr.mxu0 0.0
        %3111 = vmatpush1.msra.mxu0 0.0
        %3112 = vmatprep.subr.mxu0 0.0
        %3113 = vmatpush1.msra.mxu0 0.0
        %3114 = vmatprep.subr.mxu0 0.0
        %3115 = vmatpush1.msra.mxu0 0.0
        %3116 = vmatprep.subr.mxu0 0.0
        %3117 = vmatpush1.msra.mxu0 0.0
        %3118 = vmatprep.subr.mxu0 0.0
        %3119 = vmatpush1.msra.mxu0 0.0
        %3120 = vmatprep.subr.mxu0 0.0
        %3121 = vmatpush1.msra.mxu0 0.0
        %3122 = vmatprep.subr.mxu0 0.0
        %3123 = vmatpush1.msra.mxu0 0.0
        %3124 = vmatprep.subr.mxu0 0.0
        %3125 = vmatpush1.msra.mxu0 0.0
        %3126 = vmatprep.subr.mxu0 0.0
        %3127 = vmatpush1.msra.mxu0 0.0
        %3128 = vmatprep.subr.mxu0 0.0
        %3129 = vmatpush1.msra.mxu0 0.0
        %3130 = vmatprep.mubr.f32.mxu0 0.0
        %3131 = vmatmul.mubr.f32.gmra.mrb[0].mxu0 %v937
        %v3132 = vpop.f32.mrb[0].mxu0
        %v3133 = vadd.f32 %v2993, %v3132
        %v3134 = vpop.f32.mrb[0].mxu0
        %3135 = vdwg.mxu0
        %v3137 = vsel %vm1337, %v2735, 0
        %v3140 = vsel %vm1337, %v2899, 0
        %3142 = vmatprep.subr.mxu0 0.0
        %3143 = vmatpush1.xpose.msra.mxu0 %v3140
        %3144 = vmatprep.subr.mxu0 0.0
        %3145 = vmatpush1.xpose.msra.mxu0 0.0
        %3146 = vmatprep.subr.mxu0 0.0
        %3147 = vmatpush1.xpose.msra.mxu0 0.0
        %3148 = vmatprep.subr.mxu0 0.0
        %3149 = vmatpush1.xpose.msra.mxu0 0.0
        %3150 = vmatprep.subr.mxu0 0.0
        %3151 = vmatpush1.xpose.msra.mxu0 0.0
        %3152 = vmatprep.subr.mxu0 0.0
        %3153 = vmatpush1.xpose.msra.mxu0 0.0
        %3154 = vmatprep.subr.mxu0 0.0
        %3155 = vmatpush1.xpose.msra.mxu0 0.0
        %3156 = vmatprep.subr.mxu0 0.0
        %3157 = vmatpush1.xpose.msra.mxu0 0.0
        %3158 = vmatprep.subr.mxu0 0.0
        %3159 = vmatpush1.xpose.msra.mxu0 0.0
        %3160 = vmatprep.subr.mxu0 0.0
        %3161 = vmatpush1.xpose.msra.mxu0 0.0
        %3162 = vmatprep.subr.mxu0 0.0
        %3163 = vmatpush1.xpose.msra.mxu0 0.0
        %3164 = vmatprep.subr.mxu0 0.0
        %3165 = vmatpush1.xpose.msra.mxu0 0.0
        %3166 = vmatprep.subr.mxu0 0.0
        %3167 = vmatpush1.xpose.msra.mxu0 0.0
        %3168 = vmatprep.subr.mxu0 0.0
        %3169 = vmatpush1.xpose.msra.mxu0 0.0
        %3170 = vmatprep.subr.mxu0 0.0
        %3171 = vmatpush1.xpose.msra.mxu0 0.0
        %3172 = vmatprep.subr.mxu0 0.0
        %3173 = vmatpush1.xpose.msra.mxu0 0.0
        %3174 = vmatprep.subr.mxu0 0.0
        %3175 = vmatpush1.xpose.msra.mxu0 0.0
        %3176 = vmatprep.subr.mxu0 0.0
        %3177 = vmatpush1.xpose.msra.mxu0 0.0
        %3178 = vmatprep.subr.mxu0 0.0
        %3179 = vmatpush1.xpose.msra.mxu0 0.0
        %3180 = vmatprep.subr.mxu0 0.0
        %3181 = vmatpush1.xpose.msra.mxu0 0.0
        %3182 = vmatprep.subr.mxu0 0.0
        %3183 = vmatpush1.xpose.msra.mxu0 0.0
        %3184 = vmatprep.subr.mxu0 0.0
        %3185 = vmatpush1.xpose.msra.mxu0 0.0
        %3186 = vmatprep.subr.mxu0 0.0
        %3187 = vmatpush1.xpose.msra.mxu0 0.0
        %3188 = vmatprep.subr.mxu0 0.0
        %3189 = vmatpush1.xpose.msra.mxu0 0.0
        %3190 = vmatprep.subr.mxu0 0.0
        %3191 = vmatpush1.xpose.msra.mxu0 0.0
        %3192 = vmatprep.subr.mxu0 0.0
        %3193 = vmatpush1.xpose.msra.mxu0 0.0
        %3194 = vmatprep.subr.mxu0 0.0
        %3195 = vmatpush1.xpose.msra.mxu0 0.0
        %3196 = vmatprep.subr.mxu0 0.0
        %3197 = vmatpush1.xpose.msra.mxu0 0.0
        %3198 = vmatprep.subr.mxu0 0.0
        %3199 = vmatpush1.xpose.msra.mxu0 0.0
        %3200 = vmatprep.subr.mxu0 0.0
        %3201 = vmatpush1.xpose.msra.mxu0 0.0
        %3202 = vmatprep.subr.mxu0 0.0
        %3203 = vmatpush1.xpose.msra.mxu0 0.0
        %3204 = vmatprep.subr.mxu0 0.0
        %3205 = vmatpush1.xpose.msra.mxu0 0.0
        %3206 = vmatprep.mubr.f32.mxu0 0.0
        %3207 = vmatmul.mubr.f32.gmra.mrb[0].mxu0 %v3137
        %v3208 = vpop.f32.mrb[0].mxu0
        %v3209 = vadd.f32 0.0, %v3208
        %v3210 = vpop.f32.mrb[0].mxu0
        %3211 = vdwg.mxu0
        %v3213 = vsel %vm1337, %v2805, 0
        %v3216 = vsel %vm1337, %v2969, 0
        %3218 = vmatprep.subr.mxu0 0.0
        %3219 = vmatpush1.xpose.msra.mxu0 %v3216
        %3220 = vmatprep.subr.mxu0 0.0
        %3221 = vmatpush1.xpose.msra.mxu0 0.0
        %3222 = vmatprep.subr.mxu0 0.0
        %3223 = vmatpush1.xpose.msra.mxu0 0.0
        %3224 = vmatprep.subr.mxu0 0.0
        %3225 = vmatpush1.xpose.msra.mxu0 0.0
        %3226 = vmatprep.subr.mxu0 0.0
        %3227 = vmatpush1.xpose.msra.mxu0 0.0
        %3228 = vmatprep.subr.mxu0 0.0
        %3229 = vmatpush1.xpose.msra.mxu0 0.0
        %3230 = vmatprep.subr.mxu0 0.0
        %3231 = vmatpush1.xpose.msra.mxu0 0.0
        %3232 = vmatprep.subr.mxu0 0.0
        %3233 = vmatpush1.xpose.msra.mxu0 0.0
        %3234 = vmatprep.subr.mxu0 0.0
        %3235 = vmatpush1.xpose.msra.mxu0 0.0
        %3236 = vmatprep.subr.mxu0 0.0
        %3237 = vmatpush1.xpose.msra.mxu0 0.0
        %3238 = vmatprep.subr.mxu0 0.0
        %3239 = vmatpush1.xpose.msra.mxu0 0.0
        %3240 = vmatprep.subr.mxu0 0.0
        %3241 = vmatpush1.xpose.msra.mxu0 0.0
        %3242 = vmatprep.subr.mxu0 0.0
        %3243 = vmatpush1.xpose.msra.mxu0 0.0
        %3244 = vmatprep.subr.mxu0 0.0
        %3245 = vmatpush1.xpose.msra.mxu0 0.0
        %3246 = vmatprep.subr.mxu0 0.0
        %3247 = vmatpush1.xpose.msra.mxu0 0.0
        %3248 = vmatprep.subr.mxu0 0.0
        %3249 = vmatpush1.xpose.msra.mxu0 0.0
        %3250 = vmatprep.subr.mxu0 0.0
        %3251 = vmatpush1.xpose.msra.mxu0 0.0
        %3252 = vmatprep.subr.mxu0 0.0
        %3253 = vmatpush1.xpose.msra.mxu0 0.0
        %3254 = vmatprep.subr.mxu0 0.0
        %3255 = vmatpush1.xpose.msra.mxu0 0.0
        %3256 = vmatprep.subr.mxu0 0.0
        %3257 = vmatpush1.xpose.msra.mxu0 0.0
        %3258 = vmatprep.subr.mxu0 0.0
        %3259 = vmatpush1.xpose.msra.mxu0 0.0
        %3260 = vmatprep.subr.mxu0 0.0
        %3261 = vmatpush1.xpose.msra.mxu0 0.0
        %3262 = vmatprep.subr.mxu0 0.0
        %3263 = vmatpush1.xpose.msra.mxu0 0.0
        %3264 = vmatprep.subr.mxu0 0.0
        %3265 = vmatpush1.xpose.msra.mxu0 0.0
        %3266 = vmatprep.subr.mxu0 0.0
        %3267 = vmatpush1.xpose.msra.mxu0 0.0
        %3268 = vmatprep.subr.mxu0 0.0
        %3269 = vmatpush1.xpose.msra.mxu0 0.0
        %3270 = vmatprep.subr.mxu0 0.0
        %3271 = vmatpush1.xpose.msra.mxu0 0.0
        %3272 = vmatprep.subr.mxu0 0.0
        %3273 = vmatpush1.xpose.msra.mxu0 0.0
        %3274 = vmatprep.subr.mxu0 0.0
        %3275 = vmatpush1.xpose.msra.mxu0 0.0
        %3276 = vmatprep.subr.mxu0 0.0
        %3277 = vmatpush1.xpose.msra.mxu0 0.0
        %3278 = vmatprep.subr.mxu0 0.0
        %3279 = vmatpush1.xpose.msra.mxu0 0.0
        %3280 = vmatprep.subr.mxu0 0.0
        %3281 = vmatpush1.xpose.msra.mxu0 0.0
        %3282 = vmatprep.mubr.f32.mxu0 0.0
        %3283 = vmatmul.mubr.f32.gmra.mrb[0].mxu0 %v3213
        %v3284 = vpop.f32.mrb[0].mxu0
        %v3285 = vadd.f32 0.0, %v3284
        %v3286 = vpop.f32.mrb[0].mxu0
        %3287 = vdwg.mxu0
        %v3288 = vmul.f32 %v3209, 0.35355338
        %v3289 = vmul.f32 %v3285, 0.35355338
        %v3290 = vsel %vm1337, %v3288, -inf
        %3291 = vmax.xlane.f32.xlu0 %v3290
        %v3292 = vpop.xlane.xlu0 %3291
        %v3293 = vsel %vm1337, %v3289, -inf
        %3294 = vmax.xlane.f32.xlu0 %v3293
        %v3295 = vpop.xlane.xlu0 %3294
        %v3296 = vsub.f32 %v3288, %v3292
        %v3297 = vsub.f32 %v3289, %v3295
        %v3298 = vmul.f32 %v3296, 1.442695
        %v3299 = vpow.pop %v3298
        %v3300 = vmul.f32 %v3297, 1.442695
        %v3301 = vpow.pop %v3300
        %v3302 = vsel %vm1337, %v3299, 0.0
        %3303 = vadd.xlane.f32.xlu0 %v3302
        %v3304 = vpop.xlane.xlu0 %3303
        %v3305 = vsel %vm1337, %v3301, 0.0
        %3306 = vadd.xlane.f32.xlu0 %v3305
        %v3307 = vpop.xlane.xlu0 %3306
        %v3308 = vrcp.pop %v3304
        %v3309 = vrcp.pop %v3307
        %v3310 = vmul.f32 %v3299, %v3308
        %v3311 = vmul.f32 %v3301, %v3309
        %s3312 = scalar_lea.vmem %s823, 16 [#allocation6]
        %3313 = vst.msk [vmem:[%s3312] sm:$0xff] %vm1337, %v3310
        %3314 = vst.msk [vmem:[%s3312 + $0x20] sm:$0xff] %vm1337, %v3311
        %v3316 = vsel %vm1337, %v3310, 0
        %3318 = vmatprep.subr.mxu0 0.0
        %3319 = vmatpush1.msra.mxu0 %v3063
        %3320 = vmatprep.subr.mxu0 0.0
        %3321 = vmatpush1.msra.mxu0 0.0
        %3322 = vmatprep.subr.mxu0 0.0
        %3323 = vmatpush1.msra.mxu0 0.0
        %3324 = vmatprep.subr.mxu0 0.0
        %3325 = vmatpush1.msra.mxu0 0.0
        %3326 = vmatprep.subr.mxu0 0.0
        %3327 = vmatpush1.msra.mxu0 0.0
        %3328 = vmatprep.subr.mxu0 0.0
        %3329 = vmatpush1.msra.mxu0 0.0
        %3330 = vmatprep.subr.mxu0 0.0
        %3331 = vmatpush1.msra.mxu0 0.0
        %3332 = vmatprep.subr.mxu0 0.0
        %3333 = vmatpush1.msra.mxu0 0.0
        %3334 = vmatprep.subr.mxu0 0.0
        %3335 = vmatpush1.msra.mxu0 0.0
        %3336 = vmatprep.subr.mxu0 0.0
        %3337 = vmatpush1.msra.mxu0 0.0
        %3338 = vmatprep.subr.mxu0 0.0
        %3339 = vmatpush1.msra.mxu0 0.0
        %3340 = vmatprep.subr.mxu0 0.0
        %3341 = vmatpush1.msra.mxu0 0.0
        %3342 = vmatprep.subr.mxu0 0.0
        %3343 = vmatpush1.msra.mxu0 0.0
        %3344 = vmatprep.subr.mxu0 0.0
        %3345 = vmatpush1.msra.mxu0 0.0
        %3346 = vmatprep.subr.mxu0 0.0
        %3347 = vmatpush1.msra.mxu0 0.0
        %3348 = vmatprep.subr.mxu0 0.0
        %3349 = vmatpush1.msra.mxu0 0.0
        %3350 = vmatprep.subr.mxu0 0.0
        %3351 = vmatpush1.msra.mxu0 0.0
        %3352 = vmatprep.subr.mxu0 0.0
        %3353 = vmatpush1.msra.mxu0 0.0
        %3354 = vmatprep.subr.mxu0 0.0
        %3355 = vmatpush1.msra.mxu0 0.0
        %3356 = vmatprep.subr.mxu0 0.0
        %3357 = vmatpush1.msra.mxu0 0.0
        %3358 = vmatprep.subr.mxu0 0.0
        %3359 = vmatpush1.msra.mxu0 0.0
        %3360 = vmatprep.subr.mxu0 0.0
        %3361 = vmatpush1.msra.mxu0 0.0
        %3362 = vmatprep.subr.mxu0 0.0
        %3363 = vmatpush1.msra.mxu0 0.0
        %3364 = vmatprep.subr.mxu0 0.0
        %3365 = vmatpush1.msra.mxu0 0.0
        %3366 = vmatprep.subr.mxu0 0.0
        %3367 = vmatpush1.msra.mxu0 0.0
        %3368 = vmatprep.subr.mxu0 0.0
        %3369 = vmatpush1.msra.mxu0 0.0
        %3370 = vmatprep.subr.mxu0 0.0
        %3371 = vmatpush1.msra.mxu0 0.0
        %3372 = vmatprep.subr.mxu0 0.0
        %3373 = vmatpush1.msra.mxu0 0.0
        %3374 = vmatprep.subr.mxu0 0.0
        %3375 = vmatpush1.msra.mxu0 0.0
        %3376 = vmatprep.subr.mxu0 0.0
        %3377 = vmatpush1.msra.mxu0 0.0
        %3378 = vmatprep.subr.mxu0 0.0
        %3379 = vmatpush1.msra.mxu0 0.0
        %3380 = vmatprep.subr.mxu0 0.0
        %3381 = vmatpush1.msra.mxu0 0.0
        %3382 = vmatprep.mubr.f32.mxu0 0.0
        %3383 = vmatmul.mubr.f32.gmra.mrb[0].mxu0 %v3316
        %v3384 = vpop.f32.mrb[0].mxu0
        %v3385 = vadd.f32 0.0, %v3384
        %v3386 = vpop.f32.mrb[0].mxu0
        %3387 = vdwg.mxu0
        %v3389 = vsel %vm1337, %v3311, 0
        %3391 = vmatprep.subr.mxu0 0.0
        %3392 = vmatpush1.msra.mxu0 %v3133
        %3393 = vmatprep.subr.mxu0 0.0
        %3394 = vmatpush1.msra.mxu0 0.0
        %3395 = vmatprep.subr.mxu0 0.0
        %3396 = vmatpush1.msra.mxu0 0.0
        %3397 = vmatprep.subr.mxu0 0.0
        %3398 = vmatpush1.msra.mxu0 0.0
        %3399 = vmatprep.subr.mxu0 0.0
        %3400 = vmatpush1.msra.mxu0 0.0
        %3401 = vmatprep.subr.mxu0 0.0
        %3402 = vmatpush1.msra.mxu0 0.0
        %3403 = vmatprep.subr.mxu0 0.0
        %3404 = vmatpush1.msra.mxu0 0.0
        %3405 = vmatprep.subr.mxu0 0.0
        %3406 = vmatpush1.msra.mxu0 0.0
        %3407 = vmatprep.subr.mxu0 0.0
        %3408 = vmatpush1.msra.mxu0 0.0
        %3409 = vmatprep.subr.mxu0 0.0
        %3410 = vmatpush1.msra.mxu0 0.0
        %3411 = vmatprep.subr.mxu0 0.0
        %3412 = vmatpush1.msra.mxu0 0.0
        %3413 = vmatprep.subr.mxu0 0.0
        %3414 = vmatpush1.msra.mxu0 0.0
        %3415 = vmatprep.subr.mxu0 0.0
        %3416 = vmatpush1.msra.mxu0 0.0
        %3417 = vmatprep.subr.mxu0 0.0
        %3418 = vmatpush1.msra.mxu0 0.0
        %3419 = vmatprep.subr.mxu0 0.0
        %3420 = vmatpush1.msra.mxu0 0.0
        %3421 = vmatprep.subr.mxu0 0.0
        %3422 = vmatpush1.msra.mxu0 0.0
        %3423 = vmatprep.subr.mxu0 0.0
        %3424 = vmatpush1.msra.mxu0 0.0
        %3425 = vmatprep.subr.mxu0 0.0
        %3426 = vmatpush1.msra.mxu0 0.0
        %3427 = vmatprep.subr.mxu0 0.0
        %3428 = vmatpush1.msra.mxu0 0.0
        %3429 = vmatprep.subr.mxu0 0.0
        %3430 = vmatpush1.msra.mxu0 0.0
        %3431 = vmatprep.subr.mxu0 0.0
        %3432 = vmatpush1.msra.mxu0 0.0
        %3433 = vmatprep.subr.mxu0 0.0
        %3434 = vmatpush1.msra.mxu0 0.0
        %3435 = vmatprep.subr.mxu0 0.0
        %3436 = vmatpush1.msra.mxu0 0.0
        %3437 = vmatprep.subr.mxu0 0.0
        %3438 = vmatpush1.msra.mxu0 0.0
        %3439 = vmatprep.subr.mxu0 0.0
        %3440 = vmatpush1.msra.mxu0 0.0
        %3441 = vmatprep.subr.mxu0 0.0
        %3442 = vmatpush1.msra.mxu0 0.0
        %3443 = vmatprep.subr.mxu0 0.0
        %3444 = vmatpush1.msra.mxu0 0.0
        %3445 = vmatprep.subr.mxu0 0.0
        %3446 = vmatpush1.msra.mxu0 0.0
        %3447 = vmatprep.subr.mxu0 0.0
        %3448 = vmatpush1.msra.mxu0 0.0
        %3449 = vmatprep.subr.mxu0 0.0
        %3450 = vmatpush1.msra.mxu0 0.0
        %3451 = vmatprep.subr.mxu0 0.0
        %3452 = vmatpush1.msra.mxu0 0.0
        %3453 = vmatprep.subr.mxu0 0.0
        %3454 = vmatpush1.msra.mxu0 0.0
        %3455 = vmatprep.mubr.f32.mxu0 0.0
        %3456 = vmatmul.mubr.f32.gmra.mrb[0].mxu0 %v3389
        %v3457 = vpop.f32.mrb[0].mxu0
        %v3458 = vadd.f32 0.0, %v3457
        %v3459 = vpop.f32.mrb[0].mxu0
        %3460 = vdwg.mxu0
        %s3461 = scalar_lea.vmem %s3, 16
        %v3462 = vld [vmem:[%s3461] sm:$0xff]
        %v3464 = vsel %vm1337, %v3385, 0
        %v3467 = vsel %vm1337, %v3458, 0
        %3469 = vmatprep.subr.mxu0 0.0
        %3470 = vmatpush1.msra.mxu0 %v3462
        %3471 = vmatprep.subr.mxu0 0.0
        %3472 = vmatpush1.msra.mxu0 0.0
        %3473 = vmatprep.subr.mxu0 0.0
        %3474 = vmatpush1.msra.mxu0 0.0
        %3475 = vmatprep.subr.mxu0 0.0
        %3476 = vmatpush1.msra.mxu0 0.0
        %3477 = vmatprep.subr.mxu0 0.0
        %3478 = vmatpush1.msra.mxu0 0.0
        %3479 = vmatprep.subr.mxu0 0.0
        %3480 = vmatpush1.msra.mxu0 0.0
        %3481 = vmatprep.subr.mxu0 0.0
        %3482 = vmatpush1.msra.mxu0 0.0
        %3483 = vmatprep.subr.mxu0 0.0
        %3484 = vmatpush1.msra.mxu0 0.0
        %3485 = vmatprep.subr.mxu0 0.0
        %3486 = vmatpush1.msra.mxu0 0.0
        %3487 = vmatprep.subr.mxu0 0.0
        %3488 = vmatpush1.msra.mxu0 0.0
        %3489 = vmatprep.subr.mxu0 0.0
        %3490 = vmatpush1.msra.mxu0 0.0
        %3491 = vmatprep.subr.mxu0 0.0
        %3492 = vmatpush1.msra.mxu0 0.0
        %3493 = vmatprep.subr.mxu0 0.0
        %3494 = vmatpush1.msra.mxu0 0.0
        %3495 = vmatprep.subr.mxu0 0.0
        %3496 = vmatpush1.msra.mxu0 0.0
        %3497 = vmatprep.subr.mxu0 0.0
        %3498 = vmatpush1.msra.mxu0 0.0
        %3499 = vmatprep.subr.mxu0 0.0
        %3500 = vmatpush1.msra.mxu0 0.0
        %3501 = vmatprep.subr.mxu0 0.0
        %3502 = vmatpush1.msra.mxu0 0.0
        %3503 = vmatprep.subr.mxu0 0.0
        %3504 = vmatpush1.msra.mxu0 0.0
        %3505 = vmatprep.subr.mxu0 0.0
        %3506 = vmatpush1.msra.mxu0 0.0
        %3507 = vmatprep.subr.mxu0 0.0
        %3508 = vmatpush1.msra.mxu0 0.0
        %3509 = vmatprep.subr.mxu0 0.0
        %3510 = vmatpush1.msra.mxu0 0.0
        %3511 = vmatprep.subr.mxu0 0.0
        %3512 = vmatpush1.msra.mxu0 0.0
        %3513 = vmatprep.subr.mxu0 0.0
        %3514 = vmatpush1.msra.mxu0 0.0
        %3515 = vmatprep.subr.mxu0 0.0
        %3516 = vmatpush1.msra.mxu0 0.0
        %3517 = vmatprep.subr.mxu0 0.0
        %3518 = vmatpush1.msra.mxu0 0.0
        %3519 = vmatprep.subr.mxu0 0.0
        %3520 = vmatpush1.msra.mxu0 0.0
        %3521 = vmatprep.subr.mxu0 0.0
        %3522 = vmatpush1.msra.mxu0 0.0
        %3523 = vmatprep.subr.mxu0 0.0
        %3524 = vmatpush1.msra.mxu0 0.0
        %3525 = vmatprep.subr.mxu0 0.0
        %3526 = vmatpush1.msra.mxu0 0.0
        %3527 = vmatprep.subr.mxu0 0.0
        %3528 = vmatpush1.msra.mxu0 0.0
        %3529 = vmatprep.subr.mxu0 0.0
        %3530 = vmatpush1.msra.mxu0 0.0
        %3531 = vmatprep.subr.mxu0 0.0
        %3532 = vmatpush1.msra.mxu0 0.0
        %3533 = vmatprep.mubr.f32.mxu0 0.0
        %3534 = vmatmul.mubr.f32.gmra.mrb[0].mxu0 %v3464
        %v3535 = vpop.f32.mrb[0].mxu0
        %v3536 = vadd.f32 0.0, %v3535
        %v3537 = vpop.f32.mrb[0].mxu0
        %3538 = vmatprep.mubr.f32.mxu0 0.0
        %3539 = vmatmul.mubr.f32.gmra.mrb[0].mxu0 %v3467
        %v3540 = vpop.f32.mrb[0].mxu0
        %v3541 = vadd.f32 0.0, %v3540
        %v3542 = vpop.f32.mrb[0].mxu0
        %3543 = vdwg.mxu0
        %v3544 = vadd.f32 %v2636, %v3536
        %v3545 = vadd.f32 %v2641, %v3541
        %s3546 = scalar_lea.vmem %s772, 192 [#allocation2]
        %v3547 = vld [vmem:[%s3546] sm:$0xff]
        %v3548 = vld [vmem:[%s3546 + $0x8] sm:$0xff]
        %v3549 = vld [vmem:[%s3546 + $0x10] sm:$0xff]
        %v3550 = vld [vmem:[%s3546 + $0x18] sm:$0xff]
        %v3551 = vld [vmem:[%s3546 + $0x20] sm:$0xff]
        %v3552 = vld [vmem:[%s3546 + $0x28] sm:$0xff]
        %v3553 = vld [vmem:[%s3546 + $0x30] sm:$0xff]
        %v3554 = vld [vmem:[%s3546 + $0x38] sm:$0xff]
        %s3555 = scalar_lea.vmem %s779, 6 [#allocation3]
        %v3556 = vld [vmem:[%s3555] sm:$0x1]
        %v3557 = vld [vmem:[%s3555 + $0x1] sm:$0x1]
        %v3560 = vlaneseq
        %v3561 = vshrl.u32 %v3560, 7
        %v3562 = vsub.s32 0, %v3561
        %v3563 = vrot.slane %v3556, %v3562
        %v3564 = vlaneseq
        %v3565 = vshrl.u32 %v3564, 7
        %v3566 = vsub.s32 0, %v3565
        %v3567 = vrot.slane %v3557, %v3566
        %3570 = vmatprep.subr.mxu0 0.0
        %3571 = vmatpush1.msra.mxu0 %v3547
        %3572 = vmatprep.subr.mxu0 0.0
        %3573 = vmatpush1.msra.mxu0 %v3548
        %3574 = vmatprep.subr.mxu0 0.0
        %3575 = vmatpush1.msra.mxu0 %v3549
        %3576 = vmatprep.subr.mxu0 0.0
        %3577 = vmatpush1.msra.mxu0 %v3550
        %3578 = vmatprep.subr.mxu0 0.0
        %3579 = vmatpush1.msra.mxu0 0.0
        %3580 = vmatprep.subr.mxu0 0.0
        %3581 = vmatpush1.msra.mxu0 0.0
        %3582 = vmatprep.subr.mxu0 0.0
        %3583 = vmatpush1.msra.mxu0 0.0
        %3584 = vmatprep.subr.mxu0 0.0
        %3585 = vmatpush1.msra.mxu0 0.0
        %3586 = vmatprep.subr.mxu0 0.0
        %3587 = vmatpush1.msra.mxu0 0.0
        %3588 = vmatprep.subr.mxu0 0.0
        %3589 = vmatpush1.msra.mxu0 0.0
        %3590 = vmatprep.subr.mxu0 0.0
        %3591 = vmatpush1.msra.mxu0 0.0
        %3592 = vmatprep.subr.mxu0 0.0
        %3593 = vmatpush1.msra.mxu0 0.0
        %3594 = vmatprep.subr.mxu0 0.0
        %3595 = vmatpush1.msra.mxu0 0.0
        %3596 = vmatprep.subr.mxu0 0.0
        %3597 = vmatpush1.msra.mxu0 0.0
        %3598 = vmatprep.subr.mxu0 0.0
        %3599 = vmatpush1.msra.mxu0 0.0
        %3600 = vmatprep.subr.mxu0 0.0
        %3601 = vmatpush1.msra.mxu0 0.0
        %3602 = vmatprep.subr.mxu0 0.0
        %3603 = vmatpush1.msra.mxu0 0.0
        %3604 = vmatprep.subr.mxu0 0.0
        %3605 = vmatpush1.msra.mxu0 0.0
        %3606 = vmatprep.subr.mxu0 0.0
        %3607 = vmatpush1.msra.mxu0 0.0
        %3608 = vmatprep.subr.mxu0 0.0
        %3609 = vmatpush1.msra.mxu0 0.0
        %3610 = vmatprep.subr.mxu0 0.0
        %3611 = vmatpush1.msra.mxu0 0.0
        %3612 = vmatprep.subr.mxu0 0.0
        %3613 = vmatpush1.msra.mxu0 0.0
        %3614 = vmatprep.subr.mxu0 0.0
        %3615 = vmatpush1.msra.mxu0 0.0
        %3616 = vmatprep.subr.mxu0 0.0
        %3617 = vmatpush1.msra.mxu0 0.0
        %3618 = vmatprep.subr.mxu0 0.0
        %3619 = vmatpush1.msra.mxu0 0.0
        %3620 = vmatprep.subr.mxu0 0.0
        %3621 = vmatpush1.msra.mxu0 0.0
        %3622 = vmatprep.subr.mxu0 0.0
        %3623 = vmatpush1.msra.mxu0 0.0
        %3624 = vmatprep.subr.mxu0 0.0
        %3625 = vmatpush1.msra.mxu0 0.0
        %3626 = vmatprep.subr.mxu0 0.0
        %3627 = vmatpush1.msra.mxu0 0.0
        %3628 = vmatprep.subr.mxu0 0.0
        %3629 = vmatpush1.msra.mxu0 0.0
        %3630 = vmatprep.subr.mxu0 0.0
        %3631 = vmatpush1.msra.mxu0 0.0
        %3632 = vmatprep.subr.mxu0 0.0
        %3633 = vmatpush1.msra.mxu0 0.0
        %3634 = vmatprep.mubr.f32.mxu0 0.0
        %3635 = vmatmul.mubr.f32.gmra.mrb[0].mxu0 %v864
        %v3636 = vpop.f32.mrb[0].mxu0
        %v3637 = vadd.f32 %v3563, %v3636
        %v3638 = vpop.f32.mrb[0].mxu0
        %3639 = vdwg.mxu0
        %3640 = vmatprep.subr.mxu0 0.0
        %3641 = vmatpush1.msra.mxu0 %v3551
        %3642 = vmatprep.subr.mxu0 0.0
        %3643 = vmatpush1.msra.mxu0 %v3552
        %3644 = vmatprep.subr.mxu0 0.0
        %3645 = vmatpush1.msra.mxu0 %v3553
        %3646 = vmatprep.subr.mxu0 0.0
        %3647 = vmatpush1.msra.mxu0 %v3554
        %3648 = vmatprep.subr.mxu0 0.0
        %3649 = vmatpush1.msra.mxu0 0.0
        %3650 = vmatprep.subr.mxu0 0.0
        %3651 = vmatpush1.msra.mxu0 0.0
        %3652 = vmatprep.subr.mxu0 0.0
        %3653 = vmatpush1.msra.mxu0 0.0
        %3654 = vmatprep.subr.mxu0 0.0
        %3655 = vmatpush1.msra.mxu0 0.0
        %3656 = vmatprep.subr.mxu0 0.0
        %3657 = vmatpush1.msra.mxu0 0.0
        %3658 = vmatprep.subr.mxu0 0.0
        %3659 = vmatpush1.msra.mxu0 0.0
        %3660 = vmatprep.subr.mxu0 0.0
        %3661 = vmatpush1.msra.mxu0 0.0
        %3662 = vmatprep.subr.mxu0 0.0
        %3663 = vmatpush1.msra.mxu0 0.0
        %3664 = vmatprep.subr.mxu0 0.0
        %3665 = vmatpush1.msra.mxu0 0.0
        %3666 = vmatprep.subr.mxu0 0.0
        %3667 = vmatpush1.msra.mxu0 0.0
        %3668 = vmatprep.subr.mxu0 0.0
        %3669 = vmatpush1.msra.mxu0 0.0
        %3670 = vmatprep.subr.mxu0 0.0
        %3671 = vmatpush1.msra.mxu0 0.0
        %3672 = vmatprep.subr.mxu0 0.0
        %3673 = vmatpush1.msra.mxu0 0.0
        %3674 = vmatprep.subr.mxu0 0.0
        %3675 = vmatpush1.msra.mxu0 0.0
        %3676 = vmatprep.subr.mxu0 0.0
        %3677 = vmatpush1.msra.mxu0 0.0
        %3678 = vmatprep.subr.mxu0 0.0
        %3679 = vmatpush1.msra.mxu0 0.0
        %3680 = vmatprep.subr.mxu0 0.0
        %3681 = vmatpush1.msra.mxu0 0.0
        %3682 = vmatprep.subr.mxu0 0.0
        %3683 = vmatpush1.msra.mxu0 0.0
        %3684 = vmatprep.subr.mxu0 0.0
        %3685 = vmatpush1.msra.mxu0 0.0
        %3686 = vmatprep.subr.mxu0 0.0
        %3687 = vmatpush1.msra.mxu0 0.0
        %3688 = vmatprep.subr.mxu0 0.0
        %3689 = vmatpush1.msra.mxu0 0.0
        %3690 = vmatprep.subr.mxu0 0.0
        %3691 = vmatpush1.msra.mxu0 0.0
        %3692 = vmatprep.subr.mxu0 0.0
        %3693 = vmatpush1.msra.mxu0 0.0
        %3694 = vmatprep.subr.mxu0 0.0
        %3695 = vmatpush1.msra.mxu0 0.0
        %3696 = vmatprep.subr.mxu0 0.0
        %3697 = vmatpush1.msra.mxu0 0.0
        %3698 = vmatprep.subr.mxu0 0.0
        %3699 = vmatpush1.msra.mxu0 0.0
        %3700 = vmatprep.subr.mxu0 0.0
        %3701 = vmatpush1.msra.mxu0 0.0
        %3702 = vmatprep.subr.mxu0 0.0
        %3703 = vmatpush1.msra.mxu0 0.0
        %3704 = vmatprep.mubr.f32.mxu0 0.0
        %3705 = vmatmul.mubr.f32.gmra.mrb[0].mxu0 %v937
        %v3706 = vpop.f32.mrb[0].mxu0
        %v3707 = vadd.f32 %v3567, %v3706
        %v3708 = vpop.f32.mrb[0].mxu0
        %3709 = vdwg.mxu0
        %s3710 = scalar_lea.vmem %s772, 448 [#allocation2]
        %v3711 = vld [vmem:[%s3710] sm:$0xff]
        %v3712 = vld [vmem:[%s3710 + $0x8] sm:$0xff]
        %v3713 = vld [vmem:[%s3710 + $0x10] sm:$0xff]
        %v3714 = vld [vmem:[%s3710 + $0x18] sm:$0xff]
        %v3715 = vld [vmem:[%s3710 + $0x20] sm:$0xff]
        %v3716 = vld [vmem:[%s3710 + $0x28] sm:$0xff]
        %v3717 = vld [vmem:[%s3710 + $0x30] sm:$0xff]
        %v3718 = vld [vmem:[%s3710 + $0x38] sm:$0xff]
        %s3719 = scalar_lea.vmem %s779, 14 [#allocation3]
        %v3720 = vld [vmem:[%s3719] sm:$0x1]
        %v3721 = vld [vmem:[%s3719 + $0x1] sm:$0x1]
        %v3724 = vlaneseq
        %v3725 = vshrl.u32 %v3724, 7
        %v3726 = vsub.s32 0, %v3725
        %v3727 = vrot.slane %v3720, %v3726
        %v3728 = vlaneseq
        %v3729 = vshrl.u32 %v3728, 7
        %v3730 = vsub.s32 0, %v3729
        %v3731 = vrot.slane %v3721, %v3730
        %3734 = vmatprep.subr.mxu0 0.0
        %3735 = vmatpush1.msra.mxu0 %v3711
        %3736 = vmatprep.subr.mxu0 0.0
        %3737 = vmatpush1.msra.mxu0 %v3712
        %3738 = vmatprep.subr.mxu0 0.0
        %3739 = vmatpush1.msra.mxu0 %v3713
        %3740 = vmatprep.subr.mxu0 0.0
        %3741 = vmatpush1.msra.mxu0 %v3714
        %3742 = vmatprep.subr.mxu0 0.0
        %3743 = vmatpush1.msra.mxu0 0.0
        %3744 = vmatprep.subr.mxu0 0.0
        %3745 = vmatpush1.msra.mxu0 0.0
        %3746 = vmatprep.subr.mxu0 0.0
        %3747 = vmatpush1.msra.mxu0 0.0
        %3748 = vmatprep.subr.mxu0 0.0
        %3749 = vmatpush1.msra.mxu0 0.0
        %3750 = vmatprep.subr.mxu0 0.0
        %3751 = vmatpush1.msra.mxu0 0.0
        %3752 = vmatprep.subr.mxu0 0.0
        %3753 = vmatpush1.msra.mxu0 0.0
        %3754 = vmatprep.subr.mxu0 0.0
        %3755 = vmatpush1.msra.mxu0 0.0
        %3756 = vmatprep.subr.mxu0 0.0
        %3757 = vmatpush1.msra.mxu0 0.0
        %3758 = vmatprep.subr.mxu0 0.0
        %3759 = vmatpush1.msra.mxu0 0.0
        %3760 = vmatprep.subr.mxu0 0.0
        %3761 = vmatpush1.msra.mxu0 0.0
        %3762 = vmatprep.subr.mxu0 0.0
        %3763 = vmatpush1.msra.mxu0 0.0
        %3764 = vmatprep.subr.mxu0 0.0
        %3765 = vmatpush1.msra.mxu0 0.0
        %3766 = vmatprep.subr.mxu0 0.0
        %3767 = vmatpush1.msra.mxu0 0.0
        %3768 = vmatprep.subr.mxu0 0.0
        %3769 = vmatpush1.msra.mxu0 0.0
        %3770 = vmatprep.subr.mxu0 0.0
        %3771 = vmatpush1.msra.mxu0 0.0
        %3772 = vmatprep.subr.mxu0 0.0
        %3773 = vmatpush1.msra.mxu0 0.0
        %3774 = vmatprep.subr.mxu0 0.0
        %3775 = vmatpush1.msra.mxu0 0.0
        %3776 = vmatprep.subr.mxu0 0.0
        %3777 = vmatpush1.msra.mxu0 0.0
        %3778 = vmatprep.subr.mxu0 0.0
        %3779 = vmatpush1.msra.mxu0 0.0
        %3780 = vmatprep.subr.mxu0 0.0
        %3781 = vmatpush1.msra.mxu0 0.0
        %3782 = vmatprep.subr.mxu0 0.0
        %3783 = vmatpush1.msra.mxu0 0.0
        %3784 = vmatprep.subr.mxu0 0.0
        %3785 = vmatpush1.msra.mxu0 0.0
        %3786 = vmatprep.subr.mxu0 0.0
        %3787 = vmatpush1.msra.mxu0 0.0
        %3788 = vmatprep.subr.mxu0 0.0
        %3789 = vmatpush1.msra.mxu0 0.0
        %3790 = vmatprep.subr.mxu0 0.0
        %3791 = vmatpush1.msra.mxu0 0.0
        %3792 = vmatprep.subr.mxu0 0.0
        %3793 = vmatpush1.msra.mxu0 0.0
        %3794 = vmatprep.subr.mxu0 0.0
        %3795 = vmatpush1.msra.mxu0 0.0
        %3796 = vmatprep.subr.mxu0 0.0
        %3797 = vmatpush1.msra.mxu0 0.0
        %3798 = vmatprep.mubr.f32.mxu0 0.0
        %3799 = vmatmul.mubr.f32.gmra.mrb[0].mxu0 %v864
        %v3800 = vpop.f32.mrb[0].mxu0
        %v3801 = vadd.f32 %v3727, %v3800
        %v3802 = vpop.f32.mrb[0].mxu0
        %3803 = vdwg.mxu0
        %3804 = vmatprep.subr.mxu0 0.0
        %3805 = vmatpush1.msra.mxu0 %v3715
        %3806 = vmatprep.subr.mxu0 0.0
        %3807 = vmatpush1.msra.mxu0 %v3716
        %3808 = vmatprep.subr.mxu0 0.0
        %3809 = vmatpush1.msra.mxu0 %v3717
        %3810 = vmatprep.subr.mxu0 0.0
        %3811 = vmatpush1.msra.mxu0 %v3718
        %3812 = vmatprep.subr.mxu0 0.0
        %3813 = vmatpush1.msra.mxu0 0.0
        %3814 = vmatprep.subr.mxu0 0.0
        %3815 = vmatpush1.msra.mxu0 0.0
        %3816 = vmatprep.subr.mxu0 0.0
        %3817 = vmatpush1.msra.mxu0 0.0
        %3818 = vmatprep.subr.mxu0 0.0
        %3819 = vmatpush1.msra.mxu0 0.0
        %3820 = vmatprep.subr.mxu0 0.0
        %3821 = vmatpush1.msra.mxu0 0.0
        %3822 = vmatprep.subr.mxu0 0.0
        %3823 = vmatpush1.msra.mxu0 0.0
        %3824 = vmatprep.subr.mxu0 0.0
        %3825 = vmatpush1.msra.mxu0 0.0
        %3826 = vmatprep.subr.mxu0 0.0
        %3827 = vmatpush1.msra.mxu0 0.0
        %3828 = vmatprep.subr.mxu0 0.0
        %3829 = vmatpush1.msra.mxu0 0.0
        %3830 = vmatprep.subr.mxu0 0.0
        %3831 = vmatpush1.msra.mxu0 0.0
        %3832 = vmatprep.subr.mxu0 0.0
        %3833 = vmatpush1.msra.mxu0 0.0
        %3834 = vmatprep.subr.mxu0 0.0
        %3835 = vmatpush1.msra.mxu0 0.0
        %3836 = vmatprep.subr.mxu0 0.0
        %3837 = vmatpush1.msra.mxu0 0.0
        %3838 = vmatprep.subr.mxu0 0.0
        %3839 = vmatpush1.msra.mxu0 0.0
        %3840 = vmatprep.subr.mxu0 0.0
        %3841 = vmatpush1.msra.mxu0 0.0
        %3842 = vmatprep.subr.mxu0 0.0
        %3843 = vmatpush1.msra.mxu0 0.0
        %3844 = vmatprep.subr.mxu0 0.0
        %3845 = vmatpush1.msra.mxu0 0.0
        %3846 = vmatprep.subr.mxu0 0.0
        %3847 = vmatpush1.msra.mxu0 0.0
        %3848 = vmatprep.subr.mxu0 0.0
        %3849 = vmatpush1.msra.mxu0 0.0
        %3850 = vmatprep.subr.mxu0 0.0
        %3851 = vmatpush1.msra.mxu0 0.0
        %3852 = vmatprep.subr.mxu0 0.0
        %3853 = vmatpush1.msra.mxu0 0.0
        %3854 = vmatprep.subr.mxu0 0.0
        %3855 = vmatpush1.msra.mxu0 0.0
        %3856 = vmatprep.subr.mxu0 0.0
        %3857 = vmatpush1.msra.mxu0 0.0
        %3858 = vmatprep.subr.mxu0 0.0
        %3859 = vmatpush1.msra.mxu0 0.0
        %3860 = vmatprep.subr.mxu0 0.0
        %3861 = vmatpush1.msra.mxu0 0.0
        %3862 = vmatprep.subr.mxu0 0.0
        %3863 = vmatpush1.msra.mxu0 0.0
        %3864 = vmatprep.subr.mxu0 0.0
        %3865 = vmatpush1.msra.mxu0 0.0
        %3866 = vmatprep.subr.mxu0 0.0
        %3867 = vmatpush1.msra.mxu0 0.0
        %3868 = vmatprep.mubr.f32.mxu0 0.0
        %3869 = vmatmul.mubr.f32.gmra.mrb[0].mxu0 %v937
        %v3870 = vpop.f32.mrb[0].mxu0
        %v3871 = vadd.f32 %v3731, %v3870
        %v3872 = vpop.f32.mrb[0].mxu0
        %3873 = vdwg.mxu0
        %s3874 = scalar_lea.vmem %s772, 704 [#allocation2]
        %v3875 = vld [vmem:[%s3874] sm:$0xff]
        %v3876 = vld [vmem:[%s3874 + $0x8] sm:$0xff]
        %v3877 = vld [vmem:[%s3874 + $0x10] sm:$0xff]
        %v3878 = vld [vmem:[%s3874 + $0x18] sm:$0xff]
        %v3879 = vld [vmem:[%s3874 + $0x20] sm:$0xff]
        %v3880 = vld [vmem:[%s3874 + $0x28] sm:$0xff]
        %v3881 = vld [vmem:[%s3874 + $0x30] sm:$0xff]
        %v3882 = vld [vmem:[%s3874 + $0x38] sm:$0xff]
        %s3883 = scalar_lea.vmem %s779, 22 [#allocation3]
        %v3884 = vld [vmem:[%s3883] sm:$0x1]
        %v3885 = vld [vmem:[%s3883 + $0x1] sm:$0x1]
        %v3888 = vlaneseq
        %v3889 = vshrl.u32 %v3888, 7
        %v3890 = vsub.s32 0, %v3889
        %v3891 = vrot.slane %v3884, %v3890
        %v3892 = vlaneseq
        %v3893 = vshrl.u32 %v3892, 7
        %v3894 = vsub.s32 0, %v3893
        %v3895 = vrot.slane %v3885, %v3894
        %3898 = vmatprep.subr.mxu0 0.0
        %3899 = vmatpush1.msra.mxu0 %v3875
        %3900 = vmatprep.subr.mxu0 0.0
        %3901 = vmatpush1.msra.mxu0 %v3876
        %3902 = vmatprep.subr.mxu0 0.0
        %3903 = vmatpush1.msra.mxu0 %v3877
        %3904 = vmatprep.subr.mxu0 0.0
        %3905 = vmatpush1.msra.mxu0 %v3878
        %3906 = vmatprep.subr.mxu0 0.0
        %3907 = vmatpush1.msra.mxu0 0.0
        %3908 = vmatprep.subr.mxu0 0.0
        %3909 = vmatpush1.msra.mxu0 0.0
        %3910 = vmatprep.subr.mxu0 0.0
        %3911 = vmatpush1.msra.mxu0 0.0
        %3912 = vmatprep.subr.mxu0 0.0
        %3913 = vmatpush1.msra.mxu0 0.0
        %3914 = vmatprep.subr.mxu0 0.0
        %3915 = vmatpush1.msra.mxu0 0.0
        %3916 = vmatprep.subr.mxu0 0.0
        %3917 = vmatpush1.msra.mxu0 0.0
        %3918 = vmatprep.subr.mxu0 0.0
        %3919 = vmatpush1.msra.mxu0 0.0
        %3920 = vmatprep.subr.mxu0 0.0
        %3921 = vmatpush1.msra.mxu0 0.0
        %3922 = vmatprep.subr.mxu0 0.0
        %3923 = vmatpush1.msra.mxu0 0.0
        %3924 = vmatprep.subr.mxu0 0.0
        %3925 = vmatpush1.msra.mxu0 0.0
        %3926 = vmatprep.subr.mxu0 0.0
        %3927 = vmatpush1.msra.mxu0 0.0
        %3928 = vmatprep.subr.mxu0 0.0
        %3929 = vmatpush1.msra.mxu0 0.0
        %3930 = vmatprep.subr.mxu0 0.0
        %3931 = vmatpush1.msra.mxu0 0.0
        %3932 = vmatprep.subr.mxu0 0.0
        %3933 = vmatpush1.msra.mxu0 0.0
        %3934 = vmatprep.subr.mxu0 0.0
        %3935 = vmatpush1.msra.mxu0 0.0
        %3936 = vmatprep.subr.mxu0 0.0
        %3937 = vmatpush1.msra.mxu0 0.0
        %3938 = vmatprep.subr.mxu0 0.0
        %3939 = vmatpush1.msra.mxu0 0.0
        %3940 = vmatprep.subr.mxu0 0.0
        %3941 = vmatpush1.msra.mxu0 0.0
        %3942 = vmatprep.subr.mxu0 0.0
        %3943 = vmatpush1.msra.mxu0 0.0
        %3944 = vmatprep.subr.mxu0 0.0
        %3945 = vmatpush1.msra.mxu0 0.0
        %3946 = vmatprep.subr.mxu0 0.0
        %3947 = vmatpush1.msra.mxu0 0.0
        %3948 = vmatprep.subr.mxu0 0.0
        %3949 = vmatpush1.msra.mxu0 0.0
        %3950 = vmatprep.subr.mxu0 0.0
        %3951 = vmatpush1.msra.mxu0 0.0
        %3952 = vmatprep.subr.mxu0 0.0
        %3953 = vmatpush1.msra.mxu0 0.0
        %3954 = vmatprep.subr.mxu0 0.0
        %3955 = vmatpush1.msra.mxu0 0.0
        %3956 = vmatprep.subr.mxu0 0.0
        %3957 = vmatpush1.msra.mxu0 0.0
        %3958 = vmatprep.subr.mxu0 0.0
        %3959 = vmatpush1.msra.mxu0 0.0
        %3960 = vmatprep.subr.mxu0 0.0
        %3961 = vmatpush1.msra.mxu0 0.0
        %3962 = vmatprep.mubr.f32.mxu0 0.0
        %3963 = vmatmul.mubr.f32.gmra.mrb[0].mxu0 %v864
        %v3964 = vpop.f32.mrb[0].mxu0
        %v3965 = vadd.f32 %v3891, %v3964
        %v3966 = vpop.f32.mrb[0].mxu0
        %3967 = vdwg.mxu0
        %3968 = vmatprep.subr.mxu0 0.0
        %3969 = vmatpush1.msra.mxu0 %v3879
        %3970 = vmatprep.subr.mxu0 0.0
        %3971 = vmatpush1.msra.mxu0 %v3880
        %3972 = vmatprep.subr.mxu0 0.0
        %3973 = vmatpush1.msra.mxu0 %v3881
        %3974 = vmatprep.subr.mxu0 0.0
        %3975 = vmatpush1.msra.mxu0 %v3882
        %3976 = vmatprep.subr.mxu0 0.0
        %3977 = vmatpush1.msra.mxu0 0.0
        %3978 = vmatprep.subr.mxu0 0.0
        %3979 = vmatpush1.msra.mxu0 0.0
        %3980 = vmatprep.subr.mxu0 0.0
        %3981 = vmatpush1.msra.mxu0 0.0
        %3982 = vmatprep.subr.mxu0 0.0
        %3983 = vmatpush1.msra.mxu0 0.0
        %3984 = vmatprep.subr.mxu0 0.0
        %3985 = vmatpush1.msra.mxu0 0.0
        %3986 = vmatprep.subr.mxu0 0.0
        %3987 = vmatpush1.msra.mxu0 0.0
        %3988 = vmatprep.subr.mxu0 0.0
        %3989 = vmatpush1.msra.mxu0 0.0
        %3990 = vmatprep.subr.mxu0 0.0
        %3991 = vmatpush1.msra.mxu0 0.0
        %3992 = vmatprep.subr.mxu0 0.0
        %3993 = vmatpush1.msra.mxu0 0.0
        %3994 = vmatprep.subr.mxu0 0.0
        %3995 = vmatpush1.msra.mxu0 0.0
        %3996 = vmatprep.subr.mxu0 0.0
        %3997 = vmatpush1.msra.mxu0 0.0
        %3998 = vmatprep.subr.mxu0 0.0
        %3999 = vmatpush1.msra.mxu0 0.0
        %4000 = vmatprep.subr.mxu0 0.0
        %4001 = vmatpush1.msra.mxu0 0.0
        %4002 = vmatprep.subr.mxu0 0.0
        %4003 = vmatpush1.msra.mxu0 0.0
        %4004 = vmatprep.subr.mxu0 0.0
        %4005 = vmatpush1.msra.mxu0 0.0
        %4006 = vmatprep.subr.mxu0 0.0
        %4007 = vmatpush1.msra.mxu0 0.0
        %4008 = vmatprep.subr.mxu0 0.0
        %4009 = vmatpush1.msra.mxu0 0.0
        %4010 = vmatprep.subr.mxu0 0.0
        %4011 = vmatpush1.msra.mxu0 0.0
        %4012 = vmatprep.subr.mxu0 0.0
        %4013 = vmatpush1.msra.mxu0 0.0
        %4014 = vmatprep.subr.mxu0 0.0
        %4015 = vmatpush1.msra.mxu0 0.0
        %4016 = vmatprep.subr.mxu0 0.0
        %4017 = vmatpush1.msra.mxu0 0.0
        %4018 = vmatprep.subr.mxu0 0.0
        %4019 = vmatpush1.msra.mxu0 0.0
        %4020 = vmatprep.subr.mxu0 0.0
        %4021 = vmatpush1.msra.mxu0 0.0
        %4022 = vmatprep.subr.mxu0 0.0
        %4023 = vmatpush1.msra.mxu0 0.0
        %4024 = vmatprep.subr.mxu0 0.0
        %4025 = vmatpush1.msra.mxu0 0.0
        %4026 = vmatprep.subr.mxu0 0.0
        %4027 = vmatpush1.msra.mxu0 0.0
        %4028 = vmatprep.subr.mxu0 0.0
        %4029 = vmatpush1.msra.mxu0 0.0
        %4030 = vmatprep.subr.mxu0 0.0
        %4031 = vmatpush1.msra.mxu0 0.0
        %4032 = vmatprep.mubr.f32.mxu0 0.0
        %4033 = vmatmul.mubr.f32.gmra.mrb[0].mxu0 %v937
        %v4034 = vpop.f32.mrb[0].mxu0
        %v4035 = vadd.f32 %v3895, %v4034
        %v4036 = vpop.f32.mrb[0].mxu0
        %4037 = vdwg.mxu0
        %v4039 = vsel %vm1337, %v3637, 0
        %v4042 = vsel %vm1337, %v3801, 0
        %4044 = vmatprep.subr.mxu0 0.0
        %4045 = vmatpush1.xpose.msra.mxu0 %v4042
        %4046 = vmatprep.subr.mxu0 0.0
        %4047 = vmatpush1.xpose.msra.mxu0 0.0
        %4048 = vmatprep.subr.mxu0 0.0
        %4049 = vmatpush1.xpose.msra.mxu0 0.0
        %4050 = vmatprep.subr.mxu0 0.0
        %4051 = vmatpush1.xpose.msra.mxu0 0.0
        %4052 = vmatprep.subr.mxu0 0.0
        %4053 = vmatpush1.xpose.msra.mxu0 0.0
        %4054 = vmatprep.subr.mxu0 0.0
        %4055 = vmatpush1.xpose.msra.mxu0 0.0
        %4056 = vmatprep.subr.mxu0 0.0
        %4057 = vmatpush1.xpose.msra.mxu0 0.0
        %4058 = vmatprep.subr.mxu0 0.0
        %4059 = vmatpush1.xpose.msra.mxu0 0.0
        %4060 = vmatprep.subr.mxu0 0.0
        %4061 = vmatpush1.xpose.msra.mxu0 0.0
        %4062 = vmatprep.subr.mxu0 0.0
        %4063 = vmatpush1.xpose.msra.mxu0 0.0
        %4064 = vmatprep.subr.mxu0 0.0
        %4065 = vmatpush1.xpose.msra.mxu0 0.0
        %4066 = vmatprep.subr.mxu0 0.0
        %4067 = vmatpush1.xpose.msra.mxu0 0.0
        %4068 = vmatprep.subr.mxu0 0.0
        %4069 = vmatpush1.xpose.msra.mxu0 0.0
        %4070 = vmatprep.subr.mxu0 0.0
        %4071 = vmatpush1.xpose.msra.mxu0 0.0
        %4072 = vmatprep.subr.mxu0 0.0
        %4073 = vmatpush1.xpose.msra.mxu0 0.0
        %4074 = vmatprep.subr.mxu0 0.0
        %4075 = vmatpush1.xpose.msra.mxu0 0.0
        %4076 = vmatprep.subr.mxu0 0.0
        %4077 = vmatpush1.xpose.msra.mxu0 0.0
        %4078 = vmatprep.subr.mxu0 0.0
        %4079 = vmatpush1.xpose.msra.mxu0 0.0
        %4080 = vmatprep.subr.mxu0 0.0
        %4081 = vmatpush1.xpose.msra.mxu0 0.0
        %4082 = vmatprep.subr.mxu0 0.0
        %4083 = vmatpush1.xpose.msra.mxu0 0.0
        %4084 = vmatprep.subr.mxu0 0.0
        %4085 = vmatpush1.xpose.msra.mxu0 0.0
        %4086 = vmatprep.subr.mxu0 0.0
        %4087 = vmatpush1.xpose.msra.mxu0 0.0
        %4088 = vmatprep.subr.mxu0 0.0
        %4089 = vmatpush1.xpose.msra.mxu0 0.0
        %4090 = vmatprep.subr.mxu0 0.0
        %4091 = vmatpush1.xpose.msra.mxu0 0.0
        %4092 = vmatprep.subr.mxu0 0.0
        %4093 = vmatpush1.xpose.msra.mxu0 0.0
        %4094 = vmatprep.subr.mxu0 0.0
        %4095 = vmatpush1.xpose.msra.mxu0 0.0
        %4096 = vmatprep.subr.mxu0 0.0
        %4097 = vmatpush1.xpose.msra.mxu0 0.0
        %4098 = vmatprep.subr.mxu0 0.0
        %4099 = vmatpush1.xpose.msra.mxu0 0.0
        %4100 = vmatprep.subr.mxu0 0.0
        %4101 = vmatpush1.xpose.msra.mxu0 0.0
        %4102 = vmatprep.subr.mxu0 0.0
        %4103 = vmatpush1.xpose.msra.mxu0 0.0
        %4104 = vmatprep.subr.mxu0 0.0
        %4105 = vmatpush1.xpose.msra.mxu0 0.0
        %4106 = vmatprep.subr.mxu0 0.0
        %4107 = vmatpush1.xpose.msra.mxu0 0.0
        %4108 = vmatprep.mubr.f32.mxu0 0.0
        %4109 = vmatmul.mubr.f32.gmra.mrb[0].mxu0 %v4039
        %v4110 = vpop.f32.mrb[0].mxu0
        %v4111 = vadd.f32 0.0, %v4110
        %v4112 = vpop.f32.mrb[0].mxu0
        %4113 = vdwg.mxu0
        %v4115 = vsel %vm1337, %v3707, 0
        %v4118 = vsel %vm1337, %v3871, 0
        %4120 = vmatprep.subr.mxu0 0.0
        %4121 = vmatpush1.xpose.msra.mxu0 %v4118
        %4122 = vmatprep.subr.mxu0 0.0
        %4123 = vmatpush1.xpose.msra.mxu0 0.0
        %4124 = vmatprep.subr.mxu0 0.0
        %4125 = vmatpush1.xpose.msra.mxu0 0.0
        %4126 = vmatprep.subr.mxu0 0.0
        %4127 = vmatpush1.xpose.msra.mxu0 0.0
        %4128 = vmatprep.subr.mxu0 0.0
        %4129 = vmatpush1.xpose.msra.mxu0 0.0
        %4130 = vmatprep.subr.mxu0 0.0
        %4131 = vmatpush1.xpose.msra.mxu0 0.0
        %4132 = vmatprep.subr.mxu0 0.0
        %4133 = vmatpush1.xpose.msra.mxu0 0.0
        %4134 = vmatprep.subr.mxu0 0.0
        %4135 = vmatpush1.xpose.msra.mxu0 0.0
        %4136 = vmatprep.subr.mxu0 0.0
        %4137 = vmatpush1.xpose.msra.mxu0 0.0
        %4138 = vmatprep.subr.mxu0 0.0
        %4139 = vmatpush1.xpose.msra.mxu0 0.0
        %4140 = vmatprep.subr.mxu0 0.0
        %4141 = vmatpush1.xpose.msra.mxu0 0.0
        %4142 = vmatprep.subr.mxu0 0.0
        %4143 = vmatpush1.xpose.msra.mxu0 0.0
        %4144 = vmatprep.subr.mxu0 0.0
        %4145 = vmatpush1.xpose.msra.mxu0 0.0
        %4146 = vmatprep.subr.mxu0 0.0
        %4147 = vmatpush1.xpose.msra.mxu0 0.0
        %4148 = vmatprep.subr.mxu0 0.0
        %4149 = vmatpush1.xpose.msra.mxu0 0.0
        %4150 = vmatprep.subr.mxu0 0.0
        %4151 = vmatpush1.xpose.msra.mxu0 0.0
        %4152 = vmatprep.subr.mxu0 0.0
        %4153 = vmatpush1.xpose.msra.mxu0 0.0
        %4154 = vmatprep.subr.mxu0 0.0
        %4155 = vmatpush1.xpose.msra.mxu0 0.0
        %4156 = vmatprep.subr.mxu0 0.0
        %4157 = vmatpush1.xpose.msra.mxu0 0.0
        %4158 = vmatprep.subr.mxu0 0.0
        %4159 = vmatpush1.xpose.msra.mxu0 0.0
        %4160 = vmatprep.subr.mxu0 0.0
        %4161 = vmatpush1.xpose.msra.mxu0 0.0
        %4162 = vmatprep.subr.mxu0 0.0
        %4163 = vmatpush1.xpose.msra.mxu0 0.0
        %4164 = vmatprep.subr.mxu0 0.0
        %4165 = vmatpush1.xpose.msra.mxu0 0.0
        %4166 = vmatprep.subr.mxu0 0.0
        %4167 = vmatpush1.xpose.msra.mxu0 0.0
        %4168 = vmatprep.subr.mxu0 0.0
        %4169 = vmatpush1.xpose.msra.mxu0 0.0
        %4170 = vmatprep.subr.mxu0 0.0
        %4171 = vmatpush1.xpose.msra.mxu0 0.0
        %4172 = vmatprep.subr.mxu0 0.0
        %4173 = vmatpush1.xpose.msra.mxu0 0.0
        %4174 = vmatprep.subr.mxu0 0.0
        %4175 = vmatpush1.xpose.msra.mxu0 0.0
        %4176 = vmatprep.subr.mxu0 0.0
        %4177 = vmatpush1.xpose.msra.mxu0 0.0
        %4178 = vmatprep.subr.mxu0 0.0
        %4179 = vmatpush1.xpose.msra.mxu0 0.0
        %4180 = vmatprep.subr.mxu0 0.0
        %4181 = vmatpush1.xpose.msra.mxu0 0.0
        %4182 = vmatprep.subr.mxu0 0.0
        %4183 = vmatpush1.xpose.msra.mxu0 0.0
        %4184 = vmatprep.mubr.f32.mxu0 0.0
        %4185 = vmatmul.mubr.f32.gmra.mrb[0].mxu0 %v4115
        %v4186 = vpop.f32.mrb[0].mxu0
        %v4187 = vadd.f32 0.0, %v4186
        %v4188 = vpop.f32.mrb[0].mxu0
        %4189 = vdwg.mxu0
        %v4190 = vmul.f32 %v4111, 0.35355338
        %v4191 = vmul.f32 %v4187, 0.35355338
        %v4192 = vsel %vm1337, %v4190, -inf
        %4193 = vmax.xlane.f32.xlu0 %v4192
        %v4194 = vpop.xlane.xlu0 %4193
        %v4195 = vsel %vm1337, %v4191, -inf
        %4196 = vmax.xlane.f32.xlu0 %v4195
        %v4197 = vpop.xlane.xlu0 %4196
        %v4198 = vsub.f32 %v4190, %v4194
        %v4199 = vsub.f32 %v4191, %v4197
        %v4200 = vmul.f32 %v4198, 1.442695
        %v4201 = vpow.pop %v4200
        %v4202 = vmul.f32 %v4199, 1.442695
        %v4203 = vpow.pop %v4202
        %v4204 = vsel %vm1337, %v4201, 0.0
        %4205 = vadd.xlane.f32.xlu0 %v4204
        %v4206 = vpop.xlane.xlu0 %4205
        %v4207 = vsel %vm1337, %v4203, 0.0
        %4208 = vadd.xlane.f32.xlu0 %v4207
        %v4209 = vpop.xlane.xlu0 %4208
        %v4210 = vrcp.pop %v4206
        %v4211 = vrcp.pop %v4209
        %v4212 = vmul.f32 %v4201, %v4210
        %v4213 = vmul.f32 %v4203, %v4211
        %s4214 = scalar_lea.vmem %s823, 24 [#allocation6]
        %4215 = vst.msk [vmem:[%s4214] sm:$0xff] %vm1337, %v4212
        %4216 = vst.msk [vmem:[%s4214 + $0x20] sm:$0xff] %vm1337, %v4213
        %v4218 = vsel %vm1337, %v4212, 0
        %4220 = vmatprep.subr.mxu0 0.0
        %4221 = vmatpush1.msra.mxu0 %v3965
        %4222 = vmatprep.subr.mxu0 0.0
        %4223 = vmatpush1.msra.mxu0 0.0
        %4224 = vmatprep.subr.mxu0 0.0
        %4225 = vmatpush1.msra.mxu0 0.0
        %4226 = vmatprep.subr.mxu0 0.0
        %4227 = vmatpush1.msra.mxu0 0.0
        %4228 = vmatprep.subr.mxu0 0.0
        %4229 = vmatpush1.msra.mxu0 0.0
        %4230 = vmatprep.subr.mxu0 0.0
        %4231 = vmatpush1.msra.mxu0 0.0
        %4232 = vmatprep.subr.mxu0 0.0
        %4233 = vmatpush1.msra.mxu0 0.0
        %4234 = vmatprep.subr.mxu0 0.0
        %4235 = vmatpush1.msra.mxu0 0.0
        %4236 = vmatprep.subr.mxu0 0.0
        %4237 = vmatpush1.msra.mxu0 0.0
        %4238 = vmatprep.subr.mxu0 0.0
        %4239 = vmatpush1.msra.mxu0 0.0
        %4240 = vmatprep.subr.mxu0 0.0
        %4241 = vmatpush1.msra.mxu0 0.0
        %4242 = vmatprep.subr.mxu0 0.0
        %4243 = vmatpush1.msra.mxu0 0.0
        %4244 = vmatprep.subr.mxu0 0.0
        %4245 = vmatpush1.msra.mxu0 0.0
        %4246 = vmatprep.subr.mxu0 0.0
        %4247 = vmatpush1.msra.mxu0 0.0
        %4248 = vmatprep.subr.mxu0 0.0
        %4249 = vmatpush1.msra.mxu0 0.0
        %4250 = vmatprep.subr.mxu0 0.0
        %4251 = vmatpush1.msra.mxu0 0.0
        %4252 = vmatprep.subr.mxu0 0.0
        %4253 = vmatpush1.msra.mxu0 0.0
        %4254 = vmatprep.subr.mxu0 0.0
        %4255 = vmatpush1.msra.mxu0 0.0
        %4256 = vmatprep.subr.mxu0 0.0
        %4257 = vmatpush1.msra.mxu0 0.0
        %4258 = vmatprep.subr.mxu0 0.0
        %4259 = vmatpush1.msra.mxu0 0.0
        %4260 = vmatprep.subr.mxu0 0.0
        %4261 = vmatpush1.msra.mxu0 0.0
        %4262 = vmatprep.subr.mxu0 0.0
        %4263 = vmatpush1.msra.mxu0 0.0
        %4264 = vmatprep.subr.mxu0 0.0
        %4265 = vmatpush1.msra.mxu0 0.0
        %4266 = vmatprep.subr.mxu0 0.0
        %4267 = vmatpush1.msra.mxu0 0.0
        %4268 = vmatprep.subr.mxu0 0.0
        %4269 = vmatpush1.msra.mxu0 0.0
        %4270 = vmatprep.subr.mxu0 0.0
        %4271 = vmatpush1.msra.mxu0 0.0
        %4272 = vmatprep.subr.mxu0 0.0
        %4273 = vmatpush1.msra.mxu0 0.0
        %4274 = vmatprep.subr.mxu0 0.0
        %4275 = vmatpush1.msra.mxu0 0.0
        %4276 = vmatprep.subr.mxu0 0.0
        %4277 = vmatpush1.msra.mxu0 0.0
        %4278 = vmatprep.subr.mxu0 0.0
        %4279 = vmatpush1.msra.mxu0 0.0
        %4280 = vmatprep.subr.mxu0 0.0
        %4281 = vmatpush1.msra.mxu0 0.0
        %4282 = vmatprep.subr.mxu0 0.0
        %4283 = vmatpush1.msra.mxu0 0.0
        %4284 = vmatprep.mubr.f32.mxu0 0.0
        %4285 = vmatmul.mubr.f32.gmra.mrb[0].mxu0 %v4218
        %v4286 = vpop.f32.mrb[0].mxu0
        %v4287 = vadd.f32 0.0, %v4286
        %v4288 = vpop.f32.mrb[0].mxu0
        %4289 = vdwg.mxu0
        %v4291 = vsel %vm1337, %v4213, 0
        %4293 = vmatprep.subr.mxu0 0.0
        %4294 = vmatpush1.msra.mxu0 %v4035
        %4295 = vmatprep.subr.mxu0 0.0
        %4296 = vmatpush1.msra.mxu0 0.0
        %4297 = vmatprep.subr.mxu0 0.0
        %4298 = vmatpush1.msra.mxu0 0.0
        %4299 = vmatprep.subr.mxu0 0.0
        %4300 = vmatpush1.msra.mxu0 0.0
        %4301 = vmatprep.subr.mxu0 0.0
        %4302 = vmatpush1.msra.mxu0 0.0
        %4303 = vmatprep.subr.mxu0 0.0
        %4304 = vmatpush1.msra.mxu0 0.0
        %4305 = vmatprep.subr.mxu0 0.0
        %4306 = vmatpush1.msra.mxu0 0.0
        %4307 = vmatprep.subr.mxu0 0.0
        %4308 = vmatpush1.msra.mxu0 0.0
        %4309 = vmatprep.subr.mxu0 0.0
        %4310 = vmatpush1.msra.mxu0 0.0
        %4311 = vmatprep.subr.mxu0 0.0
        %4312 = vmatpush1.msra.mxu0 0.0
        %4313 = vmatprep.subr.mxu0 0.0
        %4314 = vmatpush1.msra.mxu0 0.0
        %4315 = vmatprep.subr.mxu0 0.0
        %4316 = vmatpush1.msra.mxu0 0.0
        %4317 = vmatprep.subr.mxu0 0.0
        %4318 = vmatpush1.msra.mxu0 0.0
        %4319 = vmatprep.subr.mxu0 0.0
        %4320 = vmatpush1.msra.mxu0 0.0
        %4321 = vmatprep.subr.mxu0 0.0
        %4322 = vmatpush1.msra.mxu0 0.0
        %4323 = vmatprep.subr.mxu0 0.0
        %4324 = vmatpush1.msra.mxu0 0.0
        %4325 = vmatprep.subr.mxu0 0.0
        %4326 = vmatpush1.msra.mxu0 0.0
        %4327 = vmatprep.subr.mxu0 0.0
        %4328 = vmatpush1.msra.mxu0 0.0
        %4329 = vmatprep.subr.mxu0 0.0
        %4330 = vmatpush1.msra.mxu0 0.0
        %4331 = vmatprep.subr.mxu0 0.0
        %4332 = vmatpush1.msra.mxu0 0.0
        %4333 = vmatprep.subr.mxu0 0.0
        %4334 = vmatpush1.msra.mxu0 0.0
        %4335 = vmatprep.subr.mxu0 0.0
        %4336 = vmatpush1.msra.mxu0 0.0
        %4337 = vmatprep.subr.mxu0 0.0
        %4338 = vmatpush1.msra.mxu0 0.0
        %4339 = vmatprep.subr.mxu0 0.0
        %4340 = vmatpush1.msra.mxu0 0.0
        %4341 = vmatprep.subr.mxu0 0.0
        %4342 = vmatpush1.msra.mxu0 0.0
        %4343 = vmatprep.subr.mxu0 0.0
        %4344 = vmatpush1.msra.mxu0 0.0
        %4345 = vmatprep.subr.mxu0 0.0
        %4346 = vmatpush1.msra.mxu0 0.0
        %4347 = vmatprep.subr.mxu0 0.0
        %4348 = vmatpush1.msra.mxu0 0.0
        %4349 = vmatprep.subr.mxu0 0.0
        %4350 = vmatpush1.msra.mxu0 0.0
        %4351 = vmatprep.subr.mxu0 0.0
        %4352 = vmatpush1.msra.mxu0 0.0
        %4353 = vmatprep.subr.mxu0 0.0
        %4354 = vmatpush1.msra.mxu0 0.0
        %4355 = vmatprep.subr.mxu0 0.0
        %4356 = vmatpush1.msra.mxu0 0.0
        %4357 = vmatprep.mubr.f32.mxu0 0.0
        %4358 = vmatmul.mubr.f32.gmra.mrb[0].mxu0 %v4291
        %v4359 = vpop.f32.mrb[0].mxu0
        %v4360 = vadd.f32 0.0, %v4359
        %v4361 = vpop.f32.mrb[0].mxu0
        %4362 = vdwg.mxu0
        %s4363 = scalar_lea.vmem %s3, 24
        %v4364 = vld [vmem:[%s4363] sm:$0xff]
        %v4366 = vsel %vm1337, %v4287, 0
        %v4369 = vsel %vm1337, %v4360, 0
        %4371 = vmatprep.subr.mxu0 0.0
        %4372 = vmatpush1.msra.mxu0 %v4364
        %4373 = vmatprep.subr.mxu0 0.0
        %4374 = vmatpush1.msra.mxu0 0.0
        %4375 = vmatprep.subr.mxu0 0.0
        %4376 = vmatpush1.msra.mxu0 0.0
        %4377 = vmatprep.subr.mxu0 0.0
        %4378 = vmatpush1.msra.mxu0 0.0
        %4379 = vmatprep.subr.mxu0 0.0
        %4380 = vmatpush1.msra.mxu0 0.0
        %4381 = vmatprep.subr.mxu0 0.0
        %4382 = vmatpush1.msra.mxu0 0.0
        %4383 = vmatprep.subr.mxu0 0.0
        %4384 = vmatpush1.msra.mxu0 0.0
        %4385 = vmatprep.subr.mxu0 0.0
        %4386 = vmatpush1.msra.mxu0 0.0
        %4387 = vmatprep.subr.mxu0 0.0
        %4388 = vmatpush1.msra.mxu0 0.0
        %4389 = vmatprep.subr.mxu0 0.0
        %4390 = vmatpush1.msra.mxu0 0.0
        %4391 = vmatprep.subr.mxu0 0.0
        %4392 = vmatpush1.msra.mxu0 0.0
        %4393 = vmatprep.subr.mxu0 0.0
        %4394 = vmatpush1.msra.mxu0 0.0
        %4395 = vmatprep.subr.mxu0 0.0
        %4396 = vmatpush1.msra.mxu0 0.0
        %4397 = vmatprep.subr.mxu0 0.0
        %4398 = vmatpush1.msra.mxu0 0.0
        %4399 = vmatprep.subr.mxu0 0.0
        %4400 = vmatpush1.msra.mxu0 0.0
        %4401 = vmatprep.subr.mxu0 0.0
        %4402 = vmatpush1.msra.mxu0 0.0
        %4403 = vmatprep.subr.mxu0 0.0
        %4404 = vmatpush1.msra.mxu0 0.0
        %4405 = vmatprep.subr.mxu0 0.0
        %4406 = vmatpush1.msra.mxu0 0.0
        %4407 = vmatprep.subr.mxu0 0.0
        %4408 = vmatpush1.msra.mxu0 0.0
        %4409 = vmatprep.subr.mxu0 0.0
        %4410 = vmatpush1.msra.mxu0 0.0
        %4411 = vmatprep.subr.mxu0 0.0
        %4412 = vmatpush1.msra.mxu0 0.0
        %4413 = vmatprep.subr.mxu0 0.0
        %4414 = vmatpush1.msra.mxu0 0.0
        %4415 = vmatprep.subr.mxu0 0.0
        %4416 = vmatpush1.msra.mxu0 0.0
        %4417 = vmatprep.subr.mxu0 0.0
        %4418 = vmatpush1.msra.mxu0 0.0
        %4419 = vmatprep.subr.mxu0 0.0
        %4420 = vmatpush1.msra.mxu0 0.0
        %4421 = vmatprep.subr.mxu0 0.0
        %4422 = vmatpush1.msra.mxu0 0.0
        %4423 = vmatprep.subr.mxu0 0.0
        %4424 = vmatpush1.msra.mxu0 0.0
        %4425 = vmatprep.subr.mxu0 0.0
        %4426 = vmatpush1.msra.mxu0 0.0
        %4427 = vmatprep.subr.mxu0 0.0
        %4428 = vmatpush1.msra.mxu0 0.0
        %4429 = vmatprep.subr.mxu0 0.0
        %4430 = vmatpush1.msra.mxu0 0.0
        %4431 = vmatprep.subr.mxu0 0.0
        %4432 = vmatpush1.msra.mxu0 0.0
        %4433 = vmatprep.subr.mxu0 0.0
        %4434 = vmatpush1.msra.mxu0 0.0
        %4435 = vmatprep.mubr.f32.mxu0 0.0
        %4436 = vmatmul.mubr.f32.gmra.mrb[0].mxu0 %v4366
        %v4437 = vpop.f32.mrb[0].mxu0
        %v4438 = vadd.f32 0.0, %v4437
        %v4439 = vpop.f32.mrb[0].mxu0
        %4440 = vmatprep.mubr.f32.mxu0 0.0
        %4441 = vmatmul.mubr.f32.gmra.mrb[0].mxu0 %v4369
        %v4442 = vpop.f32.mrb[0].mxu0
        %v4443 = vadd.f32 0.0, %v4442
        %v4444 = vpop.f32.mrb[0].mxu0
        %4445 = vdwg.mxu0
        %v4446 = vadd.f32 %v3544, %v4438
        %v4447 = vadd.f32 %v3545, %v4443
        %v4448 = vld [vmem:[%s4] sm:$0x1]
        %v4450 = vlaneseq
        %v4451 = vshrl.u32 %v4450, 7
        %v4452 = vsub.s32 0, %v4451
        %v4453 = vrot.slane %v4448, %v4452
        %v4455 = vadd.f32 %v4446, %v4453
        %v4456 = vadd.f32 %v4447, %v4453
        %4457 = vst.msk [vmem:[%s816] sm:$0xff] %vm862, %v4455
        %4458 = vst.msk [vmem:[%s816 + $0x8] sm:$0xff] %vm862, %v4456
        %s4459 = sand.u32 %s168, 1
        %s4460 = scalar_lea.sflag [#allocation5], %s4459
        %s4461 = sand.u32 %s168, 1
        %s4462 = smul.addr %s4461, 16
        %s4463 = scalar_lea.vmem [#allocation4], %s4462
        %s4464 = sand.u32 %s196, 1
        %s4465 = scalar_lea.sflag [#allocation7], %s4464
        %s4466 = sand.u32 %s196, 1
        %s4467 = smul.addr %s4466, 64
        %s4468 = scalar_lea.vmem [#allocation6], %s4467
        // Predicated region
        $region120: #{tpu_custom_call.1} parent=110 // pred_check
          %p4469 = pneg %p178
        $region121: #{tpu_custom_call.1} parent=110 // pred_check_branch
          %4471 = sbr.rel (%p4469) target = $region123
        $region122: #{tpu_custom_call.1} parent=110 // pred_region
          %s4472 = smul.u32 2, %s28
          %s4474 = ssub.s32 256, 256
          %4475 = vsyncadd %s4460, %s4474
          %s4476 = smul.addr %s29, 4
          %s4477 = sadd.s32 %s4472, %s4476
          %s4478 = smul.addr %s4477, 128
          %s4479 = scalar_lea.hbm %s5, %s4478
          %s4480 = sshll.u32 %s4463, 4
          %s4481 = int_to_ptr.vmem [resolvable:$true] %s4480
          %4486 = dma.vmem_to_hbm [thread:$0]  %s4481, 256, %s4479, %s4460, 128, 128, 8
        $region123: #{tpu_custom_call.1} parent=110 // pred_fallthru
          _
        // Predicated region
        $region124: #{tpu_custom_call.1} parent=110 // pred_check
          %p4487 = pneg %p206
        $region125: #{tpu_custom_call.1} parent=110 // pred_check_branch
          %4489 = sbr.rel (%p4487) target = $region127
        $region126: #{tpu_custom_call.1} parent=110 // pred_region
          %s4490 = smul.u32 2, %s28
          %s4492 = ssub.s32 1024, 1024
          %4493 = vsyncadd %s4465, %s4492
          %s4494 = smul.addr %s4490, 4
          %s4495 = smul.addr %s29, 16
          %s4496 = sadd.s32 %s4494, %s4495
          %s4497 = smul.addr %s4496, 128
          %s4498 = scalar_lea.hbm %s6, %s4497
          %s4499 = sshll.u32 %s4468, 4
          %s4500 = int_to_ptr.vmem [resolvable:$true] %s4499
          %4505 = dma.vmem_to_hbm [thread:$0]  %s4500, 1024, %s4498, %s4465, 128, 128, 8
        $region127: #{tpu_custom_call.1} parent=110 // pred_fallthru
          _
      $region111: #{tpu_custom_call.1} parent=5 // pred_fallthru
        _
      %p4506 = scmp.le.s32.totalorder 2, %s19
      // Predicated region
      $region128: #{tpu_custom_call.1} parent=5 // pred_check
        %p4507 = pneg %p4506
      $region129: #{tpu_custom_call.1} parent=5 // pred_check_branch
        %4509 = sbr.rel (%p4507) target = $region131
      $region130: #{tpu_custom_call.1} parent=5 // pred_region
        %s4510 = ssub.s32 %s19, 2
        // Predicated region
        $region132: #{tpu_custom_call.1} parent=130 // pred_check
          %p4511 = pneg %p184
        $region133: #{tpu_custom_call.1} parent=130 // pred_check_branch
          %4513 = sbr.rel (%p4511) target = $region135
        $region134: #{tpu_custom_call.1} parent=130 // pred_region
          %s4514 = sand.u32 %s169, 1
          %s4515 = scalar_lea.sflag [#allocation5], %s4514
          %s4516 = sand.u32 %s169, 1
          %s4517 = smul.addr %s4516, 16
          %s4518 = scalar_lea.vmem [#allocation4], %s4517
          %4519 = dma.done %s4515, 256
        $region135: #{tpu_custom_call.1} parent=130 // pred_fallthru
          _
        // Predicated region
        $region136: #{tpu_custom_call.1} parent=130 // pred_check
          %p4520 = pneg %p212
        $region137: #{tpu_custom_call.1} parent=130 // pred_check_branch
          %4522 = sbr.rel (%p4520) target = $region139
        $region138: #{tpu_custom_call.1} parent=130 // pred_region
          %s4523 = sand.u32 %s197, 1
          %s4524 = scalar_lea.sflag [#allocation7], %s4523
          %s4525 = sand.u32 %s197, 1
          %s4526 = smul.addr %s4525, 64
          %s4527 = scalar_lea.vmem [#allocation6], %s4526
          %4528 = dma.done %s4524, 1024
        $region139: #{tpu_custom_call.1} parent=130 // pred_fallthru
          _
      $region131: #{tpu_custom_call.1} parent=5 // pred_fallthru
        _
    $region6: #{tpu_custom_call.1} parent=1 // loop_footer
      %s23 = sadd.s32 1, %s19
    $region7: #{tpu_custom_call.1} parent=1 // loop_footer_branch
      %18 = sbr.rel target = $region3
    $region8: #{tpu_custom_call.1} parent=1 // loop_exit
      _
    %4529 = vsyncpa [#allocation5], 1
    %s4530 = scalar_lea.sflag [#allocation5], 1
    %4531 = vsyncpa %s4530, 1
    %4532 = vsyncpa [#allocation7], 1
    %s4533 = scalar_lea.sflag [#allocation7], 1
    %4534 = vsyncpa %s4533, 1

</llo_original>
